<compile_context>
chip_gen: v5e
topology: v5e:2x2
jax: 0.10.0
libtpu: 0.0.40
codegen_flags: <defaults>
</compile_context>

<pallas_src>
import math

import jax
import jax.numpy as jnp
from jax.experimental import pallas as pl
from jax.experimental.pallas import tpu as pltpu


# -----------------------------------------------------------------------------
# Kernel factory
# -----------------------------------------------------------------------------
def _make_kernel(*, Bg, N, H, O, K, KS, L, DIN, cdt):
    """Bg: per-group batch, KS = K-1 non-identity supports, cdt: stream dtype."""

    def kernel(*refs):
        idx = 0
        supports_ref = None
        if KS > 0:
            supports_ref = refs[idx]; idx += 1
        h0_ref = refs[idx]
        proj_w_ref = refs[idx + 1]
        proj_b_ref = refs[idx + 2]
        idx += 3
        layer_refs = []
        for _ in range(L):                      # (wx, wgh, wch, bg, bc) per layer
            layer_refs.append(tuple(refs[idx:idx + 5]))
            idx += 5
        out_ref = refs[idx]; idx += 1
        h_sc, go_sc, zh_sc, r_sc, cx_sc = refs[idx:idx + 5]

        t = pl.program_id(1)

        @pl.when(t == 0)
        def _init():
            h_sc[...] = h0_ref[0].astype(jnp.float32)
            go_sc[...] = jnp.zeros_like(go_sc)

        x_stk = go_sc[...]                       # f32 [N, Bg*x_dim]
        x_dim = DIN

        for l in range(L):
            wx_ref, wgh_ref, wch_ref, bg_ref, bc_ref = layer_refs[l]
            h_stk = h_sc[l]                      # f32 [N, Bg*H]
            bg_all = bg_ref[0].astype(jnp.float32)   # [Bg, 2H]
            bc_all = bc_ref[0].astype(jnp.float32)   # [Bg, H]

            # Batched support contractions; k=0 (identity) is the raw operand.
            x_c = x_stk.astype(cdt)
            h_c = h_stk.astype(cdt)
            gx = [x_c] + [
                jnp.dot(supports_ref[k], x_c,
                        preferred_element_type=jnp.float32).astype(cdt)
                for k in range(KS)]
            gh = [h_c] + [
                jnp.dot(supports_ref[k], h_c,
                        preferred_element_type=jnp.float32).astype(cdt)
                for k in range(KS)]

            # ---- phase 1: fused z|r gate + candidate x-contribution ----------
            # TODO(synk): for very large Bg, switch this unroll to lax.fori_loop.
            for b in range(Bg):
                h_b = h_stk[:, b * H:(b + 1) * H]
                acc = jnp.zeros((N, 3 * H), jnp.float32)
                for k in range(K):
                    xa = gx[k][:, b * x_dim:(b + 1) * x_dim]
                    acc = acc + jnp.dot(xa, wx_ref[0, b * K + k],
                                        preferred_element_type=jnp.float32)
                gate = acc[:, :2 * H]
                for k in range(K):
                    ha = gh[k][:, b * H:(b + 1) * H]
                    gate = gate + jnp.dot(ha, wgh_ref[0, b * K + k],
                                          preferred_element_type=jnp.float32)
                zr = jax.nn.sigmoid(gate + bg_all[b:b + 1, :])
                z_b = zr[:, :H]
                r_sc[:, b * H:(b + 1) * H] = zr[:, H:]
                cx_sc[:, b * H:(b + 1) * H] = acc[:, 2 * H:]
                zh_sc[:, b * H:(b + 1) * H] = z_b * h_b

            # ---- phase 2: batched supports @ (z*h) ---------------------------
            zh_c = zh_sc[...].astype(cdt)
            gzh = [zh_c] + [
                jnp.dot(supports_ref[k], zh_c,
                        preferred_element_type=jnp.float32).astype(cdt)
                for k in range(KS)]

            # ---- phase 3: candidate + state update ---------------------------
            for b in range(Bg):
                h_b = h_stk[:, b * H:(b + 1) * H]
                cand = cx_sc[:, b * H:(b + 1) * H]
                for k in range(K):
                    za = gzh[k][:, b * H:(b + 1) * H]
                    cand = cand + jnp.dot(za, wch_ref[0, b * K + k],
                                          preferred_element_type=jnp.float32)
                hc_b = jnp.tanh(cand + bc_all[b:b + 1, :])
                r_b = r_sc[:, b * H:(b + 1) * H]
                h_sc[l, :, b * H:(b + 1) * H] = r_b * h_b + (1.0 - r_b) * hc_b

            x_stk = h_sc[l]                      # updated state feeds next layer
            x_dim = H

        # ---- output projection (shared weights, per-batch lane slice) -------
        for b in range(Bg):
            h_b = x_stk[:, b * H:(b + 1) * H].astype(cdt)
            go_b = jnp.dot(h_b, proj_w_ref[...],
                           preferred_element_type=jnp.float32) + proj_b_ref[...]
            go_sc[:, b * O:(b + 1) * O] = go_b
        out_ref[0] = go_sc[...].astype(out_ref.dtype)   # one slab store / step

    return kernel


# -----------------------------------------------------------------------------
# Wrapper (mirrors Recurrent_decoder.forward)
# -----------------------------------------------------------------------------
def recurrent_decoder_forward(params, source, target, h_n, node_embedding1,
                              node_embedding2, node_embeddings, batches_seen,
                              cfg, *, stream_dtype=jnp.bfloat16,
                              batch_groups=None):
    # TODO(synk): teacher forcing (training-only) is not implemented.
    del target, node_embedding1, batches_seen
    B = source.shape[0]
    N = cfg["num_nodes"]; H = cfg["rnn_units"]; O = cfg["output_dim"]
    K = cfg["cheb_k"]; L = cfg["num_layers"]
    DIN = cfg["input_dim"]; T = cfg["horizon"]
    assert O == DIN, "decoder feeds its own projection back as next input"
    KS = K - 1

    if batch_groups is None:
        G = 2 if (B % 2 == 0 and B >= 2) else 1     # use both TCs on v7x
    else:
        assert B % batch_groups == 0
        G = batch_groups
    Bg = B // G
    cdt = jnp.dtype(stream_dtype)

    # ---- Chebyshev supports (identity dropped; handled implicitly) ----------
    emb = node_embeddings.astype(jnp.float32)
    adj = jax.nn.softmax(jnp.maximum(emb @ emb.T, 0.0), axis=1)
    cheb = [jnp.eye(N, dtype=jnp.float32), adj]
    for _ in range(2, K):
        cheb.append(2.0 * adj @ cheb[-1] - cheb[-2])
    supports = jnp.stack(cheb[1:K], axis=0).astype(cdt) if KS > 0 else None

    te = node_embedding2.astype(jnp.float32)        # [B, T, D]
    assert te.shape[0] == B and te.shape[1] == T

    def _group_time(x):
        # [B, T, *rest] -> [G*T, Bg, *rest]  (group-major, t-minor)
        rest = x.shape[2:]
        x = x.reshape(G, Bg, T, *rest)
        x = jnp.moveaxis(x, 2, 1)
        return x.reshape(G * T, Bg, *rest)

    stream, stream_specs = [], []
    stream_blk_bytes = 0

    def _add_stream(x):
        nonlocal stream_blk_bytes
        nd = x.ndim
        spec = pl.BlockSpec((1,) + x.shape[1:],
                            lambda c, t, _nd=nd: (c * T + t,) + (0,) * (_nd - 1))
        stream.append(x)
        stream_specs.append(spec)
        stream_blk_bytes += int(math.prod(x.shape[1:])) * x.dtype.itemsize

    # ---- per-(step, batch) pattern-matched weights, hoisted out of the loop -
    # Row-split into x-rows / h-rows; fuse gate-x and candidate-x into [i, 3H].
    for l in range(L):
        i_l = DIN if l == 0 else H
        wg = jnp.einsum("btd,dkio->btkio", te, params["gate_w"][l].astype(jnp.float32))
        wc = jnp.einsum("btd,dkio->btkio", te, params["update_w"][l].astype(jnp.float32))
        wx = jnp.concatenate([wg[..., :i_l, :], wc[..., :i_l, :]], axis=-1)   # [B,T,K,i,3H]
        wgh = wg[..., i_l:, :]                                                # [B,T,K,H,2H]
        wch = wc[..., i_l:, :]                                                # [B,T,K,H,H]
        bg = jnp.einsum("btd,dh->bth", te, params["gate_b"][l].astype(jnp.float32))
        bc = jnp.einsum("btd,dh->bth", te, params["update_b"][l].astype(jnp.float32))

        wx_s = _group_time(wx).reshape(G * T, Bg * K, i_l, 3 * H).astype(cdt)
        wgh_s = _group_time(wgh).reshape(G * T, Bg * K, H, 2 * H).astype(cdt)
        wch_s = _group_time(wch).reshape(G * T, Bg * K, H, H).astype(cdt)
        bg_s = _group_time(bg).astype(cdt)                                    # [G*T,Bg,2H]
        bc_s = _group_time(bc).astype(cdt)                                    # [G*T,Bg,H]
        for a in (wx_s, wgh_s, wch_s, bg_s, bc_s):
            _add_stream(a)

    # ---- initial hidden state: [L, B, N, H] -> [G, L, N, Bg*H] (f32) --------
    h0 = jnp.moveaxis(h_n.astype(jnp.float32), 1, 0)       # [B, L, N, H]
    h0 = h0.reshape(G, Bg, L, N, H)
    h0 = jnp.transpose(h0, (0, 2, 3, 1, 4)).reshape(G, L, N, Bg * H)

    proj_w = params["proj_w"].astype(cdt)
    proj_b = params["proj_b"].astype(jnp.float32).reshape(1, O)

    consts, const_specs = [], []
    const_blk_bytes = 0
    if KS > 0:
        consts.append(supports)
        const_specs.append(pl.BlockSpec(supports.shape, lambda c, t: (0, 0, 0)))
        const_blk_bytes += supports.size * supports.dtype.itemsize
    consts.append(h0)
    const_specs.append(pl.BlockSpec((1, L, N, Bg * H), lambda c, t: (c, 0, 0, 0)))
    const_blk_bytes += (h0.size // G) * h0.dtype.itemsize
    consts.append(proj_w)
    const_specs.append(pl.BlockSpec(proj_w.shape, lambda c, t: (0, 0)))
    const_blk_bytes += proj_w.size * proj_w.dtype.itemsize
    consts.append(proj_b)
    const_specs.append(pl.BlockSpec(proj_b.shape, lambda c, t: (0, 0)))
    const_blk_bytes += proj_b.size * proj_b.dtype.itemsize

    # ---- explicit VMEM budget (double-buffered streams + consts + scratch) --
    out_blk_bytes = N * Bg * O * 4
    scratch_bytes = 4 * (L * N * Bg * H + N * Bg * DIN + 3 * N * Bg * H)
    vmem_limit = int(min(100 * (1 << 20),
                         max(32 * (1 << 20),
                             2 * (stream_blk_bytes + const_blk_bytes + out_blk_bytes)
                             + scratch_bytes + (8 << 20))))

    kernel = _make_kernel(Bg=Bg, N=N, H=H, O=O, K=K, KS=KS, L=L, DIN=DIN, cdt=cdt)

    out = pl.pallas_call(
        kernel,
        out_shape=jax.ShapeDtypeStruct((G * T, N, Bg * O), jnp.float32),
        grid_spec=pltpu.PrefetchScalarGridSpec(
            num_scalar_prefetch=0,
            grid=(G, T),                         # G: batch groups, T: serial time
            in_specs=const_specs + stream_specs,
            out_specs=pl.BlockSpec((1, N, Bg * O), lambda c, t: (c * T + t, 0, 0)),
            scratch_shapes=[
                pltpu.VMEM((L, N, Bg * H), jnp.float32),   # hidden state carry
                pltpu.VMEM((N, Bg * DIN), jnp.float32),    # autoregressive "go"
                pltpu.VMEM((N, Bg * H), jnp.float32),      # z*h slab
                pltpu.VMEM((N, Bg * H), jnp.float32),      # r slab
                pltpu.VMEM((N, Bg * H), jnp.float32),      # candidate x-contrib
            ]),
        compiler_params=pltpu.CompilerParams(
            dimension_semantics=("parallel", "arbitrary"),
            vmem_limit_bytes=vmem_limit),
    )(*consts, *stream)

    out = out.reshape(G, T, N, Bg, O)
    out = jnp.transpose(out, (0, 3, 1, 2, 4)).reshape(B, T, N, O)
    return out


# -----------------------------------------------------------------------------
# Pure-JAX reference (torch-equivalent math) for correctness checking.
# -----------------------------------------------------------------------------
def reference_forward(params, h_n, node_embedding2, node_embeddings, cfg):
    N = cfg["num_nodes"]; H = cfg["rnn_units"]; O = cfg["output_dim"]
    K = cfg["cheb_k"]; L = cfg["num_layers"]; horizon = cfg["horizon"]
    B = h_n.shape[1]

    adj = jax.nn.softmax(
        jnp.maximum(node_embeddings @ node_embeddings.T, 0.0), axis=1)
    cheb = [jnp.eye(N, dtype=jnp.float32), adj]
    for _ in range(2, K):
        cheb.append(2.0 * adj @ cheb[-1] - cheb[-2])
    supports = jnp.stack(cheb[:K], axis=0)

    def pgcn(x, te, wpool, bpool):
        weights = jnp.einsum("bd,dkio->bkio", te, wpool)
        bias = te @ bpool
        xg = jnp.einsum("knm,bmc->bknc", supports, x)
        return jnp.einsum("bkni,bkio->bno", xg, weights) + bias[:, None, :]

    go = jnp.zeros((B, N, O), jnp.float32)
    h = [h_n[l] for l in range(L)]
    outs = []
    for t in range(horizon):
        te = node_embedding2[:, t, :]
        x = go
        for l in range(L):
            wg, bg = params["gate_w"][l], params["gate_b"][l]
            wu, bu = params["update_w"][l], params["update_b"][l]
            inp = jnp.concatenate([x, h[l]], axis=-1)
            zr = jax.nn.sigmoid(pgcn(inp, te, wg, bg))
            z, r = zr[..., :H], zr[..., H:]
            cand = jnp.concatenate([x, z * h[l]], axis=-1)
            hc = jnp.tanh(pgcn(cand, te, wu, bu))
            h[l] = r * h[l] + (1.0 - r) * hc
            x = h[l]
        go = x @ params["proj_w"] + params["proj_b"]
        outs.append(go)
    return jnp.stack(outs, axis=1)


if __name__ == "__main__":
    cfg = dict(num_nodes=8, input_dim=2, output_dim=2, rnn_units=16,
               cheb_k=2, embed_dim=8, time_dim=8, horizon=4, num_layers=2)
    B, T_in = 4, 6
    N, H, O = cfg["num_nodes"], cfg["rnn_units"], cfg["output_dim"]
    K, D, E, L = cfg["cheb_k"], cfg["time_dim"], cfg["embed_dim"], cfg["num_layers"]
    DIN, horizon = cfg["input_dim"], cfg["horizon"]

    key = jax.random.PRNGKey(0)
    keys = jax.random.split(key, 20)

    def rnd(k, shape, scale=0.1):
        return (scale * jax.random.normal(k, shape)).astype(jnp.float32)

    params = {
        "gate_w": [rnd(keys[0], (D, K, DIN + H, 2 * H)),
                   rnd(keys[1], (D, K, H + H, 2 * H))],
        "gate_b": [rnd(keys[2], (D, 2 * H)), rnd(keys[3], (D, 2 * H))],
        "update_w": [rnd(keys[4], (D, K, DIN + H, H)),
                     rnd(keys[5], (D, K, H + H, H))],
        "update_b": [rnd(keys[6], (D, H)), rnd(keys[7], (D, H))],
        "proj_w": rnd(keys[8], (H, O)),
        "proj_b": rnd(keys[9], (1, O)),
    }
    source = rnd(keys[10], (B, T_in, N, DIN), 1.0)
    target = rnd(keys[11], (B, horizon, N, DIN), 1.0)
    h_n = rnd(keys[12], (L, B, N, H), 1.0)
    node_embedding1 = rnd(keys[13], (B, T_in, D), 1.0)   # unused by forward
    node_embedding2 = rnd(keys[14], (B, horizon, D), 1.0)
    node_embeddings = rnd(keys[15], (N, E), 1.0)

    ref = reference_forward(params, h_n, node_embedding2, node_embeddings, cfg)

    # f32 streaming: tight numerical check of kernel logic.
    out32 = recurrent_decoder_forward(params, source, target, h_n,
                                      node_embedding1, node_embedding2,
                                      node_embeddings, batches_seen=0, cfg=cfg,
                                      stream_dtype=jnp.float32)
    out32 = jax.block_until_ready(out32)
    assert out32.shape == (B, horizon, N, O), out32.shape
    err32 = float(jnp.max(jnp.abs(out32 - ref)))
    assert err32 < 2e-3, f"f32 path max abs error too large: {err32}"

    # bf16 streaming (recommended production path): looser sanity bound.
    out16 = recurrent_decoder_forward(params, source, target, h_n,
                                      node_embedding1, node_embedding2,
                                      node_embeddings, batches_seen=0, cfg=cfg,
                                      stream_dtype=jnp.bfloat16)
    out16 = jax.block_until_ready(out16)
    err16 = float(jnp.max(jnp.abs(out16 - ref)))
    assert err16 < 6e-2, f"bf16 path max abs error too large: {err16}"

    print("KERNEL_OK")
</pallas_src>

<mosaic_0001>
module attributes {stable_mosaic.version = 11 : i64} {
  func.func @kernel(%arg0: i32, %arg1: i32, %arg2: memref<1x8x8xf32, #tpu.memory_space<vmem>>, %arg3: memref<1x2x8x32xf32, #tpu.memory_space<vmem>>, %arg4: memref<16x2xf32, #tpu.memory_space<vmem>>, %arg5: memref<1x2xf32, #tpu.memory_space<vmem>>, %arg6: memref<1x4x2x48xf32, #tpu.memory_space<vmem>>, %arg7: memref<1x4x16x32xf32, #tpu.memory_space<vmem>>, %arg8: memref<1x4x16x16xf32, #tpu.memory_space<vmem>>, %arg9: memref<1x2x32xf32, #tpu.memory_space<vmem>>, %arg10: memref<1x2x16xf32, #tpu.memory_space<vmem>>, %arg11: memref<1x4x16x48xf32, #tpu.memory_space<vmem>>, %arg12: memref<1x4x16x32xf32, #tpu.memory_space<vmem>>, %arg13: memref<1x4x16x16xf32, #tpu.memory_space<vmem>>, %arg14: memref<1x2x32xf32, #tpu.memory_space<vmem>>, %arg15: memref<1x2x16xf32, #tpu.memory_space<vmem>>, %arg16: memref<1x8x4xf32, #tpu.memory_space<vmem>>, %arg17: memref<2x8x32xf32, #tpu.memory_space<vmem>>, %arg18: memref<8x4xf32, #tpu.memory_space<vmem>>, %arg19: memref<8x32xf32, #tpu.memory_space<vmem>>, %arg20: memref<8x32xf32, #tpu.memory_space<vmem>>, %arg21: memref<8x32xf32, #tpu.memory_space<vmem>>) attributes {dimension_semantics = [#tpu.dimension_semantics<parallel>, #tpu.dimension_semantics<arbitrary>], iteration_bounds = array<i64: 2, 4>, scalar_prefetch = 0 : i64, scratch_operands = 5 : i64, tpu.core_type = #tpu.core_type<tc>, window_params = [{pipeline_mode = #tpu.pipeline_mode<synchronous>, transform_indices = @transform_0, window_bounds = array<i64: 1, 8, 8>}, {transform_indices = @transform_1, window_bounds = array<i64: 1, 2, 8, 32>}, {pipeline_mode = #tpu.pipeline_mode<synchronous>, transform_indices = @transform_2, window_bounds = array<i64: 16, 2>}, {pipeline_mode = #tpu.pipeline_mode<synchronous>, transform_indices = @transform_3, window_bounds = array<i64: 1, 2>}, {transform_indices = @transform_4, window_bounds = array<i64: 1, 4, 2, 48>}, {transform_indices = @transform_5, window_bounds = array<i64: 1, 4, 16, 32>}, {transform_indices = @transform_6, window_bounds = array<i64: 1, 4, 16, 16>}, {transform_indices = @transform_7, window_bounds = array<i64: 1, 2, 32>}, {transform_indices = @transform_8, window_bounds = array<i64: 1, 2, 16>}, {transform_indices = @transform_9, window_bounds = array<i64: 1, 4, 16, 48>}, {transform_indices = @transform_10, window_bounds = array<i64: 1, 4, 16, 32>}, {transform_indices = @transform_11, window_bounds = array<i64: 1, 4, 16, 16>}, {transform_indices = @transform_12, window_bounds = array<i64: 1, 2, 32>}, {transform_indices = @transform_13, window_bounds = array<i64: 1, 2, 16>}, {transform_indices = @transform_14, window_bounds = array<i64: 1, 8, 4>}]} {
    %c0_i32 = arith.constant 0 : i32
    %0 = arith.cmpi eq, %arg1, %c0_i32 : i32
    %1 = arith.extui %0 : i1 to i32
    %c0_i32_0 = arith.constant 0 : i32
    %2 = arith.cmpi ne, %1, %c0_i32_0 : i32
    scf.if %2 {
      %c0_252 = arith.constant 0 : index
      %c0_253 = arith.constant 0 : index
      %c0_254 = arith.constant 0 : index
      %c0_255 = arith.constant 0 : index
      %310 = vector.load %arg3[%c0_252, %c0_253, %c0_254, %c0_255] : memref<1x2x8x32xf32, #tpu.memory_space<vmem>>, vector<1x2x8x32xf32>
      %311 = vector.shape_cast %310 : vector<1x2x8x32xf32> to vector<2x8x32xf32>
      %c0_256 = arith.constant 0 : index
      %c0_257 = arith.constant 0 : index
      %c0_258 = arith.constant 0 : index
      %312 = vector.load %arg17[%c0_256, %c0_257, %c0_258] : memref<2x8x32xf32, #tpu.memory_space<vmem>>, vector<2x8x32xf32>
      tpu.vector_store %arg17[%c0_256, %c0_257, %c0_258], %311 {strides = array<i32>} : memref<2x8x32xf32, #tpu.memory_space<vmem>>, vector<2x8x32xf32>,
      %cst_259 = arith.constant 0.000000e+00 : f32
      %313 = vector.broadcast %cst_259 : f32 to vector<8x4xf32>
      %c0_260 = arith.constant 0 : index
      %c0_261 = arith.constant 0 : index
      %314 = vector.load %arg18[%c0_260, %c0_261] : memref<8x4xf32, #tpu.memory_space<vmem>>, vector<8x4xf32>
      tpu.vector_store %arg18[%c0_260, %c0_261], %313 {strides = array<i32>} : memref<8x4xf32, #tpu.memory_space<vmem>>, vector<8x4xf32>,
    } else {
    }
    %c0 = arith.constant 0 : index
    %c0_1 = arith.constant 0 : index
    %3 = vector.load %arg18[%c0, %c0_1] : memref<8x4xf32, #tpu.memory_space<vmem>>, vector<8x4xf32>
    %c0_2 = arith.constant 0 : index
    %c0_3 = arith.constant 0 : index
    %c0_4 = arith.constant 0 : index
    %4 = vector.load %arg17[%c0_2, %c0_3, %c0_4] : memref<2x8x32xf32, #tpu.memory_space<vmem>>, vector<1x8x32xf32>
    %5 = vector.shape_cast %4 : vector<1x8x32xf32> to vector<8x32xf32>
    %c0_5 = arith.constant 0 : index
    %c0_6 = arith.constant 0 : index
    %c0_7 = arith.constant 0 : index
    %6 = vector.load %arg9[%c0_5, %c0_6, %c0_7] : memref<1x2x32xf32, #tpu.memory_space<vmem>>, vector<1x2x32xf32>
    %7 = vector.shape_cast %6 : vector<1x2x32xf32> to vector<2x32xf32>
    %c0_8 = arith.constant 0 : index
    %c0_9 = arith.constant 0 : index
    %c0_10 = arith.constant 0 : index
    %8 = vector.load %arg10[%c0_8, %c0_9, %c0_10] : memref<1x2x16xf32, #tpu.memory_space<vmem>>, vector<1x2x16xf32>
    %9 = vector.shape_cast %8 : vector<1x2x16xf32> to vector<2x16xf32>
    %c0_11 = arith.constant 0 : index
    %c0_12 = arith.constant 0 : index
    %c0_13 = arith.constant 0 : index
    %10 = vector.load %arg2[%c0_11, %c0_12, %c0_13] : memref<1x8x8xf32, #tpu.memory_space<vmem>>, vector<1x8x8xf32>
    %11 = vector.shape_cast %10 : vector<1x8x8xf32> to vector<8x8xf32>
    %cst = arith.constant dense<0.000000e+00> : vector<8x4xf32>
    %12 = tpu.matmul %11, %3, %cst {dimension_numbers = #tpu.dot_dimension_numbers<[1], [0], [0], [1], [0, 0, 1, 1], [], []>} : vector<8x8xf32>, vector<8x4xf32>, vector<8x4xf32> -> vector<8x4xf32>
    %c0_14 = arith.constant 0 : index
    %c0_15 = arith.constant 0 : index
    %c0_16 = arith.constant 0 : index
    %13 = vector.load %arg2[%c0_14, %c0_15, %c0_16] : memref<1x8x8xf32, #tpu.memory_space<vmem>>, vector<1x8x8xf32>
    %14 = vector.shape_cast %13 : vector<1x8x8xf32> to vector<8x8xf32>
    %cst_17 = arith.constant dense<0.000000e+00> : vector<8x32xf32>
    %15 = tpu.matmul %14, %5, %cst_17 {dimension_numbers = #tpu.dot_dimension_numbers<[1], [0], [0], [1], [0, 0, 1, 1], [], []>} : vector<8x8xf32>, vector<8x32xf32>, vector<8x32xf32> -> vector<8x32xf32>
    %16 = vector.extract_strided_slice %5 {offsets = [0, 0], sizes = [8, 16], strides = [1, 1]} : vector<8x32xf32> to vector<8x16xf32>
    %cst_18 = arith.constant 0.000000e+00 : f32
    %17 = vector.broadcast %cst_18 : f32 to vector<8x48xf32>
    %18 = vector.extract_strided_slice %3 {offsets = [0, 0], sizes = [8, 2], strides = [1, 1]} : vector<8x4xf32> to vector<8x2xf32>
    %c0_19 = arith.constant 0 : index
    %c0_20 = arith.constant 0 : index
    %c0_21 = arith.constant 0 : index
    %c0_22 = arith.constant 0 : index
    %19 = vector.load %arg6[%c0_19, %c0_20, %c0_21, %c0_22] : memref<1x4x2x48xf32, #tpu.memory_space<vmem>>, vector<1x1x2x48xf32>
    %20 = vector.shape_cast %19 : vector<1x1x2x48xf32> to vector<2x48xf32>
    %cst_23 = arith.constant dense<0.000000e+00> : vector<8x48xf32>
    %21 = tpu.matmul %18, %20, %cst_23 {dimension_numbers = #tpu.dot_dimension_numbers<[1], [0], [0], [1], [0, 0, 1, 1], [], []>} : vector<8x2xf32>, vector<2x48xf32>, vector<8x48xf32> -> vector<8x48xf32>
    %22 = arith.addf %17, %21 : vector<8x48xf32>
    %23 = vector.extract_strided_slice %12 {offsets = [0, 0], sizes = [8, 2], strides = [1, 1]} : vector<8x4xf32> to vector<8x2xf32>
    %c0_24 = arith.constant 0 : index
    %c1 = arith.constant 1 : index
    %c0_25 = arith.constant 0 : index
    %c0_26 = arith.constant 0 : index
    %24 = vector.load %arg6[%c0_24, %c1, %c0_25, %c0_26] : memref<1x4x2x48xf32, #tpu.memory_space<vmem>>, vector<1x1x2x48xf32>
    %25 = vector.shape_cast %24 : vector<1x1x2x48xf32> to vector<2x48xf32>
    %cst_27 = arith.constant dense<0.000000e+00> : vector<8x48xf32>
    %26 = tpu.matmul %23, %25, %cst_27 {dimension_numbers = #tpu.dot_dimension_numbers<[1], [0], [0], [1], [0, 0, 1, 1], [], []>} : vector<8x2xf32>, vector<2x48xf32>, vector<8x48xf32> -> vector<8x48xf32>
    %27 = arith.addf %22, %26 : vector<8x48xf32>
    %28 = vector.extract_strided_slice %27 {offsets = [0, 0], sizes = [8, 32], strides = [1, 1]} : vector<8x48xf32> to vector<8x32xf32>
    %29 = vector.extract_strided_slice %5 {offsets = [0, 0], sizes = [8, 16], strides = [1, 1]} : vector<8x32xf32> to vector<8x16xf32>
    %c0_28 = arith.constant 0 : index
    %c0_29 = arith.constant 0 : index
    %c0_30 = arith.constant 0 : index
    %c0_31 = arith.constant 0 : index
    %30 = vector.load %arg7[%c0_28, %c0_29, %c0_30, %c0_31] : memref<1x4x16x32xf32, #tpu.memory_space<vmem>>, vector<1x1x16x32xf32>
    %31 = vector.shape_cast %30 : vector<1x1x16x32xf32> to vector<16x32xf32>
    %cst_32 = arith.constant dense<0.000000e+00> : vector<8x32xf32>
    %32 = tpu.matmul %29, %31, %cst_32 {dimension_numbers = #tpu.dot_dimension_numbers<[1], [0], [0], [1], [0, 0, 1, 1], [], []>} : vector<8x16xf32>, vector<16x32xf32>, vector<8x32xf32> -> vector<8x32xf32>
    %33 = arith.addf %28, %32 : vector<8x32xf32>
    %34 = vector.extract_strided_slice %15 {offsets = [0, 0], sizes = [8, 16], strides = [1, 1]} : vector<8x32xf32> to vector<8x16xf32>
    %c0_33 = arith.constant 0 : index
    %c1_34 = arith.constant 1 : index
    %c0_35 = arith.constant 0 : index
    %c0_36 = arith.constant 0 : index
    %35 = vector.load %arg7[%c0_33, %c1_34, %c0_35, %c0_36] : memref<1x4x16x32xf32, #tpu.memory_space<vmem>>, vector<1x1x16x32xf32>
    %36 = vector.shape_cast %35 : vector<1x1x16x32xf32> to vector<16x32xf32>
    %cst_37 = arith.constant dense<0.000000e+00> : vector<8x32xf32>
    %37 = tpu.matmul %34, %36, %cst_37 {dimension_numbers = #tpu.dot_dimension_numbers<[1], [0], [0], [1], [0, 0, 1, 1], [], []>} : vector<8x16xf32>, vector<16x32xf32>, vector<8x32xf32> -> vector<8x32xf32>
    %38 = arith.addf %33, %37 : vector<8x32xf32>
    %39 = vector.extract_strided_slice %7 {offsets = [0, 0], sizes = [1, 32], strides = [1, 1]} : vector<2x32xf32> to vector<1x32xf32>
    %40 = vector.broadcast %39 : vector<1x32xf32> to vector<8x32xf32>
    %41 = arith.addf %38, %40 : vector<8x32xf32>
    %42 = arith.negf %41 : vector<8x32xf32>
    %43 = math.exp %42 : vector<8x32xf32>
    %cst_38 = arith.constant 1.000000e+00 : f32
    %44 = vector.broadcast %cst_38 : f32 to vector<8x32xf32>
    %45 = arith.addf %44, %43 : vector<8x32xf32>
    %46 = arith.divf %44, %45 : vector<8x32xf32>
    %47 = vector.extract_strided_slice %46 {offsets = [0, 0], sizes = [8, 16], strides = [1, 1]} : vector<8x32xf32> to vector<8x16xf32>
    %48 = vector.extract_strided_slice %46 {offsets = [0, 16], sizes = [8, 16], strides = [1, 1]} : vector<8x32xf32> to vector<8x16xf32>
    %c0_39 = arith.constant 0 : index
    %c0_40 = arith.constant 0 : index
    %49 = vector.load %arg20[%c0_39, %c0_40] : memref<8x32xf32, #tpu.memory_space<vmem>>, vector<8x16xf32>
    tpu.vector_store %arg20[%c0_39, %c0_40], %48 {strides = array<i32>} : memref<8x32xf32, #tpu.memory_space<vmem>>, vector<8x16xf32>,
    %50 = vector.extract_strided_slice %27 {offsets = [0, 32], sizes = [8, 16], strides = [1, 1]} : vector<8x48xf32> to vector<8x16xf32>
    %c0_41 = arith.constant 0 : index
    %c0_42 = arith.constant 0 : index
    %51 = vector.load %arg21[%c0_41, %c0_42] : memref<8x32xf32, #tpu.memory_space<vmem>>, vector<8x16xf32>
    tpu.vector_store %arg21[%c0_41, %c0_42], %50 {strides = array<i32>} : memref<8x32xf32, #tpu.memory_space<vmem>>, vector<8x16xf32>,
    %52 = arith.mulf %47, %16 : vector<8x16xf32>
    %c0_43 = arith.constant 0 : index
    %c0_44 = arith.constant 0 : index
    %53 = vector.load %arg19[%c0_43, %c0_44] : memref<8x32xf32, #tpu.memory_space<vmem>>, vector<8x16xf32>
    tpu.vector_store %arg19[%c0_43, %c0_44], %52 {strides = array<i32>} : memref<8x32xf32, #tpu.memory_space<vmem>>, vector<8x16xf32>,
    %54 = vector.extract_strided_slice %5 {offsets = [0, 16], sizes = [8, 16], strides = [1, 1]} : vector<8x32xf32> to vector<8x16xf32>
    %cst_45 = arith.constant 0.000000e+00 : f32
    %55 = vector.broadcast %cst_45 : f32 to vector<8x48xf32>
    %56 = vector.extract_strided_slice %3 {offsets = [0, 2], sizes = [8, 2], strides = [1, 1]} : vector<8x4xf32> to vector<8x2xf32>
    %c0_46 = arith.constant 0 : index
    %c2 = arith.constant 2 : index
    %c0_47 = arith.constant 0 : index
    %c0_48 = arith.constant 0 : index
    %57 = vector.load %arg6[%c0_46, %c2, %c0_47, %c0_48] : memref<1x4x2x48xf32, #tpu.memory_space<vmem>>, vector<1x1x2x48xf32>
    %58 = vector.shape_cast %57 : vector<1x1x2x48xf32> to vector<2x48xf32>
    %cst_49 = arith.constant dense<0.000000e+00> : vector<8x48xf32>
    %59 = tpu.matmul %56, %58, %cst_49 {dimension_numbers = #tpu.dot_dimension_numbers<[1], [0], [0], [1], [0, 0, 1, 1], [], []>} : vector<8x2xf32>, vector<2x48xf32>, vector<8x48xf32> -> vector<8x48xf32>
    %60 = arith.addf %55, %59 : vector<8x48xf32>
    %61 = vector.extract_strided_slice %12 {offsets = [0, 2], sizes = [8, 2], strides = [1, 1]} : vector<8x4xf32> to vector<8x2xf32>
    %c0_50 = arith.constant 0 : index
    %c3 = arith.constant 3 : index
    %c0_51 = arith.constant 0 : index
    %c0_52 = arith.constant 0 : index
    %62 = vector.load %arg6[%c0_50, %c3, %c0_51, %c0_52] : memref<1x4x2x48xf32, #tpu.memory_space<vmem>>, vector<1x1x2x48xf32>
    %63 = vector.shape_cast %62 : vector<1x1x2x48xf32> to vector<2x48xf32>
    %cst_53 = arith.constant dense<0.000000e+00> : vector<8x48xf32>
    %64 = tpu.matmul %61, %63, %cst_53 {dimension_numbers = #tpu.dot_dimension_numbers<[1], [0], [0], [1], [0, 0, 1, 1], [], []>} : vector<8x2xf32>, vector<2x48xf32>, vector<8x48xf32> -> vector<8x48xf32>
    %65 = arith.addf %60, %64 : vector<8x48xf32>
    %66 = vector.extract_strided_slice %65 {offsets = [0, 0], sizes = [8, 32], strides = [1, 1]} : vector<8x48xf32> to vector<8x32xf32>
    %67 = vector.extract_strided_slice %5 {offsets = [0, 16], sizes = [8, 16], strides = [1, 1]} : vector<8x32xf32> to vector<8x16xf32>
    %c0_54 = arith.constant 0 : index
    %c2_55 = arith.constant 2 : index
    %c0_56 = arith.constant 0 : index
    %c0_57 = arith.constant 0 : index
    %68 = vector.load %arg7[%c0_54, %c2_55, %c0_56, %c0_57] : memref<1x4x16x32xf32, #tpu.memory_space<vmem>>, vector<1x1x16x32xf32>
    %69 = vector.shape_cast %68 : vector<1x1x16x32xf32> to vector<16x32xf32>
    %cst_58 = arith.constant dense<0.000000e+00> : vector<8x32xf32>
    %70 = tpu.matmul %67, %69, %cst_58 {dimension_numbers = #tpu.dot_dimension_numbers<[1], [0], [0], [1], [0, 0, 1, 1], [], []>} : vector<8x16xf32>, vector<16x32xf32>, vector<8x32xf32> -> vector<8x32xf32>
    %71 = arith.addf %66, %70 : vector<8x32xf32>
    %72 = vector.extract_strided_slice %15 {offsets = [0, 16], sizes = [8, 16], strides = [1, 1]} : vector<8x32xf32> to vector<8x16xf32>
    %c0_59 = arith.constant 0 : index
    %c3_60 = arith.constant 3 : index
    %c0_61 = arith.constant 0 : index
    %c0_62 = arith.constant 0 : index
    %73 = vector.load %arg7[%c0_59, %c3_60, %c0_61, %c0_62] : memref<1x4x16x32xf32, #tpu.memory_space<vmem>>, vector<1x1x16x32xf32>
    %74 = vector.shape_cast %73 : vector<1x1x16x32xf32> to vector<16x32xf32>
    %cst_63 = arith.constant dense<0.000000e+00> : vector<8x32xf32>
    %75 = tpu.matmul %72, %74, %cst_63 {dimension_numbers = #tpu.dot_dimension_numbers<[1], [0], [0], [1], [0, 0, 1, 1], [], []>} : vector<8x16xf32>, vector<16x32xf32>, vector<8x32xf32> -> vector<8x32xf32>
    %76 = arith.addf %71, %75 : vector<8x32xf32>
    %77 = vector.extract_strided_slice %7 {offsets = [1, 0], sizes = [1, 32], strides = [1, 1]} : vector<2x32xf32> to vector<1x32xf32>
    %78 = vector.broadcast %77 : vector<1x32xf32> to vector<8x32xf32>
    %79 = arith.addf %76, %78 : vector<8x32xf32>
    %80 = arith.negf %79 : vector<8x32xf32>
    %81 = math.exp %80 : vector<8x32xf32>
    %cst_64 = arith.constant 1.000000e+00 : f32
    %82 = vector.broadcast %cst_64 : f32 to vector<8x32xf32>
    %83 = arith.addf %82, %81 : vector<8x32xf32>
    %84 = arith.divf %82, %83 : vector<8x32xf32>
    %85 = vector.extract_strided_slice %84 {offsets = [0, 0], sizes = [8, 16], strides = [1, 1]} : vector<8x32xf32> to vector<8x16xf32>
    %86 = vector.extract_strided_slice %84 {offsets = [0, 16], sizes = [8, 16], strides = [1, 1]} : vector<8x32xf32> to vector<8x16xf32>
    %c0_65 = arith.constant 0 : index
    %c16 = arith.constant 16 : index
    %87 = vector.load %arg20[%c0_65, %c16] : memref<8x32xf32, #tpu.memory_space<vmem>>, vector<8x16xf32>
    tpu.vector_store %arg20[%c0_65, %c16], %86 {strides = array<i32>} : memref<8x32xf32, #tpu.memory_space<vmem>>, vector<8x16xf32>,
    %88 = vector.extract_strided_slice %65 {offsets = [0, 32], sizes = [8, 16], strides = [1, 1]} : vector<8x48xf32> to vector<8x16xf32>
    %c0_66 = arith.constant 0 : index
    %c16_67 = arith.constant 16 : index
    %89 = vector.load %arg21[%c0_66, %c16_67] : memref<8x32xf32, #tpu.memory_space<vmem>>, vector<8x16xf32>
    tpu.vector_store %arg21[%c0_66, %c16_67], %88 {strides = array<i32>} : memref<8x32xf32, #tpu.memory_space<vmem>>, vector<8x16xf32>,
    %90 = arith.mulf %85, %54 : vector<8x16xf32>
    %c0_68 = arith.constant 0 : index
    %c16_69 = arith.constant 16 : index
    %91 = vector.load %arg19[%c0_68, %c16_69] : memref<8x32xf32, #tpu.memory_space<vmem>>, vector<8x16xf32>
    tpu.vector_store %arg19[%c0_68, %c16_69], %90 {strides = array<i32>} : memref<8x32xf32, #tpu.memory_space<vmem>>, vector<8x16xf32>,
    %c0_70 = arith.constant 0 : index
    %c0_71 = arith.constant 0 : index
    %92 = vector.load %arg19[%c0_70, %c0_71] : memref<8x32xf32, #tpu.memory_space<vmem>>, vector<8x32xf32>
    %c0_72 = arith.constant 0 : index
    %c0_73 = arith.constant 0 : index
    %c0_74 = arith.constant 0 : index
    %93 = vector.load %arg2[%c0_72, %c0_73, %c0_74] : memref<1x8x8xf32, #tpu.memory_space<vmem>>, vector<1x8x8xf32>
    %94 = vector.shape_cast %93 : vector<1x8x8xf32> to vector<8x8xf32>
    %cst_75 = arith.constant dense<0.000000e+00> : vector<8x32xf32>
    %95 = tpu.matmul %94, %92, %cst_75 {dimension_numbers = #tpu.dot_dimension_numbers<[1], [0], [0], [1], [0, 0, 1, 1], [], []>} : vector<8x8xf32>, vector<8x32xf32>, vector<8x32xf32> -> vector<8x32xf32>
    %96 = vector.extract_strided_slice %5 {offsets = [0, 0], sizes = [8, 16], strides = [1, 1]} : vector<8x32xf32> to vector<8x16xf32>
    %c0_76 = arith.constant 0 : index
    %c0_77 = arith.constant 0 : index
    %97 = vector.load %arg21[%c0_76, %c0_77] : memref<8x32xf32, #tpu.memory_space<vmem>>, vector<8x16xf32>
    %98 = vector.extract_strided_slice %92 {offsets = [0, 0], sizes = [8, 16], strides = [1, 1]} : vector<8x32xf32> to vector<8x16xf32>
    %c0_78 = arith.constant 0 : index
    %c0_79 = arith.constant 0 : index
    %c0_80 = arith.constant 0 : index
    %c0_81 = arith.constant 0 : index
    %99 = vector.load %arg8[%c0_78, %c0_79, %c0_80, %c0_81] : memref<1x4x16x16xf32, #tpu.memory_space<vmem>>, vector<1x1x16x16xf32>
    %100 = vector.shape_cast %99 : vector<1x1x16x16xf32> to vector<16x16xf32>
    %cst_82 = arith.constant dense<0.000000e+00> : vector<8x16xf32>
    %101 = tpu.matmul %98, %100, %cst_82 {dimension_numbers = #tpu.dot_dimension_numbers<[1], [0], [0], [1], [0, 0, 1, 1], [], []>} : vector<8x16xf32>, vector<16x16xf32>, vector<8x16xf32> -> vector<8x16xf32>
    %102 = arith.addf %97, %101 : vector<8x16xf32>
    %103 = vector.extract_strided_slice %95 {offsets = [0, 0], sizes = [8, 16], strides = [1, 1]} : vector<8x32xf32> to vector<8x16xf32>
    %c0_83 = arith.constant 0 : index
    %c1_84 = arith.constant 1 : index
    %c0_85 = arith.constant 0 : index
    %c0_86 = arith.constant 0 : index
    %104 = vector.load %arg8[%c0_83, %c1_84, %c0_85, %c0_86] : memref<1x4x16x16xf32, #tpu.memory_space<vmem>>, vector<1x1x16x16xf32>
    %105 = vector.shape_cast %104 : vector<1x1x16x16xf32> to vector<16x16xf32>
    %cst_87 = arith.constant dense<0.000000e+00> : vector<8x16xf32>
    %106 = tpu.matmul %103, %105, %cst_87 {dimension_numbers = #tpu.dot_dimension_numbers<[1], [0], [0], [1], [0, 0, 1, 1], [], []>} : vector<8x16xf32>, vector<16x16xf32>, vector<8x16xf32> -> vector<8x16xf32>
    %107 = arith.addf %102, %106 : vector<8x16xf32>
    %108 = vector.extract_strided_slice %9 {offsets = [0, 0], sizes = [1, 16], strides = [1, 1]} : vector<2x16xf32> to vector<1x16xf32>
    %109 = vector.broadcast %108 : vector<1x16xf32> to vector<8x16xf32>
    %110 = arith.addf %107, %109 : vector<8x16xf32>
    %111 = math.tanh %110 : vector<8x16xf32>
    %c0_88 = arith.constant 0 : index
    %c0_89 = arith.constant 0 : index
    %112 = vector.load %arg20[%c0_88, %c0_89] : memref<8x32xf32, #tpu.memory_space<vmem>>, vector<8x16xf32>
    %113 = arith.mulf %112, %96 : vector<8x16xf32>
    %cst_90 = arith.constant 1.000000e+00 : f32
    %114 = vector.broadcast %cst_90 : f32 to vector<8x16xf32>
    %115 = arith.subf %114, %112 : vector<8x16xf32>
    %116 = arith.mulf %115, %111 : vector<8x16xf32>
    %117 = arith.addf %113, %116 : vector<8x16xf32>
    %c0_91 = arith.constant 0 : index
    %c0_92 = arith.constant 0 : index
    %c0_93 = arith.constant 0 : index
    %118 = vector.load %arg17[%c0_91, %c0_92, %c0_93] : memref<2x8x32xf32, #tpu.memory_space<vmem>>, vector<1x8x16xf32>
    %119 = vector.shape_cast %118 : vector<1x8x16xf32> to vector<8x16xf32>
    %120 = vector.shape_cast %117 : vector<8x16xf32> to vector<1x8x16xf32>
    tpu.vector_store %arg17[%c0_91, %c0_92, %c0_93], %120 {strides = array<i32>} : memref<2x8x32xf32, #tpu.memory_space<vmem>>, vector<1x8x16xf32>,
    %121 = vector.extract_strided_slice %5 {offsets = [0, 16], sizes = [8, 16], strides = [1, 1]} : vector<8x32xf32> to vector<8x16xf32>
    %c0_94 = arith.constant 0 : index
    %c16_95 = arith.constant 16 : index
    %122 = vector.load %arg21[%c0_94, %c16_95] : memref<8x32xf32, #tpu.memory_space<vmem>>, vector<8x16xf32>
    %123 = vector.extract_strided_slice %92 {offsets = [0, 16], sizes = [8, 16], strides = [1, 1]} : vector<8x32xf32> to vector<8x16xf32>
    %c0_96 = arith.constant 0 : index
    %c2_97 = arith.constant 2 : index
    %c0_98 = arith.constant 0 : index
    %c0_99 = arith.constant 0 : index
    %124 = vector.load %arg8[%c0_96, %c2_97, %c0_98, %c0_99] : memref<1x4x16x16xf32, #tpu.memory_space<vmem>>, vector<1x1x16x16xf32>
    %125 = vector.shape_cast %124 : vector<1x1x16x16xf32> to vector<16x16xf32>
    %cst_100 = arith.constant dense<0.000000e+00> : vector<8x16xf32>
    %126 = tpu.matmul %123, %125, %cst_100 {dimension_numbers = #tpu.dot_dimension_numbers<[1], [0], [0], [1], [0, 0, 1, 1], [], []>} : vector<8x16xf32>, vector<16x16xf32>, vector<8x16xf32> -> vector<8x16xf32>
    %127 = arith.addf %122, %126 : vector<8x16xf32>
    %128 = vector.extract_strided_slice %95 {offsets = [0, 16], sizes = [8, 16], strides = [1, 1]} : vector<8x32xf32> to vector<8x16xf32>
    %c0_101 = arith.constant 0 : index
    %c3_102 = arith.constant 3 : index
    %c0_103 = arith.constant 0 : index
    %c0_104 = arith.constant 0 : index
    %129 = vector.load %arg8[%c0_101, %c3_102, %c0_103, %c0_104] : memref<1x4x16x16xf32, #tpu.memory_space<vmem>>, vector<1x1x16x16xf32>
    %130 = vector.shape_cast %129 : vector<1x1x16x16xf32> to vector<16x16xf32>
    %cst_105 = arith.constant dense<0.000000e+00> : vector<8x16xf32>
    %131 = tpu.matmul %128, %130, %cst_105 {dimension_numbers = #tpu.dot_dimension_numbers<[1], [0], [0], [1], [0, 0, 1, 1], [], []>} : vector<8x16xf32>, vector<16x16xf32>, vector<8x16xf32> -> vector<8x16xf32>
    %132 = arith.addf %127, %131 : vector<8x16xf32>
    %133 = vector.extract_strided_slice %9 {offsets = [1, 0], sizes = [1, 16], strides = [1, 1]} : vector<2x16xf32> to vector<1x16xf32>
    %134 = vector.broadcast %133 : vector<1x16xf32> to vector<8x16xf32>
    %135 = arith.addf %132, %134 : vector<8x16xf32>
    %136 = math.tanh %135 : vector<8x16xf32>
    %c0_106 = arith.constant 0 : index
    %c16_107 = arith.constant 16 : index
    %137 = vector.load %arg20[%c0_106, %c16_107] : memref<8x32xf32, #tpu.memory_space<vmem>>, vector<8x16xf32>
    %138 = arith.mulf %137, %121 : vector<8x16xf32>
    %cst_108 = arith.constant 1.000000e+00 : f32
    %139 = vector.broadcast %cst_108 : f32 to vector<8x16xf32>
    %140 = arith.subf %139, %137 : vector<8x16xf32>
    %141 = arith.mulf %140, %136 : vector<8x16xf32>
    %142 = arith.addf %138, %141 : vector<8x16xf32>
    %c0_109 = arith.constant 0 : index
    %c0_110 = arith.constant 0 : index
    %c16_111 = arith.constant 16 : index
    %143 = vector.load %arg17[%c0_109, %c0_110, %c16_111] : memref<2x8x32xf32, #tpu.memory_space<vmem>>, vector<1x8x16xf32>
    %144 = vector.shape_cast %143 : vector<1x8x16xf32> to vector<8x16xf32>
    %145 = vector.shape_cast %142 : vector<8x16xf32> to vector<1x8x16xf32>
    tpu.vector_store %arg17[%c0_109, %c0_110, %c16_111], %145 {strides = array<i32>} : memref<2x8x32xf32, #tpu.memory_space<vmem>>, vector<1x8x16xf32>,
    %c0_112 = arith.constant 0 : index
    %c0_113 = arith.constant 0 : index
    %c0_114 = arith.constant 0 : index
    %146 = vector.load %arg17[%c0_112, %c0_113, %c0_114] : memref<2x8x32xf32, #tpu.memory_space<vmem>>, vector<1x8x32xf32>
    %147 = vector.shape_cast %146 : vector<1x8x32xf32> to vector<8x32xf32>
    %c1_115 = arith.constant 1 : index
    %c0_116 = arith.constant 0 : index
    %c0_117 = arith.constant 0 : index
    %148 = vector.load %arg17[%c1_115, %c0_116, %c0_117] : memref<2x8x32xf32, #tpu.memory_space<vmem>>, vector<1x8x32xf32>
    %149 = vector.shape_cast %148 : vector<1x8x32xf32> to vector<8x32xf32>
    %c0_118 = arith.constant 0 : index
    %c0_119 = arith.constant 0 : index
    %c0_120 = arith.constant 0 : index
    %150 = vector.load %arg14[%c0_118, %c0_119, %c0_120] : memref<1x2x32xf32, #tpu.memory_space<vmem>>, vector<1x2x32xf32>
    %151 = vector.shape_cast %150 : vector<1x2x32xf32> to vector<2x32xf32>
    %c0_121 = arith.constant 0 : index
    %c0_122 = arith.constant 0 : index
    %c0_123 = arith.constant 0 : index
    %152 = vector.load %arg15[%c0_121, %c0_122, %c0_123] : memref<1x2x16xf32, #tpu.memory_space<vmem>>, vector<1x2x16xf32>
    %153 = vector.shape_cast %152 : vector<1x2x16xf32> to vector<2x16xf32>
    %c0_124 = arith.constant 0 : index
    %c0_125 = arith.constant 0 : index
    %c0_126 = arith.constant 0 : index
    %154 = vector.load %arg2[%c0_124, %c0_125, %c0_126] : memref<1x8x8xf32, #tpu.memory_space<vmem>>, vector<1x8x8xf32>
    %155 = vector.shape_cast %154 : vector<1x8x8xf32> to vector<8x8xf32>
    %cst_127 = arith.constant dense<0.000000e+00> : vector<8x32xf32>
    %156 = tpu.matmul %155, %147, %cst_127 {dimension_numbers = #tpu.dot_dimension_numbers<[1], [0], [0], [1], [0, 0, 1, 1], [], []>} : vector<8x8xf32>, vector<8x32xf32>, vector<8x32xf32> -> vector<8x32xf32>
    %c0_128 = arith.constant 0 : index
    %c0_129 = arith.constant 0 : index
    %c0_130 = arith.constant 0 : index
    %157 = vector.load %arg2[%c0_128, %c0_129, %c0_130] : memref<1x8x8xf32, #tpu.memory_space<vmem>>, vector<1x8x8xf32>
    %158 = vector.shape_cast %157 : vector<1x8x8xf32> to vector<8x8xf32>
    %cst_131 = arith.constant dense<0.000000e+00> : vector<8x32xf32>
    %159 = tpu.matmul %158, %149, %cst_131 {dimension_numbers = #tpu.dot_dimension_numbers<[1], [0], [0], [1], [0, 0, 1, 1], [], []>} : vector<8x8xf32>, vector<8x32xf32>, vector<8x32xf32> -> vector<8x32xf32>
    %160 = vector.extract_strided_slice %149 {offsets = [0, 0], sizes = [8, 16], strides = [1, 1]} : vector<8x32xf32> to vector<8x16xf32>
    %cst_132 = arith.constant 0.000000e+00 : f32
    %161 = vector.broadcast %cst_132 : f32 to vector<8x48xf32>
    %162 = vector.extract_strided_slice %147 {offsets = [0, 0], sizes = [8, 16], strides = [1, 1]} : vector<8x32xf32> to vector<8x16xf32>
    %c0_133 = arith.constant 0 : index
    %c0_134 = arith.constant 0 : index
    %c0_135 = arith.constant 0 : index
    %c0_136 = arith.constant 0 : index
    %163 = vector.load %arg11[%c0_133, %c0_134, %c0_135, %c0_136] : memref<1x4x16x48xf32, #tpu.memory_space<vmem>>, vector<1x1x16x48xf32>
    %164 = vector.shape_cast %163 : vector<1x1x16x48xf32> to vector<16x48xf32>
    %cst_137 = arith.constant dense<0.000000e+00> : vector<8x48xf32>
    %165 = tpu.matmul %162, %164, %cst_137 {dimension_numbers = #tpu.dot_dimension_numbers<[1], [0], [0], [1], [0, 0, 1, 1], [], []>} : vector<8x16xf32>, vector<16x48xf32>, vector<8x48xf32> -> vector<8x48xf32>
    %166 = arith.addf %161, %165 : vector<8x48xf32>
    %167 = vector.extract_strided_slice %156 {offsets = [0, 0], sizes = [8, 16], strides = [1, 1]} : vector<8x32xf32> to vector<8x16xf32>
    %c0_138 = arith.constant 0 : index
    %c1_139 = arith.constant 1 : index
    %c0_140 = arith.constant 0 : index
    %c0_141 = arith.constant 0 : index
    %168 = vector.load %arg11[%c0_138, %c1_139, %c0_140, %c0_141] : memref<1x4x16x48xf32, #tpu.memory_space<vmem>>, vector<1x1x16x48xf32>
    %169 = vector.shape_cast %168 : vector<1x1x16x48xf32> to vector<16x48xf32>
    %cst_142 = arith.constant dense<0.000000e+00> : vector<8x48xf32>
    %170 = tpu.matmul %167, %169, %cst_142 {dimension_numbers = #tpu.dot_dimension_numbers<[1], [0], [0], [1], [0, 0, 1, 1], [], []>} : vector<8x16xf32>, vector<16x48xf32>, vector<8x48xf32> -> vector<8x48xf32>
    %171 = arith.addf %166, %170 : vector<8x48xf32>
    %172 = vector.extract_strided_slice %171 {offsets = [0, 0], sizes = [8, 32], strides = [1, 1]} : vector<8x48xf32> to vector<8x32xf32>
    %173 = vector.extract_strided_slice %149 {offsets = [0, 0], sizes = [8, 16], strides = [1, 1]} : vector<8x32xf32> to vector<8x16xf32>
    %c0_143 = arith.constant 0 : index
    %c0_144 = arith.constant 0 : index
    %c0_145 = arith.constant 0 : index
    %c0_146 = arith.constant 0 : index
    %174 = vector.load %arg12[%c0_143, %c0_144, %c0_145, %c0_146] : memref<1x4x16x32xf32, #tpu.memory_space<vmem>>, vector<1x1x16x32xf32>
    %175 = vector.shape_cast %174 : vector<1x1x16x32xf32> to vector<16x32xf32>
    %cst_147 = arith.constant dense<0.000000e+00> : vector<8x32xf32>
    %176 = tpu.matmul %173, %175, %cst_147 {dimension_numbers = #tpu.dot_dimension_numbers<[1], [0], [0], [1], [0, 0, 1, 1], [], []>} : vector<8x16xf32>, vector<16x32xf32>, vector<8x32xf32> -> vector<8x32xf32>
    %177 = arith.addf %172, %176 : vector<8x32xf32>
    %178 = vector.extract_strided_slice %159 {offsets = [0, 0], sizes = [8, 16], strides = [1, 1]} : vector<8x32xf32> to vector<8x16xf32>
    %c0_148 = arith.constant 0 : index
    %c1_149 = arith.constant 1 : index
    %c0_150 = arith.constant 0 : index
    %c0_151 = arith.constant 0 : index
    %179 = vector.load %arg12[%c0_148, %c1_149, %c0_150, %c0_151] : memref<1x4x16x32xf32, #tpu.memory_space<vmem>>, vector<1x1x16x32xf32>
    %180 = vector.shape_cast %179 : vector<1x1x16x32xf32> to vector<16x32xf32>
    %cst_152 = arith.constant dense<0.000000e+00> : vector<8x32xf32>
    %181 = tpu.matmul %178, %180, %cst_152 {dimension_numbers = #tpu.dot_dimension_numbers<[1], [0], [0], [1], [0, 0, 1, 1], [], []>} : vector<8x16xf32>, vector<16x32xf32>, vector<8x32xf32> -> vector<8x32xf32>
    %182 = arith.addf %177, %181 : vector<8x32xf32>
    %183 = vector.extract_strided_slice %151 {offsets = [0, 0], sizes = [1, 32], strides = [1, 1]} : vector<2x32xf32> to vector<1x32xf32>
    %184 = vector.broadcast %183 : vector<1x32xf32> to vector<8x32xf32>
    %185 = arith.addf %182, %184 : vector<8x32xf32>
    %186 = arith.negf %185 : vector<8x32xf32>
    %187 = math.exp %186 : vector<8x32xf32>
    %cst_153 = arith.constant 1.000000e+00 : f32
    %188 = vector.broadcast %cst_153 : f32 to vector<8x32xf32>
    %189 = arith.addf %188, %187 : vector<8x32xf32>
    %190 = arith.divf %188, %189 : vector<8x32xf32>
    %191 = vector.extract_strided_slice %190 {offsets = [0, 0], sizes = [8, 16], strides = [1, 1]} : vector<8x32xf32> to vector<8x16xf32>
    %192 = vector.extract_strided_slice %190 {offsets = [0, 16], sizes = [8, 16], strides = [1, 1]} : vector<8x32xf32> to vector<8x16xf32>
    %c0_154 = arith.constant 0 : index
    %c0_155 = arith.constant 0 : index
    %193 = vector.load %arg20[%c0_154, %c0_155] : memref<8x32xf32, #tpu.memory_space<vmem>>, vector<8x16xf32>
    tpu.vector_store %arg20[%c0_154, %c0_155], %192 {strides = array<i32>} : memref<8x32xf32, #tpu.memory_space<vmem>>, vector<8x16xf32>,
    %194 = vector.extract_strided_slice %171 {offsets = [0, 32], sizes = [8, 16], strides = [1, 1]} : vector<8x48xf32> to vector<8x16xf32>
    %c0_156 = arith.constant 0 : index
    %c0_157 = arith.constant 0 : index
    %195 = vector.load %arg21[%c0_156, %c0_157] : memref<8x32xf32, #tpu.memory_space<vmem>>, vector<8x16xf32>
    tpu.vector_store %arg21[%c0_156, %c0_157], %194 {strides = array<i32>} : memref<8x32xf32, #tpu.memory_space<vmem>>, vector<8x16xf32>,
    %196 = arith.mulf %191, %160 : vector<8x16xf32>
    %c0_158 = arith.constant 0 : index
    %c0_159 = arith.constant 0 : index
    %197 = vector.load %arg19[%c0_158, %c0_159] : memref<8x32xf32, #tpu.memory_space<vmem>>, vector<8x16xf32>
    tpu.vector_store %arg19[%c0_158, %c0_159], %196 {strides = array<i32>} : memref<8x32xf32, #tpu.memory_space<vmem>>, vector<8x16xf32>,
    %198 = vector.extract_strided_slice %149 {offsets = [0, 16], sizes = [8, 16], strides = [1, 1]} : vector<8x32xf32> to vector<8x16xf32>
    %cst_160 = arith.constant 0.000000e+00 : f32
    %199 = vector.broadcast %cst_160 : f32 to vector<8x48xf32>
    %200 = vector.extract_strided_slice %147 {offsets = [0, 16], sizes = [8, 16], strides = [1, 1]} : vector<8x32xf32> to vector<8x16xf32>
    %c0_161 = arith.constant 0 : index
    %c2_162 = arith.constant 2 : index
    %c0_163 = arith.constant 0 : index
    %c0_164 = arith.constant 0 : index
    %201 = vector.load %arg11[%c0_161, %c2_162, %c0_163, %c0_164] : memref<1x4x16x48xf32, #tpu.memory_space<vmem>>, vector<1x1x16x48xf32>
    %202 = vector.shape_cast %201 : vector<1x1x16x48xf32> to vector<16x48xf32>
    %cst_165 = arith.constant dense<0.000000e+00> : vector<8x48xf32>
    %203 = tpu.matmul %200, %202, %cst_165 {dimension_numbers = #tpu.dot_dimension_numbers<[1], [0], [0], [1], [0, 0, 1, 1], [], []>} : vector<8x16xf32>, vector<16x48xf32>, vector<8x48xf32> -> vector<8x48xf32>
    %204 = arith.addf %199, %203 : vector<8x48xf32>
    %205 = vector.extract_strided_slice %156 {offsets = [0, 16], sizes = [8, 16], strides = [1, 1]} : vector<8x32xf32> to vector<8x16xf32>
    %c0_166 = arith.constant 0 : index
    %c3_167 = arith.constant 3 : index
    %c0_168 = arith.constant 0 : index
    %c0_169 = arith.constant 0 : index
    %206 = vector.load %arg11[%c0_166, %c3_167, %c0_168, %c0_169] : memref<1x4x16x48xf32, #tpu.memory_space<vmem>>, vector<1x1x16x48xf32>
    %207 = vector.shape_cast %206 : vector<1x1x16x48xf32> to vector<16x48xf32>
    %cst_170 = arith.constant dense<0.000000e+00> : vector<8x48xf32>
    %208 = tpu.matmul %205, %207, %cst_170 {dimension_numbers = #tpu.dot_dimension_numbers<[1], [0], [0], [1], [0, 0, 1, 1], [], []>} : vector<8x16xf32>, vector<16x48xf32>, vector<8x48xf32> -> vector<8x48xf32>
    %209 = arith.addf %204, %208 : vector<8x48xf32>
    %210 = vector.extract_strided_slice %209 {offsets = [0, 0], sizes = [8, 32], strides = [1, 1]} : vector<8x48xf32> to vector<8x32xf32>
    %211 = vector.extract_strided_slice %149 {offsets = [0, 16], sizes = [8, 16], strides = [1, 1]} : vector<8x32xf32> to vector<8x16xf32>
    %c0_171 = arith.constant 0 : index
    %c2_172 = arith.constant 2 : index
    %c0_173 = arith.constant 0 : index
    %c0_174 = arith.constant 0 : index
    %212 = vector.load %arg12[%c0_171, %c2_172, %c0_173, %c0_174] : memref<1x4x16x32xf32, #tpu.memory_space<vmem>>, vector<1x1x16x32xf32>
    %213 = vector.shape_cast %212 : vector<1x1x16x32xf32> to vector<16x32xf32>
    %cst_175 = arith.constant dense<0.000000e+00> : vector<8x32xf32>
    %214 = tpu.matmul %211, %213, %cst_175 {dimension_numbers = #tpu.dot_dimension_numbers<[1], [0], [0], [1], [0, 0, 1, 1], [], []>} : vector<8x16xf32>, vector<16x32xf32>, vector<8x32xf32> -> vector<8x32xf32>
    %215 = arith.addf %210, %214 : vector<8x32xf32>
    %216 = vector.extract_strided_slice %159 {offsets = [0, 16], sizes = [8, 16], strides = [1, 1]} : vector<8x32xf32> to vector<8x16xf32>
    %c0_176 = arith.constant 0 : index
    %c3_177 = arith.constant 3 : index
    %c0_178 = arith.constant 0 : index
    %c0_179 = arith.constant 0 : index
    %217 = vector.load %arg12[%c0_176, %c3_177, %c0_178, %c0_179] : memref<1x4x16x32xf32, #tpu.memory_space<vmem>>, vector<1x1x16x32xf32>
    %218 = vector.shape_cast %217 : vector<1x1x16x32xf32> to vector<16x32xf32>
    %cst_180 = arith.constant dense<0.000000e+00> : vector<8x32xf32>
    %219 = tpu.matmul %216, %218, %cst_180 {dimension_numbers = #tpu.dot_dimension_numbers<[1], [0], [0], [1], [0, 0, 1, 1], [], []>} : vector<8x16xf32>, vector<16x32xf32>, vector<8x32xf32> -> vector<8x32xf32>
    %220 = arith.addf %215, %219 : vector<8x32xf32>
    %221 = vector.extract_strided_slice %151 {offsets = [1, 0], sizes = [1, 32], strides = [1, 1]} : vector<2x32xf32> to vector<1x32xf32>
    %222 = vector.broadcast %221 : vector<1x32xf32> to vector<8x32xf32>
    %223 = arith.addf %220, %222 : vector<8x32xf32>
    %224 = arith.negf %223 : vector<8x32xf32>
    %225 = math.exp %224 : vector<8x32xf32>
    %cst_181 = arith.constant 1.000000e+00 : f32
    %226 = vector.broadcast %cst_181 : f32 to vector<8x32xf32>
    %227 = arith.addf %226, %225 : vector<8x32xf32>
    %228 = arith.divf %226, %227 : vector<8x32xf32>
    %229 = vector.extract_strided_slice %228 {offsets = [0, 0], sizes = [8, 16], strides = [1, 1]} : vector<8x32xf32> to vector<8x16xf32>
    %230 = vector.extract_strided_slice %228 {offsets = [0, 16], sizes = [8, 16], strides = [1, 1]} : vector<8x32xf32> to vector<8x16xf32>
    %c0_182 = arith.constant 0 : index
    %c16_183 = arith.constant 16 : index
    %231 = vector.load %arg20[%c0_182, %c16_183] : memref<8x32xf32, #tpu.memory_space<vmem>>, vector<8x16xf32>
    tpu.vector_store %arg20[%c0_182, %c16_183], %230 {strides = array<i32>} : memref<8x32xf32, #tpu.memory_space<vmem>>, vector<8x16xf32>,
    %232 = vector.extract_strided_slice %209 {offsets = [0, 32], sizes = [8, 16], strides = [1, 1]} : vector<8x48xf32> to vector<8x16xf32>
    %c0_184 = arith.constant 0 : index
    %c16_185 = arith.constant 16 : index
    %233 = vector.load %arg21[%c0_184, %c16_185] : memref<8x32xf32, #tpu.memory_space<vmem>>, vector<8x16xf32>
    tpu.vector_store %arg21[%c0_184, %c16_185], %232 {strides = array<i32>} : memref<8x32xf32, #tpu.memory_space<vmem>>, vector<8x16xf32>,
    %234 = arith.mulf %229, %198 : vector<8x16xf32>
    %c0_186 = arith.constant 0 : index
    %c16_187 = arith.constant 16 : index
    %235 = vector.load %arg19[%c0_186, %c16_187] : memref<8x32xf32, #tpu.memory_space<vmem>>, vector<8x16xf32>
    tpu.vector_store %arg19[%c0_186, %c16_187], %234 {strides = array<i32>} : memref<8x32xf32, #tpu.memory_space<vmem>>, vector<8x16xf32>,
    %c0_188 = arith.constant 0 : index
    %c0_189 = arith.constant 0 : index
    %236 = vector.load %arg19[%c0_188, %c0_189] : memref<8x32xf32, #tpu.memory_space<vmem>>, vector<8x32xf32>
    %c0_190 = arith.constant 0 : index
    %c0_191 = arith.constant 0 : index
    %c0_192 = arith.constant 0 : index
    %237 = vector.load %arg2[%c0_190, %c0_191, %c0_192] : memref<1x8x8xf32, #tpu.memory_space<vmem>>, vector<1x8x8xf32>
    %238 = vector.shape_cast %237 : vector<1x8x8xf32> to vector<8x8xf32>
    %cst_193 = arith.constant dense<0.000000e+00> : vector<8x32xf32>
    %239 = tpu.matmul %238, %236, %cst_193 {dimension_numbers = #tpu.dot_dimension_numbers<[1], [0], [0], [1], [0, 0, 1, 1], [], []>} : vector<8x8xf32>, vector<8x32xf32>, vector<8x32xf32> -> vector<8x32xf32>
    %240 = vector.extract_strided_slice %149 {offsets = [0, 0], sizes = [8, 16], strides = [1, 1]} : vector<8x32xf32> to vector<8x16xf32>
    %c0_194 = arith.constant 0 : index
    %c0_195 = arith.constant 0 : index
    %241 = vector.load %arg21[%c0_194, %c0_195] : memref<8x32xf32, #tpu.memory_space<vmem>>, vector<8x16xf32>
    %242 = vector.extract_strided_slice %236 {offsets = [0, 0], sizes = [8, 16], strides = [1, 1]} : vector<8x32xf32> to vector<8x16xf32>
    %c0_196 = arith.constant 0 : index
    %c0_197 = arith.constant 0 : index
    %c0_198 = arith.constant 0 : index
    %c0_199 = arith.constant 0 : index
    %243 = vector.load %arg13[%c0_196, %c0_197, %c0_198, %c0_199] : memref<1x4x16x16xf32, #tpu.memory_space<vmem>>, vector<1x1x16x16xf32>
    %244 = vector.shape_cast %243 : vector<1x1x16x16xf32> to vector<16x16xf32>
    %cst_200 = arith.constant dense<0.000000e+00> : vector<8x16xf32>
    %245 = tpu.matmul %242, %244, %cst_200 {dimension_numbers = #tpu.dot_dimension_numbers<[1], [0], [0], [1], [0, 0, 1, 1], [], []>} : vector<8x16xf32>, vector<16x16xf32>, vector<8x16xf32> -> vector<8x16xf32>
    %246 = arith.addf %241, %245 : vector<8x16xf32>
    %247 = vector.extract_strided_slice %239 {offsets = [0, 0], sizes = [8, 16], strides = [1, 1]} : vector<8x32xf32> to vector<8x16xf32>
    %c0_201 = arith.constant 0 : index
    %c1_202 = arith.constant 1 : index
    %c0_203 = arith.constant 0 : index
    %c0_204 = arith.constant 0 : index
    %248 = vector.load %arg13[%c0_201, %c1_202, %c0_203, %c0_204] : memref<1x4x16x16xf32, #tpu.memory_space<vmem>>, vector<1x1x16x16xf32>
    %249 = vector.shape_cast %248 : vector<1x1x16x16xf32> to vector<16x16xf32>
    %cst_205 = arith.constant dense<0.000000e+00> : vector<8x16xf32>
    %250 = tpu.matmul %247, %249, %cst_205 {dimension_numbers = #tpu.dot_dimension_numbers<[1], [0], [0], [1], [0, 0, 1, 1], [], []>} : vector<8x16xf32>, vector<16x16xf32>, vector<8x16xf32> -> vector<8x16xf32>
    %251 = arith.addf %246, %250 : vector<8x16xf32>
    %252 = vector.extract_strided_slice %153 {offsets = [0, 0], sizes = [1, 16], strides = [1, 1]} : vector<2x16xf32> to vector<1x16xf32>
    %253 = vector.broadcast %252 : vector<1x16xf32> to vector<8x16xf32>
    %254 = arith.addf %251, %253 : vector<8x16xf32>
    %255 = math.tanh %254 : vector<8x16xf32>
    %c0_206 = arith.constant 0 : index
    %c0_207 = arith.constant 0 : index
    %256 = vector.load %arg20[%c0_206, %c0_207] : memref<8x32xf32, #tpu.memory_space<vmem>>, vector<8x16xf32>
    %257 = arith.mulf %256, %240 : vector<8x16xf32>
    %cst_208 = arith.constant 1.000000e+00 : f32
    %258 = vector.broadcast %cst_208 : f32 to vector<8x16xf32>
    %259 = arith.subf %258, %256 : vector<8x16xf32>
    %260 = arith.mulf %259, %255 : vector<8x16xf32>
    %261 = arith.addf %257, %260 : vector<8x16xf32>
    %c1_209 = arith.constant 1 : index
    %c0_210 = arith.constant 0 : index
    %c0_211 = arith.constant 0 : index
    %262 = vector.load %arg17[%c1_209, %c0_210, %c0_211] : memref<2x8x32xf32, #tpu.memory_space<vmem>>, vector<1x8x16xf32>
    %263 = vector.shape_cast %262 : vector<1x8x16xf32> to vector<8x16xf32>
    %264 = vector.shape_cast %261 : vector<8x16xf32> to vector<1x8x16xf32>
    tpu.vector_store %arg17[%c1_209, %c0_210, %c0_211], %264 {strides = array<i32>} : memref<2x8x32xf32, #tpu.memory_space<vmem>>, vector<1x8x16xf32>,
    %265 = vector.extract_strided_slice %149 {offsets = [0, 16], sizes = [8, 16], strides = [1, 1]} : vector<8x32xf32> to vector<8x16xf32>
    %c0_212 = arith.constant 0 : index
    %c16_213 = arith.constant 16 : index
    %266 = vector.load %arg21[%c0_212, %c16_213] : memref<8x32xf32, #tpu.memory_space<vmem>>, vector<8x16xf32>
    %267 = vector.extract_strided_slice %236 {offsets = [0, 16], sizes = [8, 16], strides = [1, 1]} : vector<8x32xf32> to vector<8x16xf32>
    %c0_214 = arith.constant 0 : index
    %c2_215 = arith.constant 2 : index
    %c0_216 = arith.constant 0 : index
    %c0_217 = arith.constant 0 : index
    %268 = vector.load %arg13[%c0_214, %c2_215, %c0_216, %c0_217] : memref<1x4x16x16xf32, #tpu.memory_space<vmem>>, vector<1x1x16x16xf32>
    %269 = vector.shape_cast %268 : vector<1x1x16x16xf32> to vector<16x16xf32>
    %cst_218 = arith.constant dense<0.000000e+00> : vector<8x16xf32>
    %270 = tpu.matmul %267, %269, %cst_218 {dimension_numbers = #tpu.dot_dimension_numbers<[1], [0], [0], [1], [0, 0, 1, 1], [], []>} : vector<8x16xf32>, vector<16x16xf32>, vector<8x16xf32> -> vector<8x16xf32>
    %271 = arith.addf %266, %270 : vector<8x16xf32>
    %272 = vector.extract_strided_slice %239 {offsets = [0, 16], sizes = [8, 16], strides = [1, 1]} : vector<8x32xf32> to vector<8x16xf32>
    %c0_219 = arith.constant 0 : index
    %c3_220 = arith.constant 3 : index
    %c0_221 = arith.constant 0 : index
    %c0_222 = arith.constant 0 : index
    %273 = vector.load %arg13[%c0_219, %c3_220, %c0_221, %c0_222] : memref<1x4x16x16xf32, #tpu.memory_space<vmem>>, vector<1x1x16x16xf32>
    %274 = vector.shape_cast %273 : vector<1x1x16x16xf32> to vector<16x16xf32>
    %cst_223 = arith.constant dense<0.000000e+00> : vector<8x16xf32>
    %275 = tpu.matmul %272, %274, %cst_223 {dimension_numbers = #tpu.dot_dimension_numbers<[1], [0], [0], [1], [0, 0, 1, 1], [], []>} : vector<8x16xf32>, vector<16x16xf32>, vector<8x16xf32> -> vector<8x16xf32>
    %276 = arith.addf %271, %275 : vector<8x16xf32>
    %277 = vector.extract_strided_slice %153 {offsets = [1, 0], sizes = [1, 16], strides = [1, 1]} : vector<2x16xf32> to vector<1x16xf32>
    %278 = vector.broadcast %277 : vector<1x16xf32> to vector<8x16xf32>
    %279 = arith.addf %276, %278 : vector<8x16xf32>
    %280 = math.tanh %279 : vector<8x16xf32>
    %c0_224 = arith.constant 0 : index
    %c16_225 = arith.constant 16 : index
    %281 = vector.load %arg20[%c0_224, %c16_225] : memref<8x32xf32, #tpu.memory_space<vmem>>, vector<8x16xf32>
    %282 = arith.mulf %281, %265 : vector<8x16xf32>
    %cst_226 = arith.constant 1.000000e+00 : f32
    %283 = vector.broadcast %cst_226 : f32 to vector<8x16xf32>
    %284 = arith.subf %283, %281 : vector<8x16xf32>
    %285 = arith.mulf %284, %280 : vector<8x16xf32>
    %286 = arith.addf %282, %285 : vector<8x16xf32>
    %c1_227 = arith.constant 1 : index
    %c0_228 = arith.constant 0 : index
    %c16_229 = arith.constant 16 : index
    %287 = vector.load %arg17[%c1_227, %c0_228, %c16_229] : memref<2x8x32xf32, #tpu.memory_space<vmem>>, vector<1x8x16xf32>
    %288 = vector.shape_cast %287 : vector<1x8x16xf32> to vector<8x16xf32>
    %289 = vector.shape_cast %286 : vector<8x16xf32> to vector<1x8x16xf32>
    tpu.vector_store %arg17[%c1_227, %c0_228, %c16_229], %289 {strides = array<i32>} : memref<2x8x32xf32, #tpu.memory_space<vmem>>, vector<1x8x16xf32>,
    %c1_230 = arith.constant 1 : index
    %c0_231 = arith.constant 0 : index
    %c0_232 = arith.constant 0 : index
    %290 = vector.load %arg17[%c1_230, %c0_231, %c0_232] : memref<2x8x32xf32, #tpu.memory_space<vmem>>, vector<1x8x32xf32>
    %291 = vector.shape_cast %290 : vector<1x8x32xf32> to vector<8x32xf32>
    %292 = vector.extract_strided_slice %291 {offsets = [0, 0], sizes = [8, 16], strides = [1, 1]} : vector<8x32xf32> to vector<8x16xf32>
    %c0_233 = arith.constant 0 : index
    %c0_234 = arith.constant 0 : index
    %293 = vector.load %arg4[%c0_233, %c0_234] : memref<16x2xf32, #tpu.memory_space<vmem>>, vector<16x2xf32>
    %cst_235 = arith.constant dense<0.000000e+00> : vector<8x2xf32>
    %294 = tpu.matmul %292, %293, %cst_235 {dimension_numbers = #tpu.dot_dimension_numbers<[1], [0], [0], [1], [0, 0, 1, 1], [], []>} : vector<8x16xf32>, vector<16x2xf32>, vector<8x2xf32> -> vector<8x2xf32>
    %c0_236 = arith.constant 0 : index
    %c0_237 = arith.constant 0 : index
    %295 = vector.load %arg5[%c0_236, %c0_237] : memref<1x2xf32, #tpu.memory_space<vmem>>, vector<1x2xf32>
    %296 = vector.broadcast %295 : vector<1x2xf32> to vector<8x2xf32>
    %297 = arith.addf %294, %296 : vector<8x2xf32>
    %c0_238 = arith.constant 0 : index
    %c0_239 = arith.constant 0 : index
    %298 = vector.load %arg18[%c0_238, %c0_239] : memref<8x4xf32, #tpu.memory_space<vmem>>, vector<8x2xf32>
    tpu.vector_store %arg18[%c0_238, %c0_239], %297 {strides = array<i32>} : memref<8x4xf32, #tpu.memory_space<vmem>>, vector<8x2xf32>,
    %299 = vector.extract_strided_slice %291 {offsets = [0, 16], sizes = [8, 16], strides = [1, 1]} : vector<8x32xf32> to vector<8x16xf32>
    %c0_240 = arith.constant 0 : index
    %c0_241 = arith.constant 0 : index
    %300 = vector.load %arg4[%c0_240, %c0_241] : memref<16x2xf32, #tpu.memory_space<vmem>>, vector<16x2xf32>
    %cst_242 = arith.constant dense<0.000000e+00> : vector<8x2xf32>
    %301 = tpu.matmul %299, %300, %cst_242 {dimension_numbers = #tpu.dot_dimension_numbers<[1], [0], [0], [1], [0, 0, 1, 1], [], []>} : vector<8x16xf32>, vector<16x2xf32>, vector<8x2xf32> -> vector<8x2xf32>
    %c0_243 = arith.constant 0 : index
    %c0_244 = arith.constant 0 : index
    %302 = vector.load %arg5[%c0_243, %c0_244] : memref<1x2xf32, #tpu.memory_space<vmem>>, vector<1x2xf32>
    %303 = vector.broadcast %302 : vector<1x2xf32> to vector<8x2xf32>
    %304 = arith.addf %301, %303 : vector<8x2xf32>
    %c0_245 = arith.constant 0 : index
    %c2_246 = arith.constant 2 : index
    %305 = vector.load %arg18[%c0_245, %c2_246] : memref<8x4xf32, #tpu.memory_space<vmem>>, vector<8x2xf32>
    tpu.vector_store %arg18[%c0_245, %c2_246], %304 {strides = array<i32>} : memref<8x4xf32, #tpu.memory_space<vmem>>, vector<8x2xf32>,
    %c0_247 = arith.constant 0 : index
    %c0_248 = arith.constant 0 : index
    %306 = vector.load %arg18[%c0_247, %c0_248] : memref<8x4xf32, #tpu.memory_space<vmem>>, vector<8x4xf32>
    %c0_249 = arith.constant 0 : index
    %c0_250 = arith.constant 0 : index
    %c0_251 = arith.constant 0 : index
    %307 = vector.load %arg16[%c0_249, %c0_250, %c0_251] : memref<1x8x4xf32, #tpu.memory_space<vmem>>, vector<1x8x4xf32>
    %308 = vector.shape_cast %307 : vector<1x8x4xf32> to vector<8x4xf32>
    %309 = vector.shape_cast %306 : vector<8x4xf32> to vector<1x8x4xf32>
    tpu.vector_store %arg16[%c0_249, %c0_250, %c0_251], %309 {strides = array<i32>} : memref<1x8x4xf32, #tpu.memory_space<vmem>>, vector<1x8x4xf32>,
    return
  }
  func.func @transform_0(%arg0: i32, %arg1: i32) -> (i32, i32, i32) {
    %c0_i32 = arith.constant 0 : i32
    %c0_i32_0 = arith.constant 0 : i32
    %c0_i32_1 = arith.constant 0 : i32
    %c0_i32_2 = arith.constant 0 : i32
    return %c0_i32, %c0_i32_0, %c0_i32_1 : i32, i32, i32
  }
  func.func @transform_1(%arg0: i32, %arg1: i32) -> (i32, i32, i32, i32) {
    %c0_i32 = arith.constant 0 : i32
    %c0_i32_0 = arith.constant 0 : i32
    %c0_i32_1 = arith.constant 0 : i32
    %c0_i32_2 = arith.constant 0 : i32
    return %arg0, %c0_i32, %c0_i32_0, %c0_i32_1 : i32, i32, i32, i32
  }
  func.func @transform_2(%arg0: i32, %arg1: i32) -> (i32, i32) {
    %c0_i32 = arith.constant 0 : i32
    %c0_i32_0 = arith.constant 0 : i32
    %c0_i32_1 = arith.constant 0 : i32
    return %c0_i32, %c0_i32_0 : i32, i32
  }
  func.func @transform_3(%arg0: i32, %arg1: i32) -> (i32, i32) {
    %c0_i32 = arith.constant 0 : i32
    %c0_i32_0 = arith.constant 0 : i32
    %c0_i32_1 = arith.constant 0 : i32
    return %c0_i32, %c0_i32_0 : i32, i32
  }
  func.func @transform_4(%arg0: i32, %arg1: i32) -> (i32, i32, i32, i32) {
    %c4_i32 = arith.constant 4 : i32
    %0 = arith.muli %arg0, %c4_i32 : i32
    %1 = arith.addi %0, %arg1 : i32
    %c0_i32 = arith.constant 0 : i32
    %c0_i32_0 = arith.constant 0 : i32
    %c0_i32_1 = arith.constant 0 : i32
    %c0_i32_2 = arith.constant 0 : i32
    return %1, %c0_i32, %c0_i32_0, %c0_i32_1 : i32, i32, i32, i32
  }
  func.func @transform_5(%arg0: i32, %arg1: i32) -> (i32, i32, i32, i32) {
    %c4_i32 = arith.constant 4 : i32
    %0 = arith.muli %arg0, %c4_i32 : i32
    %1 = arith.addi %0, %arg1 : i32
    %c0_i32 = arith.constant 0 : i32
    %c0_i32_0 = arith.constant 0 : i32
    %c0_i32_1 = arith.constant 0 : i32
    %c0_i32_2 = arith.constant 0 : i32
    return %1, %c0_i32, %c0_i32_0, %c0_i32_1 : i32, i32, i32, i32
  }
  func.func @transform_6(%arg0: i32, %arg1: i32) -> (i32, i32, i32, i32) {
    %c4_i32 = arith.constant 4 : i32
    %0 = arith.muli %arg0, %c4_i32 : i32
    %1 = arith.addi %0, %arg1 : i32
    %c0_i32 = arith.constant 0 : i32
    %c0_i32_0 = arith.constant 0 : i32
    %c0_i32_1 = arith.constant 0 : i32
    %c0_i32_2 = arith.constant 0 : i32
    return %1, %c0_i32, %c0_i32_0, %c0_i32_1 : i32, i32, i32, i32
  }
  func.func @transform_7(%arg0: i32, %arg1: i32) -> (i32, i32, i32) {
    %c4_i32 = arith.constant 4 : i32
    %0 = arith.muli %arg0, %c4_i32 : i32
    %1 = arith.addi %0, %arg1 : i32
    %c0_i32 = arith.constant 0 : i32
    %c0_i32_0 = arith.constant 0 : i32
    %c0_i32_1 = arith.constant 0 : i32
    return %1, %c0_i32, %c0_i32_0 : i32, i32, i32
  }
  func.func @transform_8(%arg0: i32, %arg1: i32) -> (i32, i32, i32) {
    %c4_i32 = arith.constant 4 : i32
    %0 = arith.muli %arg0, %c4_i32 : i32
    %1 = arith.addi %0, %arg1 : i32
    %c0_i32 = arith.constant 0 : i32
    %c0_i32_0 = arith.constant 0 : i32
    %c0_i32_1 = arith.constant 0 : i32
    return %1, %c0_i32, %c0_i32_0 : i32, i32, i32
  }
  func.func @transform_9(%arg0: i32, %arg1: i32) -> (i32, i32, i32, i32) {
    %c4_i32 = arith.constant 4 : i32
    %0 = arith.muli %arg0, %c4_i32 : i32
    %1 = arith.addi %0, %arg1 : i32
    %c0_i32 = arith.constant 0 : i32
    %c0_i32_0 = arith.constant 0 : i32
    %c0_i32_1 = arith.constant 0 : i32
    %c0_i32_2 = arith.constant 0 : i32
    return %1, %c0_i32, %c0_i32_0, %c0_i32_1 : i32, i32, i32, i32
  }
  func.func @transform_10(%arg0: i32, %arg1: i32) -> (i32, i32, i32, i32) {
    %c4_i32 = arith.constant 4 : i32
    %0 = arith.muli %arg0, %c4_i32 : i32
    %1 = arith.addi %0, %arg1 : i32
    %c0_i32 = arith.constant 0 : i32
    %c0_i32_0 = arith.constant 0 : i32
    %c0_i32_1 = arith.constant 0 : i32
    %c0_i32_2 = arith.constant 0 : i32
    return %1, %c0_i32, %c0_i32_0, %c0_i32_1 : i32, i32, i32, i32
  }
  func.func @transform_11(%arg0: i32, %arg1: i32) -> (i32, i32, i32, i32) {
    %c4_i32 = arith.constant 4 : i32
    %0 = arith.muli %arg0, %c4_i32 : i32
    %1 = arith.addi %0, %arg1 : i32
    %c0_i32 = arith.constant 0 : i32
    %c0_i32_0 = arith.constant 0 : i32
    %c0_i32_1 = arith.constant 0 : i32
    %c0_i32_2 = arith.constant 0 : i32
    return %1, %c0_i32, %c0_i32_0, %c0_i32_1 : i32, i32, i32, i32
  }
  func.func @transform_12(%arg0: i32, %arg1: i32) -> (i32, i32, i32) {
    %c4_i32 = arith.constant 4 : i32
    %0 = arith.muli %arg0, %c4_i32 : i32
    %1 = arith.addi %0, %arg1 : i32
    %c0_i32 = arith.constant 0 : i32
    %c0_i32_0 = arith.constant 0 : i32
    %c0_i32_1 = arith.constant 0 : i32
    return %1, %c0_i32, %c0_i32_0 : i32, i32, i32
  }
  func.func @transform_13(%arg0: i32, %arg1: i32) -> (i32, i32, i32) {
    %c4_i32 = arith.constant 4 : i32
    %0 = arith.muli %arg0, %c4_i32 : i32
    %1 = arith.addi %0, %arg1 : i32
    %c0_i32 = arith.constant 0 : i32
    %c0_i32_0 = arith.constant 0 : i32
    %c0_i32_1 = arith.constant 0 : i32
    return %1, %c0_i32, %c0_i32_0 : i32, i32, i32
  }
  func.func @transform_14(%arg0: i32, %arg1: i32) -> (i32, i32, i32) {
    %c4_i32 = arith.constant 4 : i32
    %0 = arith.muli %arg0, %c4_i32 : i32
    %1 = arith.addi %0, %arg1 : i32
    %c0_i32 = arith.constant 0 : i32
    %c0_i32_0 = arith.constant 0 : i32
    %c0_i32_1 = arith.constant 0 : i32
    return %1, %c0_i32, %c0_i32_0 : i32, i32, i32
  }
}

</mosaic_0001>

<llo_original>
// kernel: tpu_custom_call.1
$region0: #{tpu_custom_call.1}
  #allocation0 [shape = 'u32[]', space=smem, size = 0x4, offset = 0x4, fixed_abs, tag = 'smem constant byte address 0x4 - core index']
  #allocation1 [shape = 'u32[72,128]{1,0:T(1,128)}', space=vmem, size = 0x9000, scoped, tag = 'internal scratch']
  #allocation2 [shape = 'f32[2,8,32]{2,1,0:T(8,128)}', space=vmem, size = 0x2000, scoped, tag = 'scratch operand']
  #allocation3 [shape = 'f32[8,4]{1,0:T(8,128)}', space=vmem, size = 0x1000, scoped, tag = 'scratch operand']
  #allocation4 [shape = 'f32[8,32]{1,0:T(8,128)}', space=vmem, size = 0x1000, scoped, tag = 'scratch operand']
  #allocation5 [shape = 'f32[8,32]{1,0:T(8,128)}', space=vmem, size = 0x1000, scoped, tag = 'scratch operand']
  #allocation6 [shape = 'f32[8,32]{1,0:T(8,128)}', space=vmem, size = 0x1000, scoped, tag = 'scratch operand']
  %s0 = inlined_call_operand.vmem [shape: f32[1,8,8], index: 0, kind: input, shape index: {}]
  %s1 = inlined_call_operand.hbm [shape: f32[2,2,8,32], index: 1, kind: input, shape index: {}]
  %s2 = inlined_call_operand.vmem [shape: f32[16,2], index: 2, kind: input, shape index: {}]
  %s3 = inlined_call_operand.hbm [shape: f32[1,2], index: 3, kind: input, shape index: {}]
  %s4 = inlined_call_operand.hbm [shape: f32[8,4,2,48], index: 4, kind: input, shape index: {}]
  %s5 = inlined_call_operand.hbm [shape: f32[8,4,16,32], index: 5, kind: input, shape index: {}]
  %s6 = inlined_call_operand.hbm [shape: f32[8,4,16,16], index: 6, kind: input, shape index: {}]
  %s7 = inlined_call_operand.vmem [shape: f32[8,2,32], index: 7, kind: input, shape index: {}]
  %s8 = inlined_call_operand.hbm [shape: f32[8,2,16], index: 8, kind: input, shape index: {}]
  %s9 = inlined_call_operand.hbm [shape: f32[8,4,16,48], index: 9, kind: input, shape index: {}]
  %s10 = inlined_call_operand.hbm [shape: f32[8,4,16,32], index: 10, kind: input, shape index: {}]
  %s11 = inlined_call_operand.hbm [shape: f32[8,4,16,16], index: 11, kind: input, shape index: {}]
  %s12 = inlined_call_operand.hbm [shape: f32[8,2,32], index: 12, kind: input, shape index: {}]
  %s13 = inlined_call_operand.hbm [shape: f32[8,2,16], index: 13, kind: input, shape index: {}]
  %s14 = inlined_call_operand.vmem [shape: f32[8,8,4], index: 14, kind: output, shape index: {}]
  %s15 = sld [smem:[#allocation0]]
  $region137: #{tpu_custom_call.1} parent=0
    _
  %s17 = ssub.s32 1, %s15
  %s18 = scalar_select 0, %s17, %s15
  $region1: #{tpu_custom_call.1} parent=0
    #allocation7 [shape = 'u8[16384]{0}', space=vmem, size = 0x4000, scoped, tag = 'input window, operand 1']
    #allocation8 [shape = 's32[2]{0}', space=sflag, size = 0x8, scoped, tag = 'scoped memory for tpu_custom_call.1']
    #allocation9 [shape = 'u8[512]{0}', space=vmem, size = 0x400, scoped, tag = 'input window, operand 3, single buffered']
    #allocation10 [shape = 's32[1]{0}', space=sflag, size = 0x4, scoped, tag = 'scoped memory for tpu_custom_call.1']
    #allocation11 [shape = 'u8[8192]{0}', space=vmem, size = 0x2000, scoped, tag = 'input window, operand 4']
    #allocation12 [shape = 'u8[65536]{0}', space=vmem, size = 0x10000, scoped, tag = 'input window, operand 5']
    #allocation13 [shape = 'u8[65536]{0}', space=vmem, size = 0x10000, scoped, tag = 'input window, operand 6']
    #allocation14 [shape = 'u8[2048]{0}', space=vmem, size = 0x800, scoped, tag = 'input window, operand 8']
    #allocation15 [shape = 'u8[65536]{0}', space=vmem, size = 0x10000, scoped, tag = 'input window, operand 9']
    #allocation16 [shape = 'u8[65536]{0}', space=vmem, size = 0x10000, scoped, tag = 'input window, operand 10']
    #allocation17 [shape = 'u8[65536]{0}', space=vmem, size = 0x10000, scoped, tag = 'input window, operand 11']
    #allocation18 [shape = 'u8[2048]{0}', space=vmem, size = 0x800, scoped, tag = 'input window, operand 12']
    #allocation19 [shape = 'u8[2048]{0}', space=vmem, size = 0x800, scoped, tag = 'input window, operand 13']
    %19 = vsyncpa [#allocation8], 0
    %s20 = scalar_lea.sflag [#allocation8], 1
    %21 = vsyncpa %s20, 0
    %22 = vsyncpa [#allocation10], 0
    loop: start=0, step=1, limit=10
    $region2: #{tpu_custom_call.1} parent=1 // loop_pre_header
      _
    $region3: #{tpu_custom_call.1} parent=1 // loop_header
      %s24 = sphi 0, %s28
      %p25 = scmp.ge.s32.totalorder %s24, 10
      %s31 = sphi 0, %s43
      %s32 = sphi 0, %s39
      %s33 = sphi 0, %s31
      %s34 = sphi 0, %s32
      %s35 = sphi 0, %s33
      %s36 = sphi 0, %s34
      %s44 = sphi 0, %s44
      %s46 = sphi 0, %s44
      %s47 = sphi 0, %s46
      %s61 = sphi 0, %s47
      %s67 = sphi 0, %s69
      %s70 = sphi 0, %s67
      %s71 = sphi 0, %s70
      %s87 = sphi 0, %s71
      %s91 = sphi 0, %s91
      %s93 = sphi 0, %s91
      %s94 = sphi 0, %s93
      %s108 = sphi 0, %s94
      %s112 = sphi 0, %s112
      %s114 = sphi 0, %s112
      %s115 = sphi 0, %s114
      %s129 = sphi 0, %s115
      %s139 = sphi 0, %s141
      %s142 = sphi 0, %s139
      %s143 = sphi 0, %s142
      %s159 = sphi 0, %s143
      %s169 = sphi 0, %s171
      %s172 = sphi 0, %s169
      %s173 = sphi 0, %s172
      %s189 = sphi 0, %s173
      %s199 = sphi 0, %s201
      %s202 = sphi 0, %s199
      %s203 = sphi 0, %s202
      %s219 = sphi 0, %s203
      %s229 = sphi 0, %s231
      %s232 = sphi 0, %s229
      %s233 = sphi 0, %s232
      %s249 = sphi 0, %s233
      %s259 = sphi 0, %s261
      %s262 = sphi 0, %s259
      %s263 = sphi 0, %s262
      %s279 = sphi 0, %s263
      %s289 = sphi 0, %s291
      %s292 = sphi 0, %s289
      %s293 = sphi 0, %s292
      %s309 = sphi 0, %s293
      %s319 = sphi 0, %s321
      %s322 = sphi 0, %s319
      %s323 = sphi 0, %s322
      %s339 = sphi 0, %s323
      %s349 = sphi 0, %s351
      %s352 = sphi 0, %s349
      %s353 = sphi 0, %s352
      %s369 = sphi 0, %s353
      %s379 = sphi 0, %s381
      %s382 = sphi 0, %s379
      %s383 = sphi 0, %s382
      %s399 = sphi 0, %s383
      %s409 = sphi 0, %s411
      %s412 = sphi 0, %s409
      %s413 = sphi 0, %s412
      %s429 = sphi 0, %s413
      %s439 = sphi 0, %s441
      %s442 = sphi 0, %s439
      %s443 = sphi 0, %s442
      %s459 = sphi 0, %s443
    $region4: #{tpu_custom_call.1} parent=1 // loop_header_branch
      %27 = sbr.rel (%p25) target = $region8
    $region5: #{tpu_custom_call.1} parent=1 // loop_body
      %s29 = ssub.s32 %s24, 1
      %s30 = ssub.s32 %s24, 2
      %s37 = sadd.s32 1, %s32
      %p38 = scmp.ge.s32.totalorder %s37, 4
      %s39 = scalar_select %p38, 0, %s37
      %s40 = sadd.s32 1, %s31
      %s41 = scalar_select %p38, %s40, %s31
      %p42 = scmp.ge.s32.totalorder %s41, 2
      %s43 = scalar_select %p42, 0, %s41
      %s45 = sadd.s32 %s44, 1
      %p48 = scmp.eq.s32.totalorder %s24, 7
      %p49 = scmp.ne.s32.totalorder %s44, %s46
      %p50 = scmp.eq.s32.totalorder %s24, 0
      %p51 = por %p49, %p50
      %p52 = scmp.ne.s32.totalorder %s44, %s46
      %p53 = scmp.eq.s32.totalorder %s29, 7
      %p54 = por %p52, %p53
      %p55 = scmp.ne.s32.totalorder %s46, %s47
      %p56 = scmp.eq.s32.totalorder %s29, 0
      %p57 = por %p55, %p56
      %p58 = scmp.ne.s32.totalorder %s46, %s47
      %p59 = scmp.eq.s32.totalorder %s30, 7
      %p60 = por %p58, %p59
      %p62 = scmp.ne.s32.totalorder %s47, %s61
      %p63 = scmp.eq.s32.totalorder %s30, 0
      %p64 = por %p62, %p63
      %s65 = ssub.s32 %s31, %s43
      %p66 = scmp.eq.s32.totalorder %s65, 0
      %s68 = sadd.s32 %s67, 1
      %s69 = scalar_select %p66, %s67, %s68
      %p72 = pneg %p66
      %p73 = scmp.eq.s32.totalorder %s24, 7
      %p74 = por %p72, %p73
      %p75 = scmp.ne.s32.totalorder %s67, %s70
      %p76 = scmp.eq.s32.totalorder %s24, 0
      %p77 = por %p75, %p76
      %p78 = scmp.ne.s32.totalorder %s67, %s70
      %p79 = scmp.eq.s32.totalorder %s29, 7
      %p80 = por %p78, %p79
      %p81 = scmp.ne.s32.totalorder %s70, %s71
      %p82 = scmp.eq.s32.totalorder %s29, 0
      %p83 = por %p81, %p82
      %p84 = scmp.ne.s32.totalorder %s70, %s71
      %p85 = scmp.eq.s32.totalorder %s30, 7
      %p86 = por %p84, %p85
      %p88 = scmp.ne.s32.totalorder %s71, %s87
      %p89 = scmp.eq.s32.totalorder %s30, 0
      %p90 = por %p88, %p89
      %s92 = sadd.s32 %s91, 1
      %p95 = scmp.eq.s32.totalorder %s24, 7
      %p96 = scmp.ne.s32.totalorder %s91, %s93
      %p97 = scmp.eq.s32.totalorder %s24, 0
      %p98 = por %p96, %p97
      %p99 = scmp.ne.s32.totalorder %s91, %s93
      %p100 = scmp.eq.s32.totalorder %s29, 7
      %p101 = por %p99, %p100
      %p102 = scmp.ne.s32.totalorder %s93, %s94
      %p103 = scmp.eq.s32.totalorder %s29, 0
      %p104 = por %p102, %p103
      %p105 = scmp.ne.s32.totalorder %s93, %s94
      %p106 = scmp.eq.s32.totalorder %s30, 7
      %p107 = por %p105, %p106
      %p109 = scmp.ne.s32.totalorder %s94, %s108
      %p110 = scmp.eq.s32.totalorder %s30, 0
      %p111 = por %p109, %p110
      %s113 = sadd.s32 %s112, 1
      %p116 = scmp.eq.s32.totalorder %s24, 7
      %p117 = scmp.ne.s32.totalorder %s112, %s114
      %p118 = scmp.eq.s32.totalorder %s24, 0
      %p119 = por %p117, %p118
      %p120 = scmp.ne.s32.totalorder %s112, %s114
      %p121 = scmp.eq.s32.totalorder %s29, 7
      %p122 = por %p120, %p121
      %p123 = scmp.ne.s32.totalorder %s114, %s115
      %p124 = scmp.eq.s32.totalorder %s29, 0
      %p125 = por %p123, %p124
      %p126 = scmp.ne.s32.totalorder %s114, %s115
      %p127 = scmp.eq.s32.totalorder %s30, 7
      %p128 = por %p126, %p127
      %p130 = scmp.ne.s32.totalorder %s115, %s129
      %p131 = scmp.eq.s32.totalorder %s30, 0
      %p132 = por %p130, %p131
      %s133 = smul.u32 %s31, 4
      %s134 = sadd.s32 %s133, %s32
      %s135 = smul.u32 %s43, 4
      %s136 = sadd.s32 %s135, %s39
      %s137 = ssub.s32 %s134, %s136
      %p138 = scmp.eq.s32.totalorder %s137, 0
      %s140 = sadd.s32 %s139, 1
      %s141 = scalar_select %p138, %s139, %s140
      %p144 = pneg %p138
      %p145 = scmp.eq.s32.totalorder %s24, 7
      %p146 = por %p144, %p145
      %p147 = scmp.ne.s32.totalorder %s139, %s142
      %p148 = scmp.eq.s32.totalorder %s24, 0
      %p149 = por %p147, %p148
      %p150 = scmp.ne.s32.totalorder %s139, %s142
      %p151 = scmp.eq.s32.totalorder %s29, 7
      %p152 = por %p150, %p151
      %p153 = scmp.ne.s32.totalorder %s142, %s143
      %p154 = scmp.eq.s32.totalorder %s29, 0
      %p155 = por %p153, %p154
      %p156 = scmp.ne.s32.totalorder %s142, %s143
      %p157 = scmp.eq.s32.totalorder %s30, 7
      %p158 = por %p156, %p157
      %p160 = scmp.ne.s32.totalorder %s143, %s159
      %p161 = scmp.eq.s32.totalorder %s30, 0
      %p162 = por %p160, %p161
      %s163 = smul.u32 %s31, 4
      %s164 = sadd.s32 %s163, %s32
      %s165 = smul.u32 %s43, 4
      %s166 = sadd.s32 %s165, %s39
      %s167 = ssub.s32 %s164, %s166
      %p168 = scmp.eq.s32.totalorder %s167, 0
      %s170 = sadd.s32 %s169, 1
      %s171 = scalar_select %p168, %s169, %s170
      %p174 = pneg %p168
      %p175 = scmp.eq.s32.totalorder %s24, 7
      %p176 = por %p174, %p175
      %p177 = scmp.ne.s32.totalorder %s169, %s172
      %p178 = scmp.eq.s32.totalorder %s24, 0
      %p179 = por %p177, %p178
      %p180 = scmp.ne.s32.totalorder %s169, %s172
      %p181 = scmp.eq.s32.totalorder %s29, 7
      %p182 = por %p180, %p181
      %p183 = scmp.ne.s32.totalorder %s172, %s173
      %p184 = scmp.eq.s32.totalorder %s29, 0
      %p185 = por %p183, %p184
      %p186 = scmp.ne.s32.totalorder %s172, %s173
      %p187 = scmp.eq.s32.totalorder %s30, 7
      %p188 = por %p186, %p187
      %p190 = scmp.ne.s32.totalorder %s173, %s189
      %p191 = scmp.eq.s32.totalorder %s30, 0
      %p192 = por %p190, %p191
      %s193 = smul.u32 %s31, 4
      %s194 = sadd.s32 %s193, %s32
      %s195 = smul.u32 %s43, 4
      %s196 = sadd.s32 %s195, %s39
      %s197 = ssub.s32 %s194, %s196
      %p198 = scmp.eq.s32.totalorder %s197, 0
      %s200 = sadd.s32 %s199, 1
      %s201 = scalar_select %p198, %s199, %s200
      %p204 = pneg %p198
      %p205 = scmp.eq.s32.totalorder %s24, 7
      %p206 = por %p204, %p205
      %p207 = scmp.ne.s32.totalorder %s199, %s202
      %p208 = scmp.eq.s32.totalorder %s24, 0
      %p209 = por %p207, %p208
      %p210 = scmp.ne.s32.totalorder %s199, %s202
      %p211 = scmp.eq.s32.totalorder %s29, 7
      %p212 = por %p210, %p211
      %p213 = scmp.ne.s32.totalorder %s202, %s203
      %p214 = scmp.eq.s32.totalorder %s29, 0
      %p215 = por %p213, %p214
      %p216 = scmp.ne.s32.totalorder %s202, %s203
      %p217 = scmp.eq.s32.totalorder %s30, 7
      %p218 = por %p216, %p217
      %p220 = scmp.ne.s32.totalorder %s203, %s219
      %p221 = scmp.eq.s32.totalorder %s30, 0
      %p222 = por %p220, %p221
      %s223 = smul.u32 %s31, 4
      %s224 = sadd.s32 %s223, %s32
      %s225 = smul.u32 %s43, 4
      %s226 = sadd.s32 %s225, %s39
      %s227 = ssub.s32 %s224, %s226
      %p228 = scmp.eq.s32.totalorder %s227, 0
      %s230 = sadd.s32 %s229, 1
      %s231 = scalar_select %p228, %s229, %s230
      %p234 = pneg %p228
      %p235 = scmp.eq.s32.totalorder %s24, 7
      %p236 = por %p234, %p235
      %p237 = scmp.ne.s32.totalorder %s229, %s232
      %p238 = scmp.eq.s32.totalorder %s24, 0
      %p239 = por %p237, %p238
      %p240 = scmp.ne.s32.totalorder %s229, %s232
      %p241 = scmp.eq.s32.totalorder %s29, 7
      %p242 = por %p240, %p241
      %p243 = scmp.ne.s32.totalorder %s232, %s233
      %p244 = scmp.eq.s32.totalorder %s29, 0
      %p245 = por %p243, %p244
      %p246 = scmp.ne.s32.totalorder %s232, %s233
      %p247 = scmp.eq.s32.totalorder %s30, 7
      %p248 = por %p246, %p247
      %p250 = scmp.ne.s32.totalorder %s233, %s249
      %p251 = scmp.eq.s32.totalorder %s30, 0
      %p252 = por %p250, %p251
      %s253 = smul.u32 %s31, 4
      %s254 = sadd.s32 %s253, %s32
      %s255 = smul.u32 %s43, 4
      %s256 = sadd.s32 %s255, %s39
      %s257 = ssub.s32 %s254, %s256
      %p258 = scmp.eq.s32.totalorder %s257, 0
      %s260 = sadd.s32 %s259, 1
      %s261 = scalar_select %p258, %s259, %s260
      %p264 = pneg %p258
      %p265 = scmp.eq.s32.totalorder %s24, 7
      %p266 = por %p264, %p265
      %p267 = scmp.ne.s32.totalorder %s259, %s262
      %p268 = scmp.eq.s32.totalorder %s24, 0
      %p269 = por %p267, %p268
      %p270 = scmp.ne.s32.totalorder %s259, %s262
      %p271 = scmp.eq.s32.totalorder %s29, 7
      %p272 = por %p270, %p271
      %p273 = scmp.ne.s32.totalorder %s262, %s263
      %p274 = scmp.eq.s32.totalorder %s29, 0
      %p275 = por %p273, %p274
      %p276 = scmp.ne.s32.totalorder %s262, %s263
      %p277 = scmp.eq.s32.totalorder %s30, 7
      %p278 = por %p276, %p277
      %p280 = scmp.ne.s32.totalorder %s263, %s279
      %p281 = scmp.eq.s32.totalorder %s30, 0
      %p282 = por %p280, %p281
      %s283 = smul.u32 %s31, 4
      %s284 = sadd.s32 %s283, %s32
      %s285 = smul.u32 %s43, 4
      %s286 = sadd.s32 %s285, %s39
      %s287 = ssub.s32 %s284, %s286
      %p288 = scmp.eq.s32.totalorder %s287, 0
      %s290 = sadd.s32 %s289, 1
      %s291 = scalar_select %p288, %s289, %s290
      %p294 = pneg %p288
      %p295 = scmp.eq.s32.totalorder %s24, 7
      %p296 = por %p294, %p295
      %p297 = scmp.ne.s32.totalorder %s289, %s292
      %p298 = scmp.eq.s32.totalorder %s24, 0
      %p299 = por %p297, %p298
      %p300 = scmp.ne.s32.totalorder %s289, %s292
      %p301 = scmp.eq.s32.totalorder %s29, 7
      %p302 = por %p300, %p301
      %p303 = scmp.ne.s32.totalorder %s292, %s293
      %p304 = scmp.eq.s32.totalorder %s29, 0
      %p305 = por %p303, %p304
      %p306 = scmp.ne.s32.totalorder %s292, %s293
      %p307 = scmp.eq.s32.totalorder %s30, 7
      %p308 = por %p306, %p307
      %p310 = scmp.ne.s32.totalorder %s293, %s309
      %p311 = scmp.eq.s32.totalorder %s30, 0
      %p312 = por %p310, %p311
      %s313 = smul.u32 %s31, 4
      %s314 = sadd.s32 %s313, %s32
      %s315 = smul.u32 %s43, 4
      %s316 = sadd.s32 %s315, %s39
      %s317 = ssub.s32 %s314, %s316
      %p318 = scmp.eq.s32.totalorder %s317, 0
      %s320 = sadd.s32 %s319, 1
      %s321 = scalar_select %p318, %s319, %s320
      %p324 = pneg %p318
      %p325 = scmp.eq.s32.totalorder %s24, 7
      %p326 = por %p324, %p325
      %p327 = scmp.ne.s32.totalorder %s319, %s322
      %p328 = scmp.eq.s32.totalorder %s24, 0
      %p329 = por %p327, %p328
      %p330 = scmp.ne.s32.totalorder %s319, %s322
      %p331 = scmp.eq.s32.totalorder %s29, 7
      %p332 = por %p330, %p331
      %p333 = scmp.ne.s32.totalorder %s322, %s323
      %p334 = scmp.eq.s32.totalorder %s29, 0
      %p335 = por %p333, %p334
      %p336 = scmp.ne.s32.totalorder %s322, %s323
      %p337 = scmp.eq.s32.totalorder %s30, 7
      %p338 = por %p336, %p337
      %p340 = scmp.ne.s32.totalorder %s323, %s339
      %p341 = scmp.eq.s32.totalorder %s30, 0
      %p342 = por %p340, %p341
      %s343 = smul.u32 %s31, 4
      %s344 = sadd.s32 %s343, %s32
      %s345 = smul.u32 %s43, 4
      %s346 = sadd.s32 %s345, %s39
      %s347 = ssub.s32 %s344, %s346
      %p348 = scmp.eq.s32.totalorder %s347, 0
      %s350 = sadd.s32 %s349, 1
      %s351 = scalar_select %p348, %s349, %s350
      %p354 = pneg %p348
      %p355 = scmp.eq.s32.totalorder %s24, 7
      %p356 = por %p354, %p355
      %p357 = scmp.ne.s32.totalorder %s349, %s352
      %p358 = scmp.eq.s32.totalorder %s24, 0
      %p359 = por %p357, %p358
      %p360 = scmp.ne.s32.totalorder %s349, %s352
      %p361 = scmp.eq.s32.totalorder %s29, 7
      %p362 = por %p360, %p361
      %p363 = scmp.ne.s32.totalorder %s352, %s353
      %p364 = scmp.eq.s32.totalorder %s29, 0
      %p365 = por %p363, %p364
      %p366 = scmp.ne.s32.totalorder %s352, %s353
      %p367 = scmp.eq.s32.totalorder %s30, 7
      %p368 = por %p366, %p367
      %p370 = scmp.ne.s32.totalorder %s353, %s369
      %p371 = scmp.eq.s32.totalorder %s30, 0
      %p372 = por %p370, %p371
      %s373 = smul.u32 %s31, 4
      %s374 = sadd.s32 %s373, %s32
      %s375 = smul.u32 %s43, 4
      %s376 = sadd.s32 %s375, %s39
      %s377 = ssub.s32 %s374, %s376
      %p378 = scmp.eq.s32.totalorder %s377, 0
      %s380 = sadd.s32 %s379, 1
      %s381 = scalar_select %p378, %s379, %s380
      %p384 = pneg %p378
      %p385 = scmp.eq.s32.totalorder %s24, 7
      %p386 = por %p384, %p385
      %p387 = scmp.ne.s32.totalorder %s379, %s382
      %p388 = scmp.eq.s32.totalorder %s24, 0
      %p389 = por %p387, %p388
      %p390 = scmp.ne.s32.totalorder %s379, %s382
      %p391 = scmp.eq.s32.totalorder %s29, 7
      %p392 = por %p390, %p391
      %p393 = scmp.ne.s32.totalorder %s382, %s383
      %p394 = scmp.eq.s32.totalorder %s29, 0
      %p395 = por %p393, %p394
      %p396 = scmp.ne.s32.totalorder %s382, %s383
      %p397 = scmp.eq.s32.totalorder %s30, 7
      %p398 = por %p396, %p397
      %p400 = scmp.ne.s32.totalorder %s383, %s399
      %p401 = scmp.eq.s32.totalorder %s30, 0
      %p402 = por %p400, %p401
      %s403 = smul.u32 %s31, 4
      %s404 = sadd.s32 %s403, %s32
      %s405 = smul.u32 %s43, 4
      %s406 = sadd.s32 %s405, %s39
      %s407 = ssub.s32 %s404, %s406
      %p408 = scmp.eq.s32.totalorder %s407, 0
      %s410 = sadd.s32 %s409, 1
      %s411 = scalar_select %p408, %s409, %s410
      %p414 = pneg %p408
      %p415 = scmp.eq.s32.totalorder %s24, 7
      %p416 = por %p414, %p415
      %p417 = scmp.ne.s32.totalorder %s409, %s412
      %p418 = scmp.eq.s32.totalorder %s24, 0
      %p419 = por %p417, %p418
      %p420 = scmp.ne.s32.totalorder %s409, %s412
      %p421 = scmp.eq.s32.totalorder %s29, 7
      %p422 = por %p420, %p421
      %p423 = scmp.ne.s32.totalorder %s412, %s413
      %p424 = scmp.eq.s32.totalorder %s29, 0
      %p425 = por %p423, %p424
      %p426 = scmp.ne.s32.totalorder %s412, %s413
      %p427 = scmp.eq.s32.totalorder %s30, 7
      %p428 = por %p426, %p427
      %p430 = scmp.ne.s32.totalorder %s413, %s429
      %p431 = scmp.eq.s32.totalorder %s30, 0
      %p432 = por %p430, %p431
      %s433 = smul.u32 %s31, 4
      %s434 = sadd.s32 %s433, %s32
      %s435 = smul.u32 %s43, 4
      %s436 = sadd.s32 %s435, %s39
      %s437 = ssub.s32 %s434, %s436
      %p438 = scmp.eq.s32.totalorder %s437, 0
      %s440 = sadd.s32 %s439, 1
      %s441 = scalar_select %p438, %s439, %s440
      %p444 = pneg %p438
      %p445 = scmp.eq.s32.totalorder %s24, 7
      %p446 = por %p444, %p445
      %p447 = scmp.ne.s32.totalorder %s439, %s442
      %p448 = scmp.eq.s32.totalorder %s24, 0
      %p449 = por %p447, %p448
      %p450 = scmp.ne.s32.totalorder %s439, %s442
      %p451 = scmp.eq.s32.totalorder %s29, 7
      %p452 = por %p450, %p451
      %p453 = scmp.ne.s32.totalorder %s442, %s443
      %p454 = scmp.eq.s32.totalorder %s29, 0
      %p455 = por %p453, %p454
      %p456 = scmp.ne.s32.totalorder %s442, %s443
      %p457 = scmp.eq.s32.totalorder %s30, 7
      %p458 = por %p456, %p457
      %p460 = scmp.ne.s32.totalorder %s443, %s459
      %p461 = scmp.eq.s32.totalorder %s30, 0
      %p462 = por %p460, %p461
      %p463 = scmp.le.s32.totalorder 1, %s24
      %p464 = scmp.lt.s32.totalorder %s24, 9
      %p465 = pnand %p463, %p464
      %p466 = pneg %p465
      // Predicated region
      $region9: #{tpu_custom_call.1} parent=5 // pred_check
        _
      $region10: #{tpu_custom_call.1} parent=5 // pred_check_branch
        %468 = sbr.rel (%p465) target = $region12
      $region11: #{tpu_custom_call.1} parent=5 // pred_region
        %s469 = ssub.s32 %s24, 1
        // Predicated region
        $region13: #{tpu_custom_call.1} parent=11 // pred_check
          %p470 = pneg %p57
        $region14: #{tpu_custom_call.1} parent=11 // pred_check_branch
          %472 = sbr.rel (%p470) target = $region16
        $region15: #{tpu_custom_call.1} parent=11 // pred_region
          _
        $region16: #{tpu_custom_call.1} parent=11 // pred_fallthru
          _
        // Predicated region
        $region17: #{tpu_custom_call.1} parent=11 // pred_check
          %p473 = pneg %p104
        $region18: #{tpu_custom_call.1} parent=11 // pred_check_branch
          %475 = sbr.rel (%p473) target = $region20
        $region19: #{tpu_custom_call.1} parent=11 // pred_region
          _
        $region20: #{tpu_custom_call.1} parent=11 // pred_fallthru
          _
        // Predicated region
        $region21: #{tpu_custom_call.1} parent=11 // pred_check
          %p476 = pneg %p125
        $region22: #{tpu_custom_call.1} parent=11 // pred_check_branch
          %478 = sbr.rel (%p476) target = $region24
        $region23: #{tpu_custom_call.1} parent=11 // pred_region
          %480 = vsyncadd [#allocation10], 0
          %s482 = sshll.u32 %s3, 4
          %s483 = int_to_ptr.hbm [resolvable:$true] %s482
          %s484 = sshll.u32 [#allocation9], 4
          %s485 = int_to_ptr.vmem [resolvable:$true] %s484
          %487 = dma.hbm_to_vmem [thread:$0]  %s483, 16, %s485, [#allocation10]
        $region24: #{tpu_custom_call.1} parent=11 // pred_fallthru
          _
      $region12: #{tpu_custom_call.1} parent=5 // pred_fallthru
        _
      %p488 = scmp.lt.s32.totalorder %s24, 8
      // Predicated region
      $region25: #{tpu_custom_call.1} parent=5 // pred_check
        %p489 = pneg %p488
      $region26: #{tpu_custom_call.1} parent=5 // pred_check_branch
        %491 = sbr.rel (%p489) target = $region28
      $region27: #{tpu_custom_call.1} parent=5 // pred_region
        // Predicated region
        $region29: #{tpu_custom_call.1} parent=27 // pred_check
          %p492 = pneg %p77
        $region30: #{tpu_custom_call.1} parent=27 // pred_check_branch
          %494 = sbr.rel (%p492) target = $region32
        $region31: #{tpu_custom_call.1} parent=27 // pred_region
          %s495 = sand.u32 %s24, 1
          %s496 = scalar_lea.sflag [#allocation8], %s495
          %s497 = sand.u32 %s67, 1
          %s498 = smul.addr %s497, 16
          %s499 = scalar_lea.vmem [#allocation7], %s498
          %501 = vsyncadd %s496, 0
          %s502 = smul.addr %s31, 2
          %s503 = smul.addr %s502, 8
          %s504 = scalar_lea.hbm %s1, %s503
          %s505 = sshll.u32 %s504, 4
          %s506 = int_to_ptr.hbm [resolvable:$true] %s505
          %s507 = sshll.u32 %s499, 4
          %s508 = int_to_ptr.vmem [resolvable:$true] %s507
          %513 = dma.hbm_to_vmem [thread:$0]  %s506, 256, %s508, %s496, 128, 128, 8
        $region32: #{tpu_custom_call.1} parent=27 // pred_fallthru
          _
        // Predicated region
        $region33: #{tpu_custom_call.1} parent=27 // pred_check
          %p514 = pneg %p149
        $region34: #{tpu_custom_call.1} parent=27 // pred_check_branch
          %516 = sbr.rel (%p514) target = $region36
        $region35: #{tpu_custom_call.1} parent=27 // pred_region
          %s517 = sand.u32 %s24, 1
          %s518 = scalar_lea.sflag [#allocation8], %s517
          %s519 = sand.u32 %s139, 1
          %s520 = smul.addr %s519, 8
          %s521 = scalar_lea.vmem [#allocation11], %s520
          %s522 = smul.u32 %s31, 4
          %s523 = sadd.s32 %s522, %s32
          %525 = vsyncadd %s518, 0
          %s526 = smul.addr %s523, 4
          %s527 = smul.addr %s526, 2
          %s528 = scalar_lea.hbm %s4, %s527
          %s529 = sshll.u32 %s528, 4
          %s530 = int_to_ptr.hbm [resolvable:$true] %s529
          %s531 = sshll.u32 %s521, 4
          %s532 = int_to_ptr.vmem [resolvable:$true] %s531
          %537 = dma.hbm_to_vmem [thread:$0]  %s530, 128, %s532, %s518, 32, 32, 2
        $region36: #{tpu_custom_call.1} parent=27 // pred_fallthru
          _
        // Predicated region
        $region37: #{tpu_custom_call.1} parent=27 // pred_check
          %p538 = pneg %p179
        $region38: #{tpu_custom_call.1} parent=27 // pred_check_branch
          %540 = sbr.rel (%p538) target = $region40
        $region39: #{tpu_custom_call.1} parent=27 // pred_region
          %s541 = sand.u32 %s24, 1
          %s542 = scalar_lea.sflag [#allocation8], %s541
          %s543 = sand.u32 %s169, 1
          %s544 = smul.addr %s543, 64
          %s545 = scalar_lea.vmem [#allocation12], %s544
          %s546 = smul.u32 %s31, 4
          %s547 = sadd.s32 %s546, %s32
          %549 = vsyncadd %s542, 0
          %s550 = smul.addr %s547, 8
          %s551 = smul.addr %s550, 8
          %s552 = scalar_lea.hbm %s5, %s551
          %s553 = sshll.u32 %s552, 4
          %s554 = int_to_ptr.hbm [resolvable:$true] %s553
          %s555 = sshll.u32 %s545, 4
          %s556 = int_to_ptr.vmem [resolvable:$true] %s555
          %561 = dma.hbm_to_vmem [thread:$0]  %s554, 1024, %s556, %s542, 128, 128, 8
        $region40: #{tpu_custom_call.1} parent=27 // pred_fallthru
          _
        // Predicated region
        $region41: #{tpu_custom_call.1} parent=27 // pred_check
          %p562 = pneg %p209
        $region42: #{tpu_custom_call.1} parent=27 // pred_check_branch
          %564 = sbr.rel (%p562) target = $region44
        $region43: #{tpu_custom_call.1} parent=27 // pred_region
          %s565 = sand.u32 %s24, 1
          %s566 = scalar_lea.sflag [#allocation8], %s565
          %s567 = sand.u32 %s199, 1
          %s568 = smul.addr %s567, 64
          %s569 = scalar_lea.vmem [#allocation13], %s568
          %s570 = smul.u32 %s31, 4
          %s571 = sadd.s32 %s570, %s32
          %573 = vsyncadd %s566, 0
          %s574 = smul.addr %s571, 8
          %s575 = smul.addr %s574, 8
          %s576 = scalar_lea.hbm %s6, %s575
          %s577 = sshll.u32 %s576, 4
          %s578 = int_to_ptr.hbm [resolvable:$true] %s577
          %s579 = sshll.u32 %s569, 4
          %s580 = int_to_ptr.vmem [resolvable:$true] %s579
          %585 = dma.hbm_to_vmem [thread:$0]  %s578, 1024, %s580, %s566, 128, 128, 8
        $region44: #{tpu_custom_call.1} parent=27 // pred_fallthru
          _
        // Predicated region
        $region45: #{tpu_custom_call.1} parent=27 // pred_check
          %p586 = pneg %p239
        $region46: #{tpu_custom_call.1} parent=27 // pred_check_branch
          %588 = sbr.rel (%p586) target = $region48
        $region47: #{tpu_custom_call.1} parent=27 // pred_region
          %s589 = smul.u32 %s31, 4
          %s590 = sadd.s32 %s589, %s32
          %p591 = scmp.lt.s32.totalorder %s590, 7
          %s592 = scalar_select %p591, %s590, 7
          %s593 = smul.addr %s592, 2
          %s594 = scalar_lea.vmem %s7, %s593
          %s595 = smul.u32 %s31, 4
          %s596 = sadd.s32 %s595, %s32
        $region48: #{tpu_custom_call.1} parent=27 // pred_fallthru
          _
        // Predicated region
        $region49: #{tpu_custom_call.1} parent=27 // pred_check
          %p597 = pneg %p269
        $region50: #{tpu_custom_call.1} parent=27 // pred_check_branch
          %599 = sbr.rel (%p597) target = $region52
        $region51: #{tpu_custom_call.1} parent=27 // pred_region
          %s600 = sand.u32 %s24, 1
          %s601 = scalar_lea.sflag [#allocation8], %s600
          %s602 = sand.u32 %s259, 1
          %s603 = smul.addr %s602, 2
          %s604 = scalar_lea.vmem [#allocation14], %s603
          %s605 = smul.u32 %s31, 4
          %s606 = sadd.s32 %s605, %s32
          %608 = vsyncadd %s601, 0
          %s609 = smul.addr %s606, 2
          %s610 = scalar_lea.hbm %s8, %s609
          %s612 = sshll.u32 %s610, 4
          %s613 = int_to_ptr.hbm [resolvable:$true] %s612
          %s614 = sshll.u32 %s604, 4
          %s615 = int_to_ptr.vmem [resolvable:$true] %s614
          %617 = dma.hbm_to_vmem [thread:$0]  %s613, 32, %s615, %s601
        $region52: #{tpu_custom_call.1} parent=27 // pred_fallthru
          _
        // Predicated region
        $region53: #{tpu_custom_call.1} parent=27 // pred_check
          %p618 = pneg %p299
        $region54: #{tpu_custom_call.1} parent=27 // pred_check_branch
          %620 = sbr.rel (%p618) target = $region56
        $region55: #{tpu_custom_call.1} parent=27 // pred_region
          %s621 = sand.u32 %s24, 1
          %s622 = scalar_lea.sflag [#allocation8], %s621
          %s623 = sand.u32 %s289, 1
          %s624 = smul.addr %s623, 64
          %s625 = scalar_lea.vmem [#allocation15], %s624
          %s626 = smul.u32 %s31, 4
          %s627 = sadd.s32 %s626, %s32
          %629 = vsyncadd %s622, 0
          %s630 = smul.addr %s627, 8
          %s631 = smul.addr %s630, 8
          %s632 = scalar_lea.hbm %s9, %s631
          %s633 = sshll.u32 %s632, 4
          %s634 = int_to_ptr.hbm [resolvable:$true] %s633
          %s635 = sshll.u32 %s625, 4
          %s636 = int_to_ptr.vmem [resolvable:$true] %s635
          %641 = dma.hbm_to_vmem [thread:$0]  %s634, 1024, %s636, %s622, 128, 128, 8
        $region56: #{tpu_custom_call.1} parent=27 // pred_fallthru
          _
        // Predicated region
        $region57: #{tpu_custom_call.1} parent=27 // pred_check
          %p642 = pneg %p329
        $region58: #{tpu_custom_call.1} parent=27 // pred_check_branch
          %644 = sbr.rel (%p642) target = $region60
        $region59: #{tpu_custom_call.1} parent=27 // pred_region
          %s645 = sand.u32 %s24, 1
          %s646 = scalar_lea.sflag [#allocation8], %s645
          %s647 = sand.u32 %s319, 1
          %s648 = smul.addr %s647, 64
          %s649 = scalar_lea.vmem [#allocation16], %s648
          %s650 = smul.u32 %s31, 4
          %s651 = sadd.s32 %s650, %s32
          %653 = vsyncadd %s646, 0
          %s654 = smul.addr %s651, 8
          %s655 = smul.addr %s654, 8
          %s656 = scalar_lea.hbm %s10, %s655
          %s657 = sshll.u32 %s656, 4
          %s658 = int_to_ptr.hbm [resolvable:$true] %s657
          %s659 = sshll.u32 %s649, 4
          %s660 = int_to_ptr.vmem [resolvable:$true] %s659
          %665 = dma.hbm_to_vmem [thread:$0]  %s658, 1024, %s660, %s646, 128, 128, 8
        $region60: #{tpu_custom_call.1} parent=27 // pred_fallthru
          _
        // Predicated region
        $region61: #{tpu_custom_call.1} parent=27 // pred_check
          %p666 = pneg %p359
        $region62: #{tpu_custom_call.1} parent=27 // pred_check_branch
          %668 = sbr.rel (%p666) target = $region64
        $region63: #{tpu_custom_call.1} parent=27 // pred_region
          %s669 = sand.u32 %s24, 1
          %s670 = scalar_lea.sflag [#allocation8], %s669
          %s671 = sand.u32 %s349, 1
          %s672 = smul.addr %s671, 64
          %s673 = scalar_lea.vmem [#allocation17], %s672
          %s674 = smul.u32 %s31, 4
          %s675 = sadd.s32 %s674, %s32
          %677 = vsyncadd %s670, 0
          %s678 = smul.addr %s675, 8
          %s679 = smul.addr %s678, 8
          %s680 = scalar_lea.hbm %s11, %s679
          %s681 = sshll.u32 %s680, 4
          %s682 = int_to_ptr.hbm [resolvable:$true] %s681
          %s683 = sshll.u32 %s673, 4
          %s684 = int_to_ptr.vmem [resolvable:$true] %s683
          %689 = dma.hbm_to_vmem [thread:$0]  %s682, 1024, %s684, %s670, 128, 128, 8
        $region64: #{tpu_custom_call.1} parent=27 // pred_fallthru
          _
        // Predicated region
        $region65: #{tpu_custom_call.1} parent=27 // pred_check
          %p690 = pneg %p389
        $region66: #{tpu_custom_call.1} parent=27 // pred_check_branch
          %692 = sbr.rel (%p690) target = $region68
        $region67: #{tpu_custom_call.1} parent=27 // pred_region
          %s693 = sand.u32 %s24, 1
          %s694 = scalar_lea.sflag [#allocation8], %s693
          %s695 = sand.u32 %s379, 1
          %s696 = smul.addr %s695, 2
          %s697 = scalar_lea.vmem [#allocation18], %s696
          %s698 = smul.u32 %s31, 4
          %s699 = sadd.s32 %s698, %s32
          %701 = vsyncadd %s694, 0
          %s702 = smul.addr %s699, 2
          %s703 = scalar_lea.hbm %s12, %s702
          %s705 = sshll.u32 %s703, 4
          %s706 = int_to_ptr.hbm [resolvable:$true] %s705
          %s707 = sshll.u32 %s697, 4
          %s708 = int_to_ptr.vmem [resolvable:$true] %s707
          %710 = dma.hbm_to_vmem [thread:$0]  %s706, 32, %s708, %s694
        $region68: #{tpu_custom_call.1} parent=27 // pred_fallthru
          _
        // Predicated region
        $region69: #{tpu_custom_call.1} parent=27 // pred_check
          %p711 = pneg %p419
        $region70: #{tpu_custom_call.1} parent=27 // pred_check_branch
          %713 = sbr.rel (%p711) target = $region72
        $region71: #{tpu_custom_call.1} parent=27 // pred_region
          %s714 = sand.u32 %s24, 1
          %s715 = scalar_lea.sflag [#allocation8], %s714
          %s716 = sand.u32 %s409, 1
          %s717 = smul.addr %s716, 2
          %s718 = scalar_lea.vmem [#allocation19], %s717
          %s719 = smul.u32 %s31, 4
          %s720 = sadd.s32 %s719, %s32
          %722 = vsyncadd %s715, 0
          %s723 = smul.addr %s720, 2
          %s724 = scalar_lea.hbm %s13, %s723
          %s726 = sshll.u32 %s724, 4
          %s727 = int_to_ptr.hbm [resolvable:$true] %s726
          %s728 = sshll.u32 %s718, 4
          %s729 = int_to_ptr.vmem [resolvable:$true] %s728
          %731 = dma.hbm_to_vmem [thread:$0]  %s727, 32, %s729, %s715
        $region72: #{tpu_custom_call.1} parent=27 // pred_fallthru
          _
      $region28: #{tpu_custom_call.1} parent=5 // pred_fallthru
        _
      %p732 = scmp.le.s32.totalorder 1, %s24
      %p733 = scmp.lt.s32.totalorder %s24, 9
      %p734 = pnand %p732, %p733
      %p735 = pneg %p734
      // Predicated region
      $region73: #{tpu_custom_call.1} parent=5 // pred_check
        _
      $region74: #{tpu_custom_call.1} parent=5 // pred_check_branch
        %737 = sbr.rel (%p734) target = $region76
      $region75: #{tpu_custom_call.1} parent=5 // pred_region
        %s738 = ssub.s32 %s24, 1
        %s739 = sand.u32 %s29, 1
        %s740 = scalar_lea.sflag [#allocation8], %s739
        %s741 = sand.u32 %s70, 1
        %s742 = smul.addr %s741, 16
        %s743 = scalar_lea.vmem [#allocation7], %s742
        // Predicated region
        $region77: #{tpu_custom_call.1} parent=75 // pred_check
          %p744 = pneg %p83
        $region78: #{tpu_custom_call.1} parent=75 // pred_check_branch
          %746 = sbr.rel (%p744) target = $region80
        $region79: #{tpu_custom_call.1} parent=75 // pred_region
          %748 = dma.done %s740, 256
        $region80: #{tpu_custom_call.1} parent=75 // pred_fallthru
          _
        // Predicated region
        $region81: #{tpu_custom_call.1} parent=75 // pred_check
          %p749 = pneg %p125
        $region82: #{tpu_custom_call.1} parent=75 // pred_check_branch
          %751 = sbr.rel (%p749) target = $region84
        $region83: #{tpu_custom_call.1} parent=75 // pred_region
          %753 = dma.done [#allocation10], 16
        $region84: #{tpu_custom_call.1} parent=75 // pred_fallthru
          _
        %s754 = sand.u32 %s29, 1
        %s755 = scalar_lea.sflag [#allocation8], %s754
        %s756 = sand.u32 %s142, 1
        %s757 = smul.addr %s756, 8
        %s758 = scalar_lea.vmem [#allocation11], %s757
        // Predicated region
        $region85: #{tpu_custom_call.1} parent=75 // pred_check
          %p759 = pneg %p155
        $region86: #{tpu_custom_call.1} parent=75 // pred_check_branch
          %761 = sbr.rel (%p759) target = $region88
        $region87: #{tpu_custom_call.1} parent=75 // pred_region
          %763 = dma.done %s755, 128
        $region88: #{tpu_custom_call.1} parent=75 // pred_fallthru
          _
        %s764 = sand.u32 %s29, 1
        %s765 = scalar_lea.sflag [#allocation8], %s764
        %s766 = sand.u32 %s172, 1
        %s767 = smul.addr %s766, 64
        %s768 = scalar_lea.vmem [#allocation12], %s767
        // Predicated region
        $region89: #{tpu_custom_call.1} parent=75 // pred_check
          %p769 = pneg %p185
        $region90: #{tpu_custom_call.1} parent=75 // pred_check_branch
          %771 = sbr.rel (%p769) target = $region92
        $region91: #{tpu_custom_call.1} parent=75 // pred_region
          %773 = dma.done %s765, 1024
        $region92: #{tpu_custom_call.1} parent=75 // pred_fallthru
          _
        %s774 = sand.u32 %s29, 1
        %s775 = scalar_lea.sflag [#allocation8], %s774
        %s776 = sand.u32 %s202, 1
        %s777 = smul.addr %s776, 64
        %s778 = scalar_lea.vmem [#allocation13], %s777
        // Predicated region
        $region93: #{tpu_custom_call.1} parent=75 // pred_check
          %p779 = pneg %p215
        $region94: #{tpu_custom_call.1} parent=75 // pred_check_branch
          %781 = sbr.rel (%p779) target = $region96
        $region95: #{tpu_custom_call.1} parent=75 // pred_region
          %783 = dma.done %s775, 1024
        $region96: #{tpu_custom_call.1} parent=75 // pred_fallthru
          _
        %s784 = sand.u32 %s29, 1
        %s785 = scalar_lea.sflag [#allocation8], %s784
        %s786 = sand.u32 %s262, 1
        %s787 = smul.addr %s786, 2
        %s788 = scalar_lea.vmem [#allocation14], %s787
        // Predicated region
        $region97: #{tpu_custom_call.1} parent=75 // pred_check
          %p789 = pneg %p275
        $region98: #{tpu_custom_call.1} parent=75 // pred_check_branch
          %791 = sbr.rel (%p789) target = $region100
        $region99: #{tpu_custom_call.1} parent=75 // pred_region
          %793 = dma.done %s785, 32
        $region100: #{tpu_custom_call.1} parent=75 // pred_fallthru
          _
        %s794 = sand.u32 %s29, 1
        %s795 = scalar_lea.sflag [#allocation8], %s794
        %s796 = sand.u32 %s292, 1
        %s797 = smul.addr %s796, 64
        %s798 = scalar_lea.vmem [#allocation15], %s797
        // Predicated region
        $region101: #{tpu_custom_call.1} parent=75 // pred_check
          %p799 = pneg %p305
        $region102: #{tpu_custom_call.1} parent=75 // pred_check_branch
          %801 = sbr.rel (%p799) target = $region104
        $region103: #{tpu_custom_call.1} parent=75 // pred_region
          %803 = dma.done %s795, 1024
        $region104: #{tpu_custom_call.1} parent=75 // pred_fallthru
          _
        %s804 = sand.u32 %s29, 1
        %s805 = scalar_lea.sflag [#allocation8], %s804
        %s806 = sand.u32 %s322, 1
        %s807 = smul.addr %s806, 64
        %s808 = scalar_lea.vmem [#allocation16], %s807
        // Predicated region
        $region105: #{tpu_custom_call.1} parent=75 // pred_check
          %p809 = pneg %p335
        $region106: #{tpu_custom_call.1} parent=75 // pred_check_branch
          %811 = sbr.rel (%p809) target = $region108
        $region107: #{tpu_custom_call.1} parent=75 // pred_region
          %813 = dma.done %s805, 1024
        $region108: #{tpu_custom_call.1} parent=75 // pred_fallthru
          _
        %s814 = sand.u32 %s29, 1
        %s815 = scalar_lea.sflag [#allocation8], %s814
        %s816 = sand.u32 %s352, 1
        %s817 = smul.addr %s816, 64
        %s818 = scalar_lea.vmem [#allocation17], %s817
        // Predicated region
        $region109: #{tpu_custom_call.1} parent=75 // pred_check
          %p819 = pneg %p365
        $region110: #{tpu_custom_call.1} parent=75 // pred_check_branch
          %821 = sbr.rel (%p819) target = $region112
        $region111: #{tpu_custom_call.1} parent=75 // pred_region
          %823 = dma.done %s815, 1024
        $region112: #{tpu_custom_call.1} parent=75 // pred_fallthru
          _
        %s824 = sand.u32 %s29, 1
        %s825 = scalar_lea.sflag [#allocation8], %s824
        %s826 = sand.u32 %s382, 1
        %s827 = smul.addr %s826, 2
        %s828 = scalar_lea.vmem [#allocation18], %s827
        // Predicated region
        $region113: #{tpu_custom_call.1} parent=75 // pred_check
          %p829 = pneg %p395
        $region114: #{tpu_custom_call.1} parent=75 // pred_check_branch
          %831 = sbr.rel (%p829) target = $region116
        $region115: #{tpu_custom_call.1} parent=75 // pred_region
          %833 = dma.done %s825, 32
        $region116: #{tpu_custom_call.1} parent=75 // pred_fallthru
          _
        %s834 = sand.u32 %s29, 1
        %s835 = scalar_lea.sflag [#allocation8], %s834
        %s836 = sand.u32 %s412, 1
        %s837 = smul.addr %s836, 2
        %s838 = scalar_lea.vmem [#allocation19], %s837
        // Predicated region
        $region117: #{tpu_custom_call.1} parent=75 // pred_check
          %p839 = pneg %p425
        $region118: #{tpu_custom_call.1} parent=75 // pred_check_branch
          %841 = sbr.rel (%p839) target = $region120
        $region119: #{tpu_custom_call.1} parent=75 // pred_region
          %843 = dma.done %s835, 32
        $region120: #{tpu_custom_call.1} parent=75 // pred_fallthru
          _
        %p844 = pneg %p57
        %p845 = pneg %p54
        %s846 = sand.u32 %s29, 1
        %s847 = scalar_lea.sflag [#allocation8], %s846
        %s848 = sand.u32 %s70, 1
        %s849 = smul.addr %s848, 16
        %s850 = scalar_lea.vmem [#allocation7], %s849
        %p851 = pneg %p83
        %p852 = pneg %p80
        %p853 = pneg %p104
        %p854 = pneg %p101
        %p855 = pneg %p125
        %p856 = pneg %p122
        %s857 = sand.u32 %s29, 1
        %s858 = scalar_lea.sflag [#allocation8], %s857
        %s859 = sand.u32 %s142, 1
        %s860 = smul.addr %s859, 8
        %s861 = scalar_lea.vmem [#allocation11], %s860
        %p862 = pneg %p155
        %p863 = pneg %p152
        %s864 = sand.u32 %s29, 1
        %s865 = scalar_lea.sflag [#allocation8], %s864
        %s866 = sand.u32 %s172, 1
        %s867 = smul.addr %s866, 64
        %s868 = scalar_lea.vmem [#allocation12], %s867
        %p869 = pneg %p185
        %p870 = pneg %p182
        %s871 = sand.u32 %s29, 1
        %s872 = scalar_lea.sflag [#allocation8], %s871
        %s873 = sand.u32 %s202, 1
        %s874 = smul.addr %s873, 64
        %s875 = scalar_lea.vmem [#allocation13], %s874
        %p876 = pneg %p215
        %p877 = pneg %p212
        %s878 = smul.u32 %s33, 4
        %s879 = sadd.s32 %s878, %s34
        %p880 = scmp.lt.s32.totalorder %s879, 7
        %s881 = scalar_select %p880, %s879, 7
        %s882 = smul.addr %s881, 2
        %s883 = scalar_lea.vmem %s7, %s882
        %p884 = pneg %p245
        %p885 = pneg %p242
        %s886 = sand.u32 %s29, 1
        %s887 = scalar_lea.sflag [#allocation8], %s886
        %s888 = sand.u32 %s262, 1
        %s889 = smul.addr %s888, 2
        %s890 = scalar_lea.vmem [#allocation14], %s889
        %p891 = pneg %p275
        %p892 = pneg %p272
        %s893 = sand.u32 %s29, 1
        %s894 = scalar_lea.sflag [#allocation8], %s893
        %s895 = sand.u32 %s292, 1
        %s896 = smul.addr %s895, 64
        %s897 = scalar_lea.vmem [#allocation15], %s896
        %p898 = pneg %p305
        %p899 = pneg %p302
        %s900 = sand.u32 %s29, 1
        %s901 = scalar_lea.sflag [#allocation8], %s900
        %s902 = sand.u32 %s322, 1
        %s903 = smul.addr %s902, 64
        %s904 = scalar_lea.vmem [#allocation16], %s903
        %p905 = pneg %p335
        %p906 = pneg %p332
        %s907 = sand.u32 %s29, 1
        %s908 = scalar_lea.sflag [#allocation8], %s907
        %s909 = sand.u32 %s352, 1
        %s910 = smul.addr %s909, 64
        %s911 = scalar_lea.vmem [#allocation17], %s910
        %p912 = pneg %p365
        %p913 = pneg %p362
        %s914 = sand.u32 %s29, 1
        %s915 = scalar_lea.sflag [#allocation8], %s914
        %s916 = sand.u32 %s382, 1
        %s917 = smul.addr %s916, 2
        %s918 = scalar_lea.vmem [#allocation18], %s917
        %p919 = pneg %p395
        %p920 = pneg %p392
        %s921 = sand.u32 %s29, 1
        %s922 = scalar_lea.sflag [#allocation8], %s921
        %s923 = sand.u32 %s412, 1
        %s924 = smul.addr %s923, 2
        %s925 = scalar_lea.vmem [#allocation19], %s924
        %p926 = pneg %p425
        %p927 = pneg %p422
        %p928 = pneg %p455
        %p929 = pneg %p452
        %s930 = smul.u32 %s33, 4
        %s931 = sadd.s32 %s930, %s34
        %p932 = scmp.lt.s32.totalorder %s931, 7
        %s933 = scalar_select %p932, %s931, 7
        %s934 = smul.addr %s933, 8
        %s935 = scalar_lea.vmem %s14, %s934
        %s936 = smul.u32 %s33, 4
        %s937 = sadd.s32 %s936, %s34
        %s938 = smul.u32 %s33, 4
        %s939 = sadd.s32 %s938, %s34
        %s940 = smul.u32 %s33, 4
        %s941 = sadd.s32 %s940, %s34
        %s942 = smul.u32 %s33, 4
        %s943 = sadd.s32 %s942, %s34
        %p944 = scmp.lt.s32.totalorder %s943, 7
        %s945 = scalar_select %p944, %s943, 7
        %s946 = smul.addr %s945, 2
        %s947 = scalar_lea.vmem %s7, %s946
        %s948 = smul.u32 %s33, 4
        %s949 = sadd.s32 %s948, %s34
        %s950 = smul.u32 %s33, 4
        %s951 = sadd.s32 %s950, %s34
        %s952 = smul.u32 %s33, 4
        %s953 = sadd.s32 %s952, %s34
        %s954 = smul.u32 %s33, 4
        %s955 = sadd.s32 %s954, %s34
        %s956 = smul.u32 %s33, 4
        %s957 = sadd.s32 %s956, %s34
        %s958 = smul.u32 %s33, 4
        %s959 = sadd.s32 %s958, %s34
        %s960 = smul.u32 %s33, 4
        %s961 = sadd.s32 %s960, %s34
        %s962 = smul.u32 %s33, 4
        %s963 = sadd.s32 %s962, %s34
        %p964 = scmp.lt.s32.totalorder %s963, 7
        %s965 = scalar_select %p964, %s963, 7
        %s966 = smul.addr %s965, 8
        %s967 = scalar_lea.vmem %s14, %s966
        %s968 = smul.u32 %s33, 4
        %s969 = sadd.s32 %s968, %s34
        %p970 = scmp.eq.s32.totalorder %s34, 0
        // Predicated region
        $region121: #{tpu_custom_call.1} parent=75 // pred_check
          %p971 = pneg %p970
        $region122: #{tpu_custom_call.1} parent=75 // pred_check_branch
          %973 = sbr.rel (%p971) target = $region124
        $region123: #{tpu_custom_call.1} parent=75 // pred_region
          %v974 = vld [vmem:[%s743] sm:$0xff]
          %v975 = vld [vmem:[%s743 + $0x8] sm:$0xff]
          %vm976 = vcmask 261120
          %977 = vst.msk [vmem:[#allocation2] sm:$0xff] %vm976, %v974
          %978 = vst.msk [vmem:[#allocation2 + $0x8] sm:$0xff] %vm976, %v975
          %vm979 = vcmask 31744
          %980 = vst.msk [vmem:[#allocation3] sm:$0xff] %vm979, 0.0
        $region124: #{tpu_custom_call.1} parent=75 // pred_fallthru
          _
        %v981 = vld [vmem:[#allocation3] sm:$0xff]
        %v982 = vld [vmem:[#allocation2] sm:$0xff]
        %v983 = vld [vmem:[%s947] sm:$0x3]
        %v984 = vld [vmem:[%s788] sm:$0x3]
        %v985 = vld [vmem:[%s0] sm:$0xff]
        %vm986 = vcmask 64512
        %v988 = vsel %vm986, %v985, 0
        %990 = vmatpush.msra.mxu0 0.0
        %991 = vmatpush.msra.mxu0 0.0
        %992 = vmatpush.msra.mxu0 0.0
        %993 = vmatpush.msra.mxu0 0.0
        %994 = vmatpush.msra.mxu0 0.0
        %995 = vmatpush.msra.mxu0 0.0
        %996 = vmatpush.msra.mxu0 0.0
        %997 = vmatpush.msra.mxu0 0.0
        %998 = vmatpush.msra.mxu0 0.0
        %999 = vmatpush.msra.mxu0 0.0
        %1000 = vmatpush.msra.mxu0 0.0
        %1001 = vmatpush.msra.mxu0 0.0
        %1002 = vmatpush.msra.mxu0 0.0
        %1003 = vmatpush.msra.mxu0 0.0
        %1004 = vmatpush.msra.mxu0 0.0
        %1005 = vmatpush.msra.mxu0 %v981
        %1006 = vmatmul.f32.gmra.mxu0 %v988
        %v1007 = vpop.f32.mrf.mxu0
        %v1008 = vadd.f32 0.0, %v1007
        %1009 = vdwg.mxu0
        %1010 = vmatpush.msra.mxu0 0.0
        %1011 = vmatpush.msra.mxu0 0.0
        %1012 = vmatpush.msra.mxu0 0.0
        %1013 = vmatpush.msra.mxu0 0.0
        %1014 = vmatpush.msra.mxu0 0.0
        %1015 = vmatpush.msra.mxu0 0.0
        %1016 = vmatpush.msra.mxu0 0.0
        %1017 = vmatpush.msra.mxu0 0.0
        %1018 = vmatpush.msra.mxu0 0.0
        %1019 = vmatpush.msra.mxu0 0.0
        %1020 = vmatpush.msra.mxu0 0.0
        %1021 = vmatpush.msra.mxu0 0.0
        %1022 = vmatpush.msra.mxu0 0.0
        %1023 = vmatpush.msra.mxu0 0.0
        %1024 = vmatpush.msra.mxu0 0.0
        %1025 = vmatpush.msra.mxu0 %v982
        %1026 = vmatmul.f32.gmra.mxu0 %v988
        %v1027 = vpop.f32.mrf.mxu0
        %v1028 = vadd.f32 0.0, %v1027
        %1029 = vdwg.mxu0
        %v1030 = vld [vmem:[%s758] sm:$0x3]
        %s1031 = scalar_lea.vmem %s758, 2 [#allocation11]
        %v1032 = vld [vmem:[%s1031] sm:$0x3]
        %vm1033 = vcmask 15360
        %v1035 = vsel %vm1033, %v1008, 0
        %vm1037 = vcmask 1041408
        %v1039 = vsel %vm1037, %v1032, 0
        %1041 = vmatpush.msra.mxu0 0.0
        %1042 = vmatpush.msra.mxu0 0.0
        %1043 = vmatpush.msra.mxu0 0.0
        %1044 = vmatpush.msra.mxu0 0.0
        %1045 = vmatpush.msra.mxu0 0.0
        %1046 = vmatpush.msra.mxu0 0.0
        %1047 = vmatpush.msra.mxu0 0.0
        %1048 = vmatpush.msra.mxu0 0.0
        %1049 = vmatpush.msra.mxu0 0.0
        %1050 = vmatpush.msra.mxu0 0.0
        %1051 = vmatpush.msra.mxu0 0.0
        %1052 = vmatpush.msra.mxu0 0.0
        %1053 = vmatpush.msra.mxu0 0.0
        %1054 = vmatpush.msra.mxu0 0.0
        %1055 = vmatpush.msra.mxu0 0.0
        %1056 = vmatpush.msra.mxu0 %v1039
        %1057 = vmatmul.f32.gmra.mxu0 %v1035
        %v1058 = vpop.f32.mrf.mxu0
        %v1059 = vadd.f32 0.0, %v1058
        %1060 = vdwg.mxu0
        %v1062 = vsel %vm1033, %v981, 0
        %v1065 = vsel %vm1037, %v1030, 0
        %1067 = vmatpush.msra.mxu0 0.0
        %1068 = vmatpush.msra.mxu0 0.0
        %1069 = vmatpush.msra.mxu0 0.0
        %1070 = vmatpush.msra.mxu0 0.0
        %1071 = vmatpush.msra.mxu0 0.0
        %1072 = vmatpush.msra.mxu0 0.0
        %1073 = vmatpush.msra.mxu0 0.0
        %1074 = vmatpush.msra.mxu0 0.0
        %1075 = vmatpush.msra.mxu0 0.0
        %1076 = vmatpush.msra.mxu0 0.0
        %1077 = vmatpush.msra.mxu0 0.0
        %1078 = vmatpush.msra.mxu0 0.0
        %1079 = vmatpush.msra.mxu0 0.0
        %1080 = vmatpush.msra.mxu0 0.0
        %1081 = vmatpush.msra.mxu0 0.0
        %1082 = vmatpush.msra.mxu0 %v1065
        %1083 = vmatmul.f32.gmra.mxu0 %v1062
        %v1084 = vpop.f32.mrf.mxu0
        %v1085 = vadd.f32 %v1059, %v1084
        %1086 = vdwg.mxu0
        %v1087 = vld [vmem:[%s768] sm:$0xff]
        %v1088 = vld [vmem:[%s768 + $0x8] sm:$0xff]
        %vm1089 = vcmask 130048
        %v1091 = vsel %vm1089, %v982, 0
        %1093 = vmatpush.msra.mxu0 0.0
        %1094 = vmatpush.msra.mxu0 0.0
        %1095 = vmatpush.msra.mxu0 0.0
        %1096 = vmatpush.msra.mxu0 0.0
        %1097 = vmatpush.msra.mxu0 0.0
        %1098 = vmatpush.msra.mxu0 0.0
        %1099 = vmatpush.msra.mxu0 0.0
        %1100 = vmatpush.msra.mxu0 0.0
        %1101 = vmatpush.msra.mxu0 0.0
        %1102 = vmatpush.msra.mxu0 0.0
        %1103 = vmatpush.msra.mxu0 0.0
        %1104 = vmatpush.msra.mxu0 0.0
        %1105 = vmatpush.msra.mxu0 0.0
        %1106 = vmatpush.msra.mxu0 0.0
        %1107 = vmatpush.msra.mxu0 %v1088
        %1108 = vmatpush.msra.mxu0 %v1087
        %1109 = vmatmul.f32.gmra.mxu0 %v1091
        %v1110 = vpop.f32.mrf.mxu0
        %v1111 = vadd.f32 0.0, %v1110
        %1112 = vdwg.mxu0
        %v1113 = vadd.f32 %v1085, %v1111
        %s1114 = scalar_lea.vmem %s768, 16 [#allocation12]
        %v1115 = vld [vmem:[%s1114] sm:$0xff]
        %v1116 = vld [vmem:[%s1114 + $0x8] sm:$0xff]
        %v1118 = vsel %vm1089, %v1028, 0
        %1120 = vmatpush.msra.mxu0 0.0
        %1121 = vmatpush.msra.mxu0 0.0
        %1122 = vmatpush.msra.mxu0 0.0
        %1123 = vmatpush.msra.mxu0 0.0
        %1124 = vmatpush.msra.mxu0 0.0
        %1125 = vmatpush.msra.mxu0 0.0
        %1126 = vmatpush.msra.mxu0 0.0
        %1127 = vmatpush.msra.mxu0 0.0
        %1128 = vmatpush.msra.mxu0 0.0
        %1129 = vmatpush.msra.mxu0 0.0
        %1130 = vmatpush.msra.mxu0 0.0
        %1131 = vmatpush.msra.mxu0 0.0
        %1132 = vmatpush.msra.mxu0 0.0
        %1133 = vmatpush.msra.mxu0 0.0
        %1134 = vmatpush.msra.mxu0 %v1116
        %1135 = vmatpush.msra.mxu0 %v1115
        %1136 = vmatmul.f32.gmra.mxu0 %v1118
        %v1137 = vpop.f32.mrf.mxu0
        %v1138 = vadd.f32 0.0, %v1137
        %1139 = vdwg.mxu0
        %v1140 = vadd.f32 %v1113, %v1138
        %v1141 = vperm.slane %v983, 0
        %v1142 = vadd.f32 %v1140, %v1141
        %v1143 = vxor.u32 %v1142, 2147483648
        %v1144 = vmul.f32 %v1143, 1.442695
        %v1145 = vpow.pop %v1144
        %v1146 = vadd.f32 %v1145, 1.0
        %v1147 = vrcp.pop %v1146
        %v1148 = vmul.f32 %v1146, %v1147
        %v1149 = vsub.f32 1.0, %v1148
        %v1150 = vmul.f32 %v1147, %v1149
        %v1151 = vadd.f32 %v1147, %v1150
        %vm1152 = vweird.f32 %v1146
        %vm1153 = vweird.f32 %v1147
        %vm1154 = vmor %vm1152, %vm1153
        %v1155 = vsel %vm1154, %v1147, %v1151
        %v1156 = vand.u32 2147483647, %v1146
        %vm1157 = vcmp.eq.f32.partialorder %v1156, 8.507059e+37
        %v1158 = vand.u32 %v1146, 2147483648
        %v1159 = vor.u32 1.1754944e-38, %v1158
        %v1160 = vsel %vm1157, %v1159, %v1155
        %v1161 = vmul.f32 1.0, %v1160
        %1163 = vrot.lane.b32.xlu0 %v1161, 112
        %v1164 = vpop.permute.xlu0 %1163
        %1166 = vst.msk [vmem:[#allocation5] sm:$0xff] %vm1089, %v1164
        %1168 = vrot.lane.b32.xlu0 %v1085, 96
        %v1169 = vpop.permute.xlu0 %1168
        %1171 = vst.msk [vmem:[#allocation6] sm:$0xff] %vm1089, %v1169
        %v1172 = vmul.f32 %v1161, %v982
        %1173 = vst.msk [vmem:[#allocation4] sm:$0xff] %vm1089, %v1172
        %s1174 = scalar_lea.vmem %s758, 4 [#allocation11]
        %v1175 = vld [vmem:[%s1174] sm:$0x3]
        %s1176 = scalar_lea.vmem %s758, 6 [#allocation11]
        %v1177 = vld [vmem:[%s1176] sm:$0x3]
        %1178 = vrot.lane.b32.xlu0 %v1008, 126
        %v1179 = vpop.permute.xlu0 %1178
        %v1180 = vsel %vm1033, %v1179, 0
        %v1183 = vsel %vm1037, %v1177, 0
        %1185 = vmatpush.msra.mxu0 0.0
        %1186 = vmatpush.msra.mxu0 0.0
        %1187 = vmatpush.msra.mxu0 0.0
        %1188 = vmatpush.msra.mxu0 0.0
        %1189 = vmatpush.msra.mxu0 0.0
        %1190 = vmatpush.msra.mxu0 0.0
        %1191 = vmatpush.msra.mxu0 0.0
        %1192 = vmatpush.msra.mxu0 0.0
        %1193 = vmatpush.msra.mxu0 0.0
        %1194 = vmatpush.msra.mxu0 0.0
        %1195 = vmatpush.msra.mxu0 0.0
        %1196 = vmatpush.msra.mxu0 0.0
        %1197 = vmatpush.msra.mxu0 0.0
        %1198 = vmatpush.msra.mxu0 0.0
        %1199 = vmatpush.msra.mxu0 0.0
        %1200 = vmatpush.msra.mxu0 %v1183
        %1201 = vmatmul.f32.gmra.mxu0 %v1180
        %v1202 = vpop.f32.mrf.mxu0
        %v1203 = vadd.f32 0.0, %v1202
        %1204 = vdwg.mxu0
        %1205 = vrot.lane.b32.xlu0 %v981, 126
        %v1206 = vpop.permute.xlu0 %1205
        %v1207 = vsel %vm1033, %v1206, 0
        %v1210 = vsel %vm1037, %v1175, 0
        %1212 = vmatpush.msra.mxu0 0.0
        %1213 = vmatpush.msra.mxu0 0.0
        %1214 = vmatpush.msra.mxu0 0.0
        %1215 = vmatpush.msra.mxu0 0.0
        %1216 = vmatpush.msra.mxu0 0.0
        %1217 = vmatpush.msra.mxu0 0.0
        %1218 = vmatpush.msra.mxu0 0.0
        %1219 = vmatpush.msra.mxu0 0.0
        %1220 = vmatpush.msra.mxu0 0.0
        %1221 = vmatpush.msra.mxu0 0.0
        %1222 = vmatpush.msra.mxu0 0.0
        %1223 = vmatpush.msra.mxu0 0.0
        %1224 = vmatpush.msra.mxu0 0.0
        %1225 = vmatpush.msra.mxu0 0.0
        %1226 = vmatpush.msra.mxu0 0.0
        %1227 = vmatpush.msra.mxu0 %v1210
        %1228 = vmatmul.f32.gmra.mxu0 %v1207
        %v1229 = vpop.f32.mrf.mxu0
        %v1230 = vadd.f32 %v1203, %v1229
        %1231 = vdwg.mxu0
        %s1232 = scalar_lea.vmem %s768, 32 [#allocation12]
        %v1233 = vld [vmem:[%s1232] sm:$0xff]
        %v1234 = vld [vmem:[%s1232 + $0x8] sm:$0xff]
        %1235 = vrot.lane.b32.xlu0 %v982, 112
        %v1236 = vpop.permute.xlu0 %1235
        %v1237 = vsel %vm1089, %v1236, 0
        %1239 = vmatpush.msra.mxu0 0.0
        %1240 = vmatpush.msra.mxu0 0.0
        %1241 = vmatpush.msra.mxu0 0.0
        %1242 = vmatpush.msra.mxu0 0.0
        %1243 = vmatpush.msra.mxu0 0.0
        %1244 = vmatpush.msra.mxu0 0.0
        %1245 = vmatpush.msra.mxu0 0.0
        %1246 = vmatpush.msra.mxu0 0.0
        %1247 = vmatpush.msra.mxu0 0.0
        %1248 = vmatpush.msra.mxu0 0.0
        %1249 = vmatpush.msra.mxu0 0.0
        %1250 = vmatpush.msra.mxu0 0.0
        %1251 = vmatpush.msra.mxu0 0.0
        %1252 = vmatpush.msra.mxu0 0.0
        %1253 = vmatpush.msra.mxu0 %v1234
        %1254 = vmatpush.msra.mxu0 %v1233
        %1255 = vmatmul.f32.gmra.mxu0 %v1237
        %v1256 = vpop.f32.mrf.mxu0
        %v1257 = vadd.f32 0.0, %v1256
        %1258 = vdwg.mxu0
        %v1259 = vadd.f32 %v1230, %v1257
        %s1260 = scalar_lea.vmem %s768, 48 [#allocation12]
        %v1261 = vld [vmem:[%s1260] sm:$0xff]
        %v1262 = vld [vmem:[%s1260 + $0x8] sm:$0xff]
        %1263 = vrot.lane.b32.xlu0 %v1028, 112
        %v1264 = vpop.permute.xlu0 %1263
        %v1265 = vsel %vm1089, %v1264, 0
        %1267 = vmatpush.msra.mxu0 0.0
        %1268 = vmatpush.msra.mxu0 0.0
        %1269 = vmatpush.msra.mxu0 0.0
        %1270 = vmatpush.msra.mxu0 0.0
        %1271 = vmatpush.msra.mxu0 0.0
        %1272 = vmatpush.msra.mxu0 0.0
        %1273 = vmatpush.msra.mxu0 0.0
        %1274 = vmatpush.msra.mxu0 0.0
        %1275 = vmatpush.msra.mxu0 0.0
        %1276 = vmatpush.msra.mxu0 0.0
        %1277 = vmatpush.msra.mxu0 0.0
        %1278 = vmatpush.msra.mxu0 0.0
        %1279 = vmatpush.msra.mxu0 0.0
        %1280 = vmatpush.msra.mxu0 0.0
        %1281 = vmatpush.msra.mxu0 %v1262
        %1282 = vmatpush.msra.mxu0 %v1261
        %1283 = vmatmul.f32.gmra.mxu0 %v1265
        %v1284 = vpop.f32.mrf.mxu0
        %v1285 = vadd.f32 0.0, %v1284
        %1286 = vdwg.mxu0
        %v1287 = vadd.f32 %v1259, %v1285
        %v1288 = vperm.slane %v983, 1
        %v1289 = vadd.f32 %v1287, %v1288
        %v1290 = vxor.u32 %v1289, 2147483648
        %v1291 = vmul.f32 %v1290, 1.442695
        %v1292 = vpow.pop %v1291
        %v1293 = vadd.f32 %v1292, 1.0
        %v1294 = vrcp.pop %v1293
        %v1295 = vmul.f32 %v1293, %v1294
        %v1296 = vsub.f32 1.0, %v1295
        %v1297 = vmul.f32 %v1294, %v1296
        %v1298 = vadd.f32 %v1294, %v1297
        %vm1299 = vweird.f32 %v1293
        %vm1300 = vweird.f32 %v1294
        %vm1301 = vmor %vm1299, %vm1300
        %v1302 = vsel %vm1301, %v1294, %v1298
        %v1303 = vand.u32 2147483647, %v1293
        %vm1304 = vcmp.eq.f32.partialorder %v1303, 8.507059e+37
        %v1305 = vand.u32 %v1293, 2147483648
        %v1306 = vor.u32 1.1754944e-38, %v1305
        %v1307 = vsel %vm1304, %v1306, %v1302
        %v1308 = vmul.f32 1.0, %v1307
        %vm1309 = vcmask 261248
        %1310 = vst.msk [vmem:[#allocation5] sm:$0xff] %vm1309, %v1308
        %1312 = vrot.lane.b32.xlu0 %v1230, 112
        %v1313 = vpop.permute.xlu0 %1312
        %1315 = vst.msk [vmem:[#allocation6] sm:$0xff] %vm1309, %v1313
        %v1317 = vmul.f32 %v1308, %v1236
        %1319 = vrot.lane.b32.xlu0 %v1317, 16
        %v1320 = vpop.permute.xlu0 %1319
        %1322 = vst.msk [vmem:[#allocation4] sm:$0xff] %vm1309, %v1320
        %v1323 = vld [vmem:[#allocation4] sm:$0xff]
        %v1324 = vld [vmem:[%s0] sm:$0xff]
        %v1326 = vsel %vm986, %v1324, 0
        %1328 = vmatpush.msra.mxu0 0.0
        %1329 = vmatpush.msra.mxu0 0.0
        %1330 = vmatpush.msra.mxu0 0.0
        %1331 = vmatpush.msra.mxu0 0.0
        %1332 = vmatpush.msra.mxu0 0.0
        %1333 = vmatpush.msra.mxu0 0.0
        %1334 = vmatpush.msra.mxu0 0.0
        %1335 = vmatpush.msra.mxu0 0.0
        %1336 = vmatpush.msra.mxu0 0.0
        %1337 = vmatpush.msra.mxu0 0.0
        %1338 = vmatpush.msra.mxu0 0.0
        %1339 = vmatpush.msra.mxu0 0.0
        %1340 = vmatpush.msra.mxu0 0.0
        %1341 = vmatpush.msra.mxu0 0.0
        %1342 = vmatpush.msra.mxu0 0.0
        %1343 = vmatpush.msra.mxu0 %v1323
        %1344 = vmatmul.f32.gmra.mxu0 %v1326
        %v1345 = vpop.f32.mrf.mxu0
        %v1346 = vadd.f32 0.0, %v1345
        %1347 = vdwg.mxu0
        %v1348 = vld [vmem:[#allocation6] sm:$0xff]
        %v1349 = vld [vmem:[%s778] sm:$0xff]
        %v1350 = vld [vmem:[%s778 + $0x8] sm:$0xff]
        %v1352 = vsel %vm1089, %v1323, 0
        %1354 = vmatpush.msra.mxu0 0.0
        %1355 = vmatpush.msra.mxu0 0.0
        %1356 = vmatpush.msra.mxu0 0.0
        %1357 = vmatpush.msra.mxu0 0.0
        %1358 = vmatpush.msra.mxu0 0.0
        %1359 = vmatpush.msra.mxu0 0.0
        %1360 = vmatpush.msra.mxu0 0.0
        %1361 = vmatpush.msra.mxu0 0.0
        %1362 = vmatpush.msra.mxu0 0.0
        %1363 = vmatpush.msra.mxu0 0.0
        %1364 = vmatpush.msra.mxu0 0.0
        %1365 = vmatpush.msra.mxu0 0.0
        %1366 = vmatpush.msra.mxu0 0.0
        %1367 = vmatpush.msra.mxu0 0.0
        %1368 = vmatpush.msra.mxu0 %v1350
        %1369 = vmatpush.msra.mxu0 %v1349
        %1370 = vmatmul.f32.gmra.mxu0 %v1352
        %v1371 = vpop.f32.mrf.mxu0
        %v1372 = vadd.f32 0.0, %v1371
        %1373 = vdwg.mxu0
        %v1374 = vadd.f32 %v1348, %v1372
        %s1375 = scalar_lea.vmem %s778, 16 [#allocation13]
        %v1376 = vld [vmem:[%s1375] sm:$0xff]
        %v1377 = vld [vmem:[%s1375 + $0x8] sm:$0xff]
        %v1379 = vsel %vm1089, %v1346, 0
        %1381 = vmatpush.msra.mxu0 0.0
        %1382 = vmatpush.msra.mxu0 0.0
        %1383 = vmatpush.msra.mxu0 0.0
        %1384 = vmatpush.msra.mxu0 0.0
        %1385 = vmatpush.msra.mxu0 0.0
        %1386 = vmatpush.msra.mxu0 0.0
        %1387 = vmatpush.msra.mxu0 0.0
        %1388 = vmatpush.msra.mxu0 0.0
        %1389 = vmatpush.msra.mxu0 0.0
        %1390 = vmatpush.msra.mxu0 0.0
        %1391 = vmatpush.msra.mxu0 0.0
        %1392 = vmatpush.msra.mxu0 0.0
        %1393 = vmatpush.msra.mxu0 0.0
        %1394 = vmatpush.msra.mxu0 0.0
        %1395 = vmatpush.msra.mxu0 %v1377
        %1396 = vmatpush.msra.mxu0 %v1376
        %1397 = vmatmul.f32.gmra.mxu0 %v1379
        %v1398 = vpop.f32.mrf.mxu0
        %v1399 = vadd.f32 0.0, %v1398
        %1400 = vdwg.mxu0
        %v1401 = vadd.f32 %v1374, %v1399
        %v1402 = vperm.slane %v984, 0
        %v1403 = vadd.f32 %v1401, %v1402
        %v1404 = vtanh.pop %v1403
        %v1405 = vld [vmem:[#allocation5] sm:$0xff]
        %v1406 = vmul.f32 %v1405, %v982
        %v1407 = vsub.f32 1.0, %v1405
        %v1408 = vmul.f32 %v1407, %v1404
        %v1409 = vadd.f32 %v1406, %v1408
        %1410 = vst.msk [vmem:[#allocation2] sm:$0xff] %vm1089, %v1409
        %v1411 = vld [vmem:[#allocation6] sm:$0xff]
        %s1412 = scalar_lea.vmem %s778, 32 [#allocation13]
        %v1413 = vld [vmem:[%s1412] sm:$0xff]
        %v1414 = vld [vmem:[%s1412 + $0x8] sm:$0xff]
        %1415 = vrot.lane.b32.xlu0 %v1323, 112
        %v1416 = vpop.permute.xlu0 %1415
        %v1417 = vsel %vm1089, %v1416, 0
        %1419 = vmatpush.msra.mxu0 0.0
        %1420 = vmatpush.msra.mxu0 0.0
        %1421 = vmatpush.msra.mxu0 0.0
        %1422 = vmatpush.msra.mxu0 0.0
        %1423 = vmatpush.msra.mxu0 0.0
        %1424 = vmatpush.msra.mxu0 0.0
        %1425 = vmatpush.msra.mxu0 0.0
        %1426 = vmatpush.msra.mxu0 0.0
        %1427 = vmatpush.msra.mxu0 0.0
        %1428 = vmatpush.msra.mxu0 0.0
        %1429 = vmatpush.msra.mxu0 0.0
        %1430 = vmatpush.msra.mxu0 0.0
        %1431 = vmatpush.msra.mxu0 0.0
        %1432 = vmatpush.msra.mxu0 0.0
        %1433 = vmatpush.msra.mxu0 %v1414
        %1434 = vmatpush.msra.mxu0 %v1413
        %1435 = vmatmul.f32.gmra.mxu0 %v1417
        %v1436 = vpop.f32.mrf.mxu0
        %v1437 = vadd.f32 0.0, %v1436
        %1438 = vdwg.mxu0
        %1440 = vrot.lane.b32.xlu0 %v1437, 16
        %v1441 = vpop.permute.xlu0 %1440
        %v1443 = vadd.f32 %v1411, %v1441
        %s1444 = scalar_lea.vmem %s778, 48 [#allocation13]
        %v1445 = vld [vmem:[%s1444] sm:$0xff]
        %v1446 = vld [vmem:[%s1444 + $0x8] sm:$0xff]
        %1447 = vrot.lane.b32.xlu0 %v1346, 112
        %v1448 = vpop.permute.xlu0 %1447
        %v1449 = vsel %vm1089, %v1448, 0
        %1451 = vmatpush.msra.mxu0 0.0
        %1452 = vmatpush.msra.mxu0 0.0
        %1453 = vmatpush.msra.mxu0 0.0
        %1454 = vmatpush.msra.mxu0 0.0
        %1455 = vmatpush.msra.mxu0 0.0
        %1456 = vmatpush.msra.mxu0 0.0
        %1457 = vmatpush.msra.mxu0 0.0
        %1458 = vmatpush.msra.mxu0 0.0
        %1459 = vmatpush.msra.mxu0 0.0
        %1460 = vmatpush.msra.mxu0 0.0
        %1461 = vmatpush.msra.mxu0 0.0
        %1462 = vmatpush.msra.mxu0 0.0
        %1463 = vmatpush.msra.mxu0 0.0
        %1464 = vmatpush.msra.mxu0 0.0
        %1465 = vmatpush.msra.mxu0 %v1446
        %1466 = vmatpush.msra.mxu0 %v1445
        %1467 = vmatmul.f32.gmra.mxu0 %v1449
        %v1468 = vpop.f32.mrf.mxu0
        %v1469 = vadd.f32 0.0, %v1468
        %1470 = vdwg.mxu0
        %1472 = vrot.lane.b32.xlu0 %v1469, 16
        %v1473 = vpop.permute.xlu0 %1472
        %v1475 = vadd.f32 %v1443, %v1473
        %v1476 = vperm.slane %v984, 1
        %1478 = vrot.lane.b32.xlu0 %v1476, 16
        %v1479 = vpop.permute.xlu0 %1478
        %v1481 = vadd.f32 %v1475, %v1479
        %v1482 = vtanh.pop %v1481
        %v1483 = vld [vmem:[#allocation5] sm:$0xff]
        %v1484 = vmul.f32 %v1483, %v982
        %v1485 = vsub.f32 1.0, %v1483
        %v1486 = vmul.f32 %v1485, %v1482
        %v1487 = vadd.f32 %v1484, %v1486
        %1488 = vst.msk [vmem:[#allocation2] sm:$0xff] %vm1309, %v1487
        %v1489 = vld [vmem:[#allocation2] sm:$0xff]
        %s1490 = scalar_lea.vmem [#allocation2], 8
        %v1491 = vld [vmem:[%s1490] sm:$0xff]
        %v1492 = vld [vmem:[%s828] sm:$0x3]
        %v1493 = vld [vmem:[%s838] sm:$0x3]
        %v1494 = vld [vmem:[%s0] sm:$0xff]
        %v1496 = vsel %vm986, %v1494, 0
        %1498 = vmatpush.msra.mxu0 0.0
        %1499 = vmatpush.msra.mxu0 0.0
        %1500 = vmatpush.msra.mxu0 0.0
        %1501 = vmatpush.msra.mxu0 0.0
        %1502 = vmatpush.msra.mxu0 0.0
        %1503 = vmatpush.msra.mxu0 0.0
        %1504 = vmatpush.msra.mxu0 0.0
        %1505 = vmatpush.msra.mxu0 0.0
        %1506 = vmatpush.msra.mxu0 0.0
        %1507 = vmatpush.msra.mxu0 0.0
        %1508 = vmatpush.msra.mxu0 0.0
        %1509 = vmatpush.msra.mxu0 0.0
        %1510 = vmatpush.msra.mxu0 0.0
        %1511 = vmatpush.msra.mxu0 0.0
        %1512 = vmatpush.msra.mxu0 0.0
        %1513 = vmatpush.msra.mxu0 %v1489
        %1514 = vmatmul.f32.gmra.mxu0 %v1496
        %v1515 = vpop.f32.mrf.mxu0
        %v1516 = vadd.f32 0.0, %v1515
        %1517 = vdwg.mxu0
        %1518 = vmatpush.msra.mxu0 0.0
        %1519 = vmatpush.msra.mxu0 0.0
        %1520 = vmatpush.msra.mxu0 0.0
        %1521 = vmatpush.msra.mxu0 0.0
        %1522 = vmatpush.msra.mxu0 0.0
        %1523 = vmatpush.msra.mxu0 0.0
        %1524 = vmatpush.msra.mxu0 0.0
        %1525 = vmatpush.msra.mxu0 0.0
        %1526 = vmatpush.msra.mxu0 0.0
        %1527 = vmatpush.msra.mxu0 0.0
        %1528 = vmatpush.msra.mxu0 0.0
        %1529 = vmatpush.msra.mxu0 0.0
        %1530 = vmatpush.msra.mxu0 0.0
        %1531 = vmatpush.msra.mxu0 0.0
        %1532 = vmatpush.msra.mxu0 0.0
        %1533 = vmatpush.msra.mxu0 %v1491
        %1534 = vmatmul.f32.gmra.mxu0 %v1496
        %v1535 = vpop.f32.mrf.mxu0
        %v1536 = vadd.f32 0.0, %v1535
        %1537 = vdwg.mxu0
        %v1538 = vld [vmem:[%s798] sm:$0xff]
        %v1539 = vld [vmem:[%s798 + $0x8] sm:$0xff]
        %s1540 = scalar_lea.vmem %s798, 16 [#allocation15]
        %v1541 = vld [vmem:[%s1540] sm:$0xff]
        %v1542 = vld [vmem:[%s1540 + $0x8] sm:$0xff]
        %v1544 = vsel %vm1089, %v1516, 0
        %1546 = vmatpush.msra.mxu0 0.0
        %1547 = vmatpush.msra.mxu0 0.0
        %1548 = vmatpush.msra.mxu0 0.0
        %1549 = vmatpush.msra.mxu0 0.0
        %1550 = vmatpush.msra.mxu0 0.0
        %1551 = vmatpush.msra.mxu0 0.0
        %1552 = vmatpush.msra.mxu0 0.0
        %1553 = vmatpush.msra.mxu0 0.0
        %1554 = vmatpush.msra.mxu0 0.0
        %1555 = vmatpush.msra.mxu0 0.0
        %1556 = vmatpush.msra.mxu0 0.0
        %1557 = vmatpush.msra.mxu0 0.0
        %1558 = vmatpush.msra.mxu0 0.0
        %1559 = vmatpush.msra.mxu0 0.0
        %1560 = vmatpush.msra.mxu0 %v1542
        %1561 = vmatpush.msra.mxu0 %v1541
        %1562 = vmatmul.f32.gmra.mxu0 %v1544
        %v1563 = vpop.f32.mrf.mxu0
        %v1564 = vadd.f32 0.0, %v1563
        %1565 = vdwg.mxu0
        %v1567 = vsel %vm1089, %v1489, 0
        %1569 = vmatpush.msra.mxu0 0.0
        %1570 = vmatpush.msra.mxu0 0.0
        %1571 = vmatpush.msra.mxu0 0.0
        %1572 = vmatpush.msra.mxu0 0.0
        %1573 = vmatpush.msra.mxu0 0.0
        %1574 = vmatpush.msra.mxu0 0.0
        %1575 = vmatpush.msra.mxu0 0.0
        %1576 = vmatpush.msra.mxu0 0.0
        %1577 = vmatpush.msra.mxu0 0.0
        %1578 = vmatpush.msra.mxu0 0.0
        %1579 = vmatpush.msra.mxu0 0.0
        %1580 = vmatpush.msra.mxu0 0.0
        %1581 = vmatpush.msra.mxu0 0.0
        %1582 = vmatpush.msra.mxu0 0.0
        %1583 = vmatpush.msra.mxu0 %v1539
        %1584 = vmatpush.msra.mxu0 %v1538
        %1585 = vmatmul.f32.gmra.mxu0 %v1567
        %v1586 = vpop.f32.mrf.mxu0
        %v1587 = vadd.f32 %v1564, %v1586
        %1588 = vdwg.mxu0
        %v1589 = vld [vmem:[%s808] sm:$0xff]
        %v1590 = vld [vmem:[%s808 + $0x8] sm:$0xff]
        %v1592 = vsel %vm1089, %v1491, 0
        %1594 = vmatpush.msra.mxu0 0.0
        %1595 = vmatpush.msra.mxu0 0.0
        %1596 = vmatpush.msra.mxu0 0.0
        %1597 = vmatpush.msra.mxu0 0.0
        %1598 = vmatpush.msra.mxu0 0.0
        %1599 = vmatpush.msra.mxu0 0.0
        %1600 = vmatpush.msra.mxu0 0.0
        %1601 = vmatpush.msra.mxu0 0.0
        %1602 = vmatpush.msra.mxu0 0.0
        %1603 = vmatpush.msra.mxu0 0.0
        %1604 = vmatpush.msra.mxu0 0.0
        %1605 = vmatpush.msra.mxu0 0.0
        %1606 = vmatpush.msra.mxu0 0.0
        %1607 = vmatpush.msra.mxu0 0.0
        %1608 = vmatpush.msra.mxu0 %v1590
        %1609 = vmatpush.msra.mxu0 %v1589
        %1610 = vmatmul.f32.gmra.mxu0 %v1592
        %v1611 = vpop.f32.mrf.mxu0
        %v1612 = vadd.f32 0.0, %v1611
        %1613 = vdwg.mxu0
        %v1614 = vadd.f32 %v1587, %v1612
        %s1615 = scalar_lea.vmem %s808, 16 [#allocation16]
        %v1616 = vld [vmem:[%s1615] sm:$0xff]
        %v1617 = vld [vmem:[%s1615 + $0x8] sm:$0xff]
        %v1619 = vsel %vm1089, %v1536, 0
        %1621 = vmatpush.msra.mxu0 0.0
        %1622 = vmatpush.msra.mxu0 0.0
        %1623 = vmatpush.msra.mxu0 0.0
        %1624 = vmatpush.msra.mxu0 0.0
        %1625 = vmatpush.msra.mxu0 0.0
        %1626 = vmatpush.msra.mxu0 0.0
        %1627 = vmatpush.msra.mxu0 0.0
        %1628 = vmatpush.msra.mxu0 0.0
        %1629 = vmatpush.msra.mxu0 0.0
        %1630 = vmatpush.msra.mxu0 0.0
        %1631 = vmatpush.msra.mxu0 0.0
        %1632 = vmatpush.msra.mxu0 0.0
        %1633 = vmatpush.msra.mxu0 0.0
        %1634 = vmatpush.msra.mxu0 0.0
        %1635 = vmatpush.msra.mxu0 %v1617
        %1636 = vmatpush.msra.mxu0 %v1616
        %1637 = vmatmul.f32.gmra.mxu0 %v1619
        %v1638 = vpop.f32.mrf.mxu0
        %v1639 = vadd.f32 0.0, %v1638
        %1640 = vdwg.mxu0
        %v1641 = vadd.f32 %v1614, %v1639
        %v1642 = vperm.slane %v1492, 0
        %v1643 = vadd.f32 %v1641, %v1642
        %v1644 = vxor.u32 %v1643, 2147483648
        %v1645 = vmul.f32 %v1644, 1.442695
        %v1646 = vpow.pop %v1645
        %v1647 = vadd.f32 %v1646, 1.0
        %v1648 = vrcp.pop %v1647
        %v1649 = vmul.f32 %v1647, %v1648
        %v1650 = vsub.f32 1.0, %v1649
        %v1651 = vmul.f32 %v1648, %v1650
        %v1652 = vadd.f32 %v1648, %v1651
        %vm1653 = vweird.f32 %v1647
        %vm1654 = vweird.f32 %v1648
        %vm1655 = vmor %vm1653, %vm1654
        %v1656 = vsel %vm1655, %v1648, %v1652
        %v1657 = vand.u32 2147483647, %v1647
        %vm1658 = vcmp.eq.f32.partialorder %v1657, 8.507059e+37
        %v1659 = vand.u32 %v1647, 2147483648
        %v1660 = vor.u32 1.1754944e-38, %v1659
        %v1661 = vsel %vm1658, %v1660, %v1656
        %v1662 = vmul.f32 1.0, %v1661
        %1664 = vrot.lane.b32.xlu0 %v1662, 112
        %v1665 = vpop.permute.xlu0 %1664
        %1667 = vst.msk [vmem:[#allocation5] sm:$0xff] %vm1089, %v1665
        %1669 = vrot.lane.b32.xlu0 %v1587, 96
        %v1670 = vpop.permute.xlu0 %1669
        %1672 = vst.msk [vmem:[#allocation6] sm:$0xff] %vm1089, %v1670
        %v1673 = vmul.f32 %v1662, %v1491
        %1674 = vst.msk [vmem:[#allocation4] sm:$0xff] %vm1089, %v1673
        %s1675 = scalar_lea.vmem %s798, 32 [#allocation15]
        %v1676 = vld [vmem:[%s1675] sm:$0xff]
        %v1677 = vld [vmem:[%s1675 + $0x8] sm:$0xff]
        %s1678 = scalar_lea.vmem %s798, 48 [#allocation15]
        %v1679 = vld [vmem:[%s1678] sm:$0xff]
        %v1680 = vld [vmem:[%s1678 + $0x8] sm:$0xff]
        %1681 = vrot.lane.b32.xlu0 %v1516, 112
        %v1682 = vpop.permute.xlu0 %1681
        %v1683 = vsel %vm1089, %v1682, 0
        %1685 = vmatpush.msra.mxu0 0.0
        %1686 = vmatpush.msra.mxu0 0.0
        %1687 = vmatpush.msra.mxu0 0.0
        %1688 = vmatpush.msra.mxu0 0.0
        %1689 = vmatpush.msra.mxu0 0.0
        %1690 = vmatpush.msra.mxu0 0.0
        %1691 = vmatpush.msra.mxu0 0.0
        %1692 = vmatpush.msra.mxu0 0.0
        %1693 = vmatpush.msra.mxu0 0.0
        %1694 = vmatpush.msra.mxu0 0.0
        %1695 = vmatpush.msra.mxu0 0.0
        %1696 = vmatpush.msra.mxu0 0.0
        %1697 = vmatpush.msra.mxu0 0.0
        %1698 = vmatpush.msra.mxu0 0.0
        %1699 = vmatpush.msra.mxu0 %v1680
        %1700 = vmatpush.msra.mxu0 %v1679
        %1701 = vmatmul.f32.gmra.mxu0 %v1683
        %v1702 = vpop.f32.mrf.mxu0
        %v1703 = vadd.f32 0.0, %v1702
        %1704 = vdwg.mxu0
        %1705 = vrot.lane.b32.xlu0 %v1489, 112
        %v1706 = vpop.permute.xlu0 %1705
        %v1707 = vsel %vm1089, %v1706, 0
        %1709 = vmatpush.msra.mxu0 0.0
        %1710 = vmatpush.msra.mxu0 0.0
        %1711 = vmatpush.msra.mxu0 0.0
        %1712 = vmatpush.msra.mxu0 0.0
        %1713 = vmatpush.msra.mxu0 0.0
        %1714 = vmatpush.msra.mxu0 0.0
        %1715 = vmatpush.msra.mxu0 0.0
        %1716 = vmatpush.msra.mxu0 0.0
        %1717 = vmatpush.msra.mxu0 0.0
        %1718 = vmatpush.msra.mxu0 0.0
        %1719 = vmatpush.msra.mxu0 0.0
        %1720 = vmatpush.msra.mxu0 0.0
        %1721 = vmatpush.msra.mxu0 0.0
        %1722 = vmatpush.msra.mxu0 0.0
        %1723 = vmatpush.msra.mxu0 %v1677
        %1724 = vmatpush.msra.mxu0 %v1676
        %1725 = vmatmul.f32.gmra.mxu0 %v1707
        %v1726 = vpop.f32.mrf.mxu0
        %v1727 = vadd.f32 %v1703, %v1726
        %1728 = vdwg.mxu0
        %s1729 = scalar_lea.vmem %s808, 32 [#allocation16]
        %v1730 = vld [vmem:[%s1729] sm:$0xff]
        %v1731 = vld [vmem:[%s1729 + $0x8] sm:$0xff]
        %1732 = vrot.lane.b32.xlu0 %v1491, 112
        %v1733 = vpop.permute.xlu0 %1732
        %v1734 = vsel %vm1089, %v1733, 0
        %1736 = vmatpush.msra.mxu0 0.0
        %1737 = vmatpush.msra.mxu0 0.0
        %1738 = vmatpush.msra.mxu0 0.0
        %1739 = vmatpush.msra.mxu0 0.0
        %1740 = vmatpush.msra.mxu0 0.0
        %1741 = vmatpush.msra.mxu0 0.0
        %1742 = vmatpush.msra.mxu0 0.0
        %1743 = vmatpush.msra.mxu0 0.0
        %1744 = vmatpush.msra.mxu0 0.0
        %1745 = vmatpush.msra.mxu0 0.0
        %1746 = vmatpush.msra.mxu0 0.0
        %1747 = vmatpush.msra.mxu0 0.0
        %1748 = vmatpush.msra.mxu0 0.0
        %1749 = vmatpush.msra.mxu0 0.0
        %1750 = vmatpush.msra.mxu0 %v1731
        %1751 = vmatpush.msra.mxu0 %v1730
        %1752 = vmatmul.f32.gmra.mxu0 %v1734
        %v1753 = vpop.f32.mrf.mxu0
        %v1754 = vadd.f32 0.0, %v1753
        %1755 = vdwg.mxu0
        %v1756 = vadd.f32 %v1727, %v1754
        %s1757 = scalar_lea.vmem %s808, 48 [#allocation16]
        %v1758 = vld [vmem:[%s1757] sm:$0xff]
        %v1759 = vld [vmem:[%s1757 + $0x8] sm:$0xff]
        %1760 = vrot.lane.b32.xlu0 %v1536, 112
        %v1761 = vpop.permute.xlu0 %1760
        %v1762 = vsel %vm1089, %v1761, 0
        %1764 = vmatpush.msra.mxu0 0.0
        %1765 = vmatpush.msra.mxu0 0.0
        %1766 = vmatpush.msra.mxu0 0.0
        %1767 = vmatpush.msra.mxu0 0.0
        %1768 = vmatpush.msra.mxu0 0.0
        %1769 = vmatpush.msra.mxu0 0.0
        %1770 = vmatpush.msra.mxu0 0.0
        %1771 = vmatpush.msra.mxu0 0.0
        %1772 = vmatpush.msra.mxu0 0.0
        %1773 = vmatpush.msra.mxu0 0.0
        %1774 = vmatpush.msra.mxu0 0.0
        %1775 = vmatpush.msra.mxu0 0.0
        %1776 = vmatpush.msra.mxu0 0.0
        %1777 = vmatpush.msra.mxu0 0.0
        %1778 = vmatpush.msra.mxu0 %v1759
        %1779 = vmatpush.msra.mxu0 %v1758
        %1780 = vmatmul.f32.gmra.mxu0 %v1762
        %v1781 = vpop.f32.mrf.mxu0
        %v1782 = vadd.f32 0.0, %v1781
        %1783 = vdwg.mxu0
        %v1784 = vadd.f32 %v1756, %v1782
        %v1785 = vperm.slane %v1492, 1
        %v1786 = vadd.f32 %v1784, %v1785
        %v1787 = vxor.u32 %v1786, 2147483648
        %v1788 = vmul.f32 %v1787, 1.442695
        %v1789 = vpow.pop %v1788
        %v1790 = vadd.f32 %v1789, 1.0
        %v1791 = vrcp.pop %v1790
        %v1792 = vmul.f32 %v1790, %v1791
        %v1793 = vsub.f32 1.0, %v1792
        %v1794 = vmul.f32 %v1791, %v1793
        %v1795 = vadd.f32 %v1791, %v1794
        %vm1796 = vweird.f32 %v1790
        %vm1797 = vweird.f32 %v1791
        %vm1798 = vmor %vm1796, %vm1797
        %v1799 = vsel %vm1798, %v1791, %v1795
        %v1800 = vand.u32 2147483647, %v1790
        %vm1801 = vcmp.eq.f32.partialorder %v1800, 8.507059e+37
        %v1802 = vand.u32 %v1790, 2147483648
        %v1803 = vor.u32 1.1754944e-38, %v1802
        %v1804 = vsel %vm1801, %v1803, %v1799
        %v1805 = vmul.f32 1.0, %v1804
        %1806 = vst.msk [vmem:[#allocation5] sm:$0xff] %vm1309, %v1805
        %1808 = vrot.lane.b32.xlu0 %v1727, 112
        %v1809 = vpop.permute.xlu0 %1808
        %1811 = vst.msk [vmem:[#allocation6] sm:$0xff] %vm1309, %v1809
        %v1813 = vmul.f32 %v1805, %v1733
        %1815 = vrot.lane.b32.xlu0 %v1813, 16
        %v1816 = vpop.permute.xlu0 %1815
        %1818 = vst.msk [vmem:[#allocation4] sm:$0xff] %vm1309, %v1816
        %v1819 = vld [vmem:[#allocation4] sm:$0xff]
        %v1820 = vld [vmem:[%s0] sm:$0xff]
        %v1822 = vsel %vm986, %v1820, 0
        %1824 = vmatpush.msra.mxu0 0.0
        %1825 = vmatpush.msra.mxu0 0.0
        %1826 = vmatpush.msra.mxu0 0.0
        %1827 = vmatpush.msra.mxu0 0.0
        %1828 = vmatpush.msra.mxu0 0.0
        %1829 = vmatpush.msra.mxu0 0.0
        %1830 = vmatpush.msra.mxu0 0.0
        %1831 = vmatpush.msra.mxu0 0.0
        %1832 = vmatpush.msra.mxu0 0.0
        %1833 = vmatpush.msra.mxu0 0.0
        %1834 = vmatpush.msra.mxu0 0.0
        %1835 = vmatpush.msra.mxu0 0.0
        %1836 = vmatpush.msra.mxu0 0.0
        %1837 = vmatpush.msra.mxu0 0.0
        %1838 = vmatpush.msra.mxu0 0.0
        %1839 = vmatpush.msra.mxu0 %v1819
        %1840 = vmatmul.f32.gmra.mxu0 %v1822
        %v1841 = vpop.f32.mrf.mxu0
        %v1842 = vadd.f32 0.0, %v1841
        %1843 = vdwg.mxu0
        %v1844 = vld [vmem:[#allocation6] sm:$0xff]
        %v1845 = vld [vmem:[%s818] sm:$0xff]
        %v1846 = vld [vmem:[%s818 + $0x8] sm:$0xff]
        %v1848 = vsel %vm1089, %v1819, 0
        %1850 = vmatpush.msra.mxu0 0.0
        %1851 = vmatpush.msra.mxu0 0.0
        %1852 = vmatpush.msra.mxu0 0.0
        %1853 = vmatpush.msra.mxu0 0.0
        %1854 = vmatpush.msra.mxu0 0.0
        %1855 = vmatpush.msra.mxu0 0.0
        %1856 = vmatpush.msra.mxu0 0.0
        %1857 = vmatpush.msra.mxu0 0.0
        %1858 = vmatpush.msra.mxu0 0.0
        %1859 = vmatpush.msra.mxu0 0.0
        %1860 = vmatpush.msra.mxu0 0.0
        %1861 = vmatpush.msra.mxu0 0.0
        %1862 = vmatpush.msra.mxu0 0.0
        %1863 = vmatpush.msra.mxu0 0.0
        %1864 = vmatpush.msra.mxu0 %v1846
        %1865 = vmatpush.msra.mxu0 %v1845
        %1866 = vmatmul.f32.gmra.mxu0 %v1848
        %v1867 = vpop.f32.mrf.mxu0
        %v1868 = vadd.f32 0.0, %v1867
        %1869 = vdwg.mxu0
        %v1870 = vadd.f32 %v1844, %v1868
        %s1871 = scalar_lea.vmem %s818, 16 [#allocation17]
        %v1872 = vld [vmem:[%s1871] sm:$0xff]
        %v1873 = vld [vmem:[%s1871 + $0x8] sm:$0xff]
        %v1875 = vsel %vm1089, %v1842, 0
        %1877 = vmatpush.msra.mxu0 0.0
        %1878 = vmatpush.msra.mxu0 0.0
        %1879 = vmatpush.msra.mxu0 0.0
        %1880 = vmatpush.msra.mxu0 0.0
        %1881 = vmatpush.msra.mxu0 0.0
        %1882 = vmatpush.msra.mxu0 0.0
        %1883 = vmatpush.msra.mxu0 0.0
        %1884 = vmatpush.msra.mxu0 0.0
        %1885 = vmatpush.msra.mxu0 0.0
        %1886 = vmatpush.msra.mxu0 0.0
        %1887 = vmatpush.msra.mxu0 0.0
        %1888 = vmatpush.msra.mxu0 0.0
        %1889 = vmatpush.msra.mxu0 0.0
        %1890 = vmatpush.msra.mxu0 0.0
        %1891 = vmatpush.msra.mxu0 %v1873
        %1892 = vmatpush.msra.mxu0 %v1872
        %1893 = vmatmul.f32.gmra.mxu0 %v1875
        %v1894 = vpop.f32.mrf.mxu0
        %v1895 = vadd.f32 0.0, %v1894
        %1896 = vdwg.mxu0
        %v1897 = vadd.f32 %v1870, %v1895
        %v1898 = vperm.slane %v1493, 0
        %v1899 = vadd.f32 %v1897, %v1898
        %v1900 = vtanh.pop %v1899
        %v1901 = vld [vmem:[#allocation5] sm:$0xff]
        %v1902 = vmul.f32 %v1901, %v1491
        %v1903 = vsub.f32 1.0, %v1901
        %v1904 = vmul.f32 %v1903, %v1900
        %v1905 = vadd.f32 %v1902, %v1904
        %1906 = vst.msk [vmem:[%s1490] sm:$0xff] %vm1089, %v1905
        %v1907 = vld [vmem:[#allocation6] sm:$0xff]
        %s1908 = scalar_lea.vmem %s818, 32 [#allocation17]
        %v1909 = vld [vmem:[%s1908] sm:$0xff]
        %v1910 = vld [vmem:[%s1908 + $0x8] sm:$0xff]
        %1911 = vrot.lane.b32.xlu0 %v1819, 112
        %v1912 = vpop.permute.xlu0 %1911
        %v1913 = vsel %vm1089, %v1912, 0
        %1915 = vmatpush.msra.mxu0 0.0
        %1916 = vmatpush.msra.mxu0 0.0
        %1917 = vmatpush.msra.mxu0 0.0
        %1918 = vmatpush.msra.mxu0 0.0
        %1919 = vmatpush.msra.mxu0 0.0
        %1920 = vmatpush.msra.mxu0 0.0
        %1921 = vmatpush.msra.mxu0 0.0
        %1922 = vmatpush.msra.mxu0 0.0
        %1923 = vmatpush.msra.mxu0 0.0
        %1924 = vmatpush.msra.mxu0 0.0
        %1925 = vmatpush.msra.mxu0 0.0
        %1926 = vmatpush.msra.mxu0 0.0
        %1927 = vmatpush.msra.mxu0 0.0
        %1928 = vmatpush.msra.mxu0 0.0
        %1929 = vmatpush.msra.mxu0 %v1910
        %1930 = vmatpush.msra.mxu0 %v1909
        %1931 = vmatmul.f32.gmra.mxu0 %v1913
        %v1932 = vpop.f32.mrf.mxu0
        %v1933 = vadd.f32 0.0, %v1932
        %1934 = vdwg.mxu0
        %1936 = vrot.lane.b32.xlu0 %v1933, 16
        %v1937 = vpop.permute.xlu0 %1936
        %v1939 = vadd.f32 %v1907, %v1937
        %s1940 = scalar_lea.vmem %s818, 48 [#allocation17]
        %v1941 = vld [vmem:[%s1940] sm:$0xff]
        %v1942 = vld [vmem:[%s1940 + $0x8] sm:$0xff]
        %1943 = vrot.lane.b32.xlu0 %v1842, 112
        %v1944 = vpop.permute.xlu0 %1943
        %v1945 = vsel %vm1089, %v1944, 0
        %1947 = vmatpush.msra.mxu0 0.0
        %1948 = vmatpush.msra.mxu0 0.0
        %1949 = vmatpush.msra.mxu0 0.0
        %1950 = vmatpush.msra.mxu0 0.0
        %1951 = vmatpush.msra.mxu0 0.0
        %1952 = vmatpush.msra.mxu0 0.0
        %1953 = vmatpush.msra.mxu0 0.0
        %1954 = vmatpush.msra.mxu0 0.0
        %1955 = vmatpush.msra.mxu0 0.0
        %1956 = vmatpush.msra.mxu0 0.0
        %1957 = vmatpush.msra.mxu0 0.0
        %1958 = vmatpush.msra.mxu0 0.0
        %1959 = vmatpush.msra.mxu0 0.0
        %1960 = vmatpush.msra.mxu0 0.0
        %1961 = vmatpush.msra.mxu0 %v1942
        %1962 = vmatpush.msra.mxu0 %v1941
        %1963 = vmatmul.f32.gmra.mxu0 %v1945
        %v1964 = vpop.f32.mrf.mxu0
        %v1965 = vadd.f32 0.0, %v1964
        %1966 = vdwg.mxu0
        %1968 = vrot.lane.b32.xlu0 %v1965, 16
        %v1969 = vpop.permute.xlu0 %1968
        %v1971 = vadd.f32 %v1939, %v1969
        %v1972 = vperm.slane %v1493, 1
        %1974 = vrot.lane.b32.xlu0 %v1972, 16
        %v1975 = vpop.permute.xlu0 %1974
        %v1977 = vadd.f32 %v1971, %v1975
        %v1978 = vtanh.pop %v1977
        %v1979 = vld [vmem:[#allocation5] sm:$0xff]
        %v1980 = vmul.f32 %v1979, %v1491
        %v1981 = vsub.f32 1.0, %v1979
        %v1982 = vmul.f32 %v1981, %v1978
        %v1983 = vadd.f32 %v1980, %v1982
        %1984 = vst.msk [vmem:[%s1490] sm:$0xff] %vm1309, %v1983
        %v1985 = vld [vmem:[%s1490] sm:$0xff]
        %v1986 = vld [vmem:[%s2] sm:$0xff]
        %v1987 = vld [vmem:[%s2 + $0x8] sm:$0xff]
        %v1988 = vld [vmem:[#allocation9] sm:$0x1]
        %v1990 = vperm.slane %v1988, 0
        %v1993 = vsel %vm1089, %v1985, 0
        %1995 = vmatpush.msra.mxu0 0.0
        %1996 = vmatpush.msra.mxu0 0.0
        %1997 = vmatpush.msra.mxu0 0.0
        %1998 = vmatpush.msra.mxu0 0.0
        %1999 = vmatpush.msra.mxu0 0.0
        %2000 = vmatpush.msra.mxu0 0.0
        %2001 = vmatpush.msra.mxu0 0.0
        %2002 = vmatpush.msra.mxu0 0.0
        %2003 = vmatpush.msra.mxu0 0.0
        %2004 = vmatpush.msra.mxu0 0.0
        %2005 = vmatpush.msra.mxu0 0.0
        %2006 = vmatpush.msra.mxu0 0.0
        %2007 = vmatpush.msra.mxu0 0.0
        %2008 = vmatpush.msra.mxu0 0.0
        %2009 = vmatpush.msra.mxu0 %v1987
        %2010 = vmatpush.msra.mxu0 %v1986
        %2011 = vmatmul.f32.gmra.mxu0 %v1993
        %v2012 = vpop.f32.mrf.mxu0
        %v2013 = vadd.f32 %v1990, %v2012
        %2014 = vdwg.mxu0
        %2015 = vst.msk [vmem:[#allocation3] sm:$0xff] %vm1033, %v2013
        %v2016 = vld [vmem:[%s2] sm:$0xff]
        %v2017 = vld [vmem:[%s2 + $0x8] sm:$0xff]
        %v2018 = vld [vmem:[#allocation9] sm:$0x1]
        %v2020 = vperm.slane %v2018, 0
        %2022 = vrot.lane.b32.xlu0 %v1985, 112
        %v2023 = vpop.permute.xlu0 %2022
        %v2024 = vsel %vm1089, %v2023, 0
        %2026 = vmatpush.msra.mxu0 0.0
        %2027 = vmatpush.msra.mxu0 0.0
        %2028 = vmatpush.msra.mxu0 0.0
        %2029 = vmatpush.msra.mxu0 0.0
        %2030 = vmatpush.msra.mxu0 0.0
        %2031 = vmatpush.msra.mxu0 0.0
        %2032 = vmatpush.msra.mxu0 0.0
        %2033 = vmatpush.msra.mxu0 0.0
        %2034 = vmatpush.msra.mxu0 0.0
        %2035 = vmatpush.msra.mxu0 0.0
        %2036 = vmatpush.msra.mxu0 0.0
        %2037 = vmatpush.msra.mxu0 0.0
        %2038 = vmatpush.msra.mxu0 0.0
        %2039 = vmatpush.msra.mxu0 0.0
        %2040 = vmatpush.msra.mxu0 %v2017
        %2041 = vmatpush.msra.mxu0 %v2016
        %2042 = vmatmul.f32.gmra.mxu0 %v2024
        %v2043 = vpop.f32.mrf.mxu0
        %v2044 = vadd.f32 %v2020, %v2043
        %2045 = vdwg.mxu0
        %2047 = vrot.lane.b32.xlu0 %v2044, 2
        %v2048 = vpop.permute.xlu0 %2047
        %vm2050 = vcmask 31760
        %2051 = vst.msk [vmem:[#allocation3] sm:$0xff] %vm2050, %v2048
        %v2052 = vld [vmem:[#allocation3] sm:$0xff]
        %vm2053 = vcmask 31744
        %2054 = vst.msk [vmem:[%s967] sm:$0xff] %vm2053, %v2052
        %s2055 = smul.u32 %s33, 4
        %s2056 = sadd.s32 %s2055, %s34
        %p2057 = scmp.lt.s32.totalorder %s2056, 7
        %s2058 = scalar_select %p2057, %s2056, 7
        %s2059 = smul.addr %s2058, 8
        %s2060 = scalar_lea.vmem %s14, %s2059
        // Predicated region
        $region125: #{tpu_custom_call.1} parent=75 // pred_check
          %p2061 = pneg %p452
        $region126: #{tpu_custom_call.1} parent=75 // pred_check_branch
          %2063 = sbr.rel (%p2061) target = $region128
        $region127: #{tpu_custom_call.1} parent=75 // pred_region
          %s2064 = smul.u32 %s33, 4
          %s2065 = sadd.s32 %s2064, %s34
        $region128: #{tpu_custom_call.1} parent=75 // pred_fallthru
          _
      $region76: #{tpu_custom_call.1} parent=5 // pred_fallthru
        _
      %p2066 = scmp.le.s32.totalorder 2, %s24
      // Predicated region
      $region129: #{tpu_custom_call.1} parent=5 // pred_check
        %p2067 = pneg %p2066
      $region130: #{tpu_custom_call.1} parent=5 // pred_check_branch
        %2069 = sbr.rel (%p2067) target = $region132
      $region131: #{tpu_custom_call.1} parent=5 // pred_region
        %s2070 = ssub.s32 %s24, 2
        // Predicated region
        $region133: #{tpu_custom_call.1} parent=131 // pred_check
          %p2071 = pneg %p458
        $region134: #{tpu_custom_call.1} parent=131 // pred_check_branch
          %2073 = sbr.rel (%p2071) target = $region136
        $region135: #{tpu_custom_call.1} parent=131 // pred_region
          %s2074 = smul.u32 %s35, 4
          %s2075 = sadd.s32 %s2074, %s36
          %p2076 = scmp.lt.s32.totalorder %s2075, 7
          %s2077 = scalar_select %p2076, %s2075, 7
          %s2078 = smul.addr %s2077, 8
          %s2079 = scalar_lea.vmem %s14, %s2078
        $region136: #{tpu_custom_call.1} parent=131 // pred_fallthru
          _
      $region132: #{tpu_custom_call.1} parent=5 // pred_fallthru
        _
    $region6: #{tpu_custom_call.1} parent=1 // loop_footer
      %s28 = sadd.s32 1, %s24
    $region7: #{tpu_custom_call.1} parent=1 // loop_footer_branch
      %23 = sbr.rel target = $region3
    $region8: #{tpu_custom_call.1} parent=1 // loop_exit
      _
    %2080 = vsyncpa [#allocation8], 1
    %s2081 = scalar_lea.sflag [#allocation8], 1
    %2082 = vsyncpa %s2081, 1
    %2083 = vsyncpa [#allocation10], 1

</llo_original>
